<compile_context>
chip_gen: v6e
topology: v6e:2x2x1
jax: 0.10.0
libtpu: 0.0.40
codegen_flags: <defaults>
</compile_context>

<pallas_src>
import functools
import math

import jax
import jax.numpy as jnp
from jax import lax
from jax.experimental import pallas as pl
from jax.experimental.pallas import tpu as pltpu


def _full_attention_kernel(q_ref, k_ref, v_ref, o_ref, a_ref, *,
                           scale, mask_flag, tile_l):
    # Block views (batch dim squeezed):
    #   q_ref: (tL, H, E)   k_ref: (S, H, E)   v_ref: (S, H, D)
    #   o_ref: (tL, H, D)   a_ref: (H, tL, S)
    q = q_ref[...]
    k = k_ref[...]
    v = v_ref[...]

    # scores[h, l, s] = sum_e q[l, h, e] * k[s, h, e]
    # Batched over H, contracting E, f32 accumulation on the MXU.
    scores = lax.dot_general(
        q, k,
        dimension_numbers=(((2,), (2,)), ((1,), (1,))),
        preferred_element_type=jnp.float32,
    ) * scale                                              # (H, tL, S) f32

    if mask_flag:
        # TriangularCausalMask: mask positions where col > row (triu, diag=1).
        # (scale > 0, so masking scaled scores == scaling masked scores.)
        # Row index is offset by this L-tile's start.
        l0 = pl.program_id(1) * tile_l
        lt, s = scores.shape[1], scores.shape[2]
        row = l0 + lax.broadcasted_iota(jnp.int32, (lt, s), 0)
        col = lax.broadcasted_iota(jnp.int32, (lt, s), 1)
        scores = jnp.where((col > row)[None, :, :], -jnp.inf, scores)

    # Softmax over the key axis (f32).
    m = jnp.max(scores, axis=-1, keepdims=True)
    p = jnp.exp(scores - m)
    denom = jnp.sum(p, axis=-1, keepdims=True)
    inv = pl.reciprocal(denom, approx=True)        # EUP slot (cheap)
    inv = inv * (2.0 - denom * inv)                # one Newton step -> ~f32 exact
    attn = p * inv                                 # (H, tL, S) f32

    a_ref[...] = attn.astype(a_ref.dtype)

    # out[h, l, d] = sum_s attn[h, l, s] * v[s, h, d]
    out = lax.dot_general(
        attn.astype(v.dtype), v,
        dimension_numbers=(((2,), (0,)), ((0,), (1,))),
        preferred_element_type=jnp.float32,
    )                                              # (H, tL, D)

    # In-VMEM relayout (H, tL, D) -> (tL, H, D) so V is stored directly in
    # the PyTorch (B, L, H, D) layout without any wrapper-side HBM transpose.
    o_ref[...] = jnp.transpose(out, (1, 0, 2)).astype(o_ref.dtype)


def _pick_l_tile(L):
    # Largest L tile <= 256 that divides L (keeps the A block's sublane dim a
    # multiple of 8).  256 keeps H*tL*S*4 B of f32 scores comfortably inside
    # v7x's smaller VMEM; v5e/v6e could go bigger but 256 is a safe default.
    for t in (256, 128, 64, 32, 16, 8):
        if L % t == 0:
            return t
    return L


def full_attention(queries, keys, values, attn_mask=None, *,
                   mask_flag=True, scale=None, output_attention=True):
    """Pallas TPU implementation of FullAttention.forward (inference mode).

    queries: (B, L, H, E)   keys: (B, S, H, E)   values: (B, S, H, D)
    attn_mask: only the default TriangularCausalMask (None) is supported.
    Returns (V: (B, L, H, D), A: (B, H, L, S)) if output_attention else (V, None).
    """
    assert attn_mask is None, "only the default TriangularCausalMask is supported"
    B, L, H, E = queries.shape
    _, S, _, D = values.shape
    scale_val = float(scale) if scale is not None else 1.0 / math.sqrt(E)

    tL = _pick_l_tile(L)
    grid = (B, L // tL)

    kernel = functools.partial(
        _full_attention_kernel, scale=scale_val, mask_flag=mask_flag, tile_l=tL)

    V, A = pl.pallas_call(
        kernel,
        out_shape=(
            jax.ShapeDtypeStruct((B, L, H, D), queries.dtype),
            jax.ShapeDtypeStruct((B, H, L, S), queries.dtype),
        ),
        grid_spec=pltpu.PrefetchScalarGridSpec(
            num_scalar_prefetch=0,
            grid=grid,
            in_specs=[
                # Native layouts, no wrapper transposes.
                pl.BlockSpec((None, tL, H, E), lambda b, l: (b, l, 0, 0)),
                # K / V block indices depend only on b -> stay resident
                # across the L-tile axis (no re-DMA per L tile).
                pl.BlockSpec((None, S, H, E), lambda b, l: (b, 0, 0, 0)),
                pl.BlockSpec((None, S, H, D), lambda b, l: (b, 0, 0, 0)),
            ],
            out_specs=[
                pl.BlockSpec((None, tL, H, D), lambda b, l: (b, l, 0, 0)),
                pl.BlockSpec((None, H, tL, S), lambda b, l: (b, 0, l, 0)),
            ],
        ),
        compiler_params=pltpu.CompilerParams(
            dimension_semantics=("parallel", "parallel"),
            vmem_limit_bytes=48 * 1024 * 1024,
        ),
    )(queries, keys, values)

    if output_attention:
        return V, A
    return V, None


def _reference(queries, keys, values, scale=None, mask_flag=True):
    B, L, H, E = queries.shape
    _, S, _, D = values.shape
    scale = scale if scale is not None else 1.0 / math.sqrt(E)
    scores = jnp.einsum('blhe,bshe->bhls', queries, keys)
    if mask_flag:
        row = lax.broadcasted_iota(jnp.int32, (L, S), 0)
        col = lax.broadcasted_iota(jnp.int32, (L, S), 1)
        scores = jnp.where(col > row, -jnp.inf, scores)
    A = jax.nn.softmax(scale * scores, axis=-1)
    V = jnp.einsum('bhls,bshd->blhd', A, values)
    return V, A


if __name__ == "__main__":
    key = jax.random.PRNGKey(0)
    B, L, S, H, E, D = 2, 8, 8, 4, 32, 32
    kq, kk, kv = jax.random.split(key, 3)
    queries = jax.random.normal(kq, (B, L, H, E), dtype=jnp.float32)
    keys = jax.random.normal(kk, (B, S, H, E), dtype=jnp.float32)
    values = jax.random.normal(kv, (B, S, H, D), dtype=jnp.float32)

    V, A = full_attention(queries, keys, values, attn_mask=None)
    V = jax.block_until_ready(V)
    A = jax.block_until_ready(A)

    V_ref, A_ref = _reference(queries, keys, values)
    assert V.shape == (B, L, H, D) and A.shape == (B, H, L, S)
    assert jnp.allclose(V, V_ref, atol=1e-4, rtol=1e-4), "V mismatch"
    assert jnp.allclose(A, A_ref, atol=1e-4, rtol=1e-4), "A mismatch"

    print("KERNEL_OK")
</pallas_src>

<mosaic_0001>
module attributes {stable_mosaic.version = 11 : i64} {
  func.func @_full_attention_kernel(%arg0: i32, %arg1: i32, %arg2: memref<1x8x4x32xf32, #tpu.memory_space<vmem>>, %arg3: memref<1x8x4x32xf32, #tpu.memory_space<vmem>>, %arg4: memref<1x8x4x32xf32, #tpu.memory_space<vmem>>, %arg5: memref<1x8x4x32xf32, #tpu.memory_space<vmem>>, %arg6: memref<1x4x8x8xf32, #tpu.memory_space<vmem>>) attributes {dimension_semantics = [#tpu.dimension_semantics<parallel>, #tpu.dimension_semantics<parallel>], iteration_bounds = array<i64: 2, 1>, scalar_prefetch = 0 : i64, scratch_operands = 0 : i64, tpu.core_type = #tpu.core_type<tc>, window_params = [{transform_indices = @transform_0, window_bounds = array<i64: 1, 8, 4, 32>}, {transform_indices = @transform_1, window_bounds = array<i64: 1, 8, 4, 32>}, {transform_indices = @transform_2, window_bounds = array<i64: 1, 8, 4, 32>}, {transform_indices = @transform_3, window_bounds = array<i64: 1, 8, 4, 32>}, {transform_indices = @transform_4, window_bounds = array<i64: 1, 4, 8, 8>}]} {
    %c0 = arith.constant 0 : index
    %c0_0 = arith.constant 0 : index
    %c0_1 = arith.constant 0 : index
    %c0_2 = arith.constant 0 : index
    %0 = vector.load %arg2[%c0, %c0_0, %c0_1, %c0_2] : memref<1x8x4x32xf32, #tpu.memory_space<vmem>>, vector<1x8x4x32xf32>
    %1 = vector.shape_cast %0 : vector<1x8x4x32xf32> to vector<8x4x32xf32>
    %c0_3 = arith.constant 0 : index
    %c0_4 = arith.constant 0 : index
    %c0_5 = arith.constant 0 : index
    %c0_6 = arith.constant 0 : index
    %2 = vector.load %arg3[%c0_3, %c0_4, %c0_5, %c0_6] : memref<1x8x4x32xf32, #tpu.memory_space<vmem>>, vector<1x8x4x32xf32>
    %3 = vector.shape_cast %2 : vector<1x8x4x32xf32> to vector<8x4x32xf32>
    %c0_7 = arith.constant 0 : index
    %c0_8 = arith.constant 0 : index
    %c0_9 = arith.constant 0 : index
    %c0_10 = arith.constant 0 : index
    %4 = vector.load %arg4[%c0_7, %c0_8, %c0_9, %c0_10] : memref<1x8x4x32xf32, #tpu.memory_space<vmem>>, vector<1x8x4x32xf32>
    %5 = vector.shape_cast %4 : vector<1x8x4x32xf32> to vector<8x4x32xf32>
    %cst = arith.constant dense<0.000000e+00> : vector<4x8x8xf32>
    %6 = tpu.matmul %1, %3, %cst {dimension_numbers = #tpu.dot_dimension_numbers<[2], [2], [0], [0], [0, 1, 0, 0, 1, 0], [1], [1]>} : vector<8x4x32xf32>, vector<8x4x32xf32>, vector<4x8x8xf32> -> vector<4x8x8xf32>
    %cst_11 = arith.constant 0.176776692 : f32
    %7 = vector.broadcast %cst_11 : f32 to vector<4x8x8xf32>
    %8 = arith.mulf %6, %7 : vector<4x8x8xf32>
    %c8_i32 = arith.constant 8 : i32
    %9 = arith.muli %arg1, %c8_i32 : i32
    %10 = tpu.iota {dimensions = array<i32: 0>} : vector<8x8xi32>
    %11 = vector.broadcast %9 : i32 to vector<8x8xi32>
    %12 = arith.addi %11, %10 : vector<8x8xi32>
    %13 = tpu.iota {dimensions = array<i32: 1>} : vector<8x8xi32>
    %14 = arith.cmpi sgt, %13, %12 : vector<8x8xi32>
    %15 = vector.shape_cast %14 : vector<8x8xi1> to vector<1x8x8xi1>
    %cst_12 = arith.constant 0xFF800000 : f32
    %16 = vector.shape_cast %15 : vector<1x8x8xi1> to vector<1x8x8xi1>
    %17 = vector.broadcast %16 : vector<1x8x8xi1> to vector<4x8x8xi1>
    %18 = vector.broadcast %cst_12 : f32 to vector<4x8x8xf32>
    %19 = arith.select %17, %18, %8 : vector<4x8x8xi1>, vector<4x8x8xf32>
    %cst_13 = arith.constant dense<0xFF800000> : vector<4x8xf32>
    %20 = vector.multi_reduction <maximumf>, %19, %cst_13 [2] : vector<4x8x8xf32> to vector<4x8xf32>
    %21 = vector.shape_cast %20 : vector<4x8xf32> to vector<4x8x1xf32>
    %22 = vector.broadcast %21 : vector<4x8x1xf32> to vector<4x8x8xf32>
    %23 = arith.subf %19, %22 : vector<4x8x8xf32>
    %24 = math.exp %23 : vector<4x8x8xf32>
    %cst_14 = arith.constant dense<0.000000e+00> : vector<4x8xf32>
    %25 = vector.multi_reduction <add>, %24, %cst_14 [2] : vector<4x8x8xf32> to vector<4x8xf32>
    %26 = vector.shape_cast %25 : vector<4x8xf32> to vector<4x8x1xf32>
    %27 = tpu.reciprocal %26 {approx = true} : vector<4x8x1xf32> -> vector<4x8x1xf32>
    %28 = arith.mulf %26, %27 : vector<4x8x1xf32>
    %cst_15 = arith.constant 2.000000e+00 : f32
    %29 = vector.broadcast %cst_15 : f32 to vector<4x8x1xf32>
    %30 = arith.subf %29, %28 : vector<4x8x1xf32>
    %31 = arith.mulf %27, %30 : vector<4x8x1xf32>
    %32 = vector.broadcast %31 : vector<4x8x1xf32> to vector<4x8x8xf32>
    %33 = arith.mulf %24, %32 : vector<4x8x8xf32>
    %c0_16 = arith.constant 0 : index
    %c0_17 = arith.constant 0 : index
    %c0_18 = arith.constant 0 : index
    %c0_19 = arith.constant 0 : index
    %34 = vector.load %arg6[%c0_16, %c0_17, %c0_18, %c0_19] : memref<1x4x8x8xf32, #tpu.memory_space<vmem>>, vector<1x4x8x8xf32>
    %35 = vector.shape_cast %34 : vector<1x4x8x8xf32> to vector<4x8x8xf32>
    %36 = vector.shape_cast %33 : vector<4x8x8xf32> to vector<1x4x8x8xf32>
    tpu.vector_store %arg6[%c0_16, %c0_17, %c0_18, %c0_19], %36 {strides = array<i32>} : memref<1x4x8x8xf32, #tpu.memory_space<vmem>>, vector<1x4x8x8xf32>,
    %cst_20 = arith.constant dense<0.000000e+00> : vector<4x8x32xf32>
    %37 = tpu.matmul %33, %5, %cst_20 {dimension_numbers = #tpu.dot_dimension_numbers<[2], [0], [1], [2], [0, 0, 0, 1, 1, 2], [0], [1]>} : vector<4x8x8xf32>, vector<8x4x32xf32>, vector<4x8x32xf32> -> vector<4x8x32xf32>
    %38 = tpu.transpose %37, [1, 0, 2] : vector<4x8x32xf32> -> vector<8x4x32xf32>
    %c0_21 = arith.constant 0 : index
    %c0_22 = arith.constant 0 : index
    %c0_23 = arith.constant 0 : index
    %c0_24 = arith.constant 0 : index
    %39 = vector.load %arg5[%c0_21, %c0_22, %c0_23, %c0_24] : memref<1x8x4x32xf32, #tpu.memory_space<vmem>>, vector<1x8x4x32xf32>
    %40 = vector.shape_cast %39 : vector<1x8x4x32xf32> to vector<8x4x32xf32>
    %41 = vector.shape_cast %38 : vector<8x4x32xf32> to vector<1x8x4x32xf32>
    tpu.vector_store %arg5[%c0_21, %c0_22, %c0_23, %c0_24], %41 {strides = array<i32>} : memref<1x8x4x32xf32, #tpu.memory_space<vmem>>, vector<1x8x4x32xf32>,
    return
  }
  func.func @transform_0(%arg0: i32, %arg1: i32) -> (i32, i32, i32, i32) {
    %c0_i32 = arith.constant 0 : i32
    %c0_i32_0 = arith.constant 0 : i32
    %c0_i32_1 = arith.constant 0 : i32
    return %arg0, %arg1, %c0_i32, %c0_i32_0 : i32, i32, i32, i32
  }
  func.func @transform_1(%arg0: i32, %arg1: i32) -> (i32, i32, i32, i32) {
    %c0_i32 = arith.constant 0 : i32
    %c0_i32_0 = arith.constant 0 : i32
    %c0_i32_1 = arith.constant 0 : i32
    %c0_i32_2 = arith.constant 0 : i32
    return %arg0, %c0_i32, %c0_i32_0, %c0_i32_1 : i32, i32, i32, i32
  }
  func.func @transform_2(%arg0: i32, %arg1: i32) -> (i32, i32, i32, i32) {
    %c0_i32 = arith.constant 0 : i32
    %c0_i32_0 = arith.constant 0 : i32
    %c0_i32_1 = arith.constant 0 : i32
    %c0_i32_2 = arith.constant 0 : i32
    return %arg0, %c0_i32, %c0_i32_0, %c0_i32_1 : i32, i32, i32, i32
  }
  func.func @transform_3(%arg0: i32, %arg1: i32) -> (i32, i32, i32, i32) {
    %c0_i32 = arith.constant 0 : i32
    %c0_i32_0 = arith.constant 0 : i32
    %c0_i32_1 = arith.constant 0 : i32
    return %arg0, %arg1, %c0_i32, %c0_i32_0 : i32, i32, i32, i32
  }
  func.func @transform_4(%arg0: i32, %arg1: i32) -> (i32, i32, i32, i32) {
    %c0_i32 = arith.constant 0 : i32
    %c0_i32_0 = arith.constant 0 : i32
    %c0_i32_1 = arith.constant 0 : i32
    return %arg0, %c0_i32, %arg1, %c0_i32_0 : i32, i32, i32, i32
  }
}

</mosaic_0001>

<llo_original>
// kernel: tpu_custom_call.1
$region0: #{tpu_custom_call.1}
  #allocation0 [shape = 'u32[]', space=smem, size = 0x4, offset = 0x4, fixed_abs, tag = 'smem constant byte address 0x4 - core index']
  #allocation1 [shape = 'u32[144,128]{1,0:T(1,128)}', space=vmem, size = 0x12000, scoped, tag = 'internal scratch']
  %s0 = inlined_call_operand.hbm [shape: f32[2,8,4,32], index: 0, kind: input, shape index: {}]
  %s1 = inlined_call_operand.hbm [shape: f32[2,8,4,32], index: 1, kind: input, shape index: {}]
  %s2 = inlined_call_operand.hbm [shape: f32[2,8,4,32], index: 2, kind: input, shape index: {}]
  %s3 = inlined_call_operand.hbm [shape: f32[2,8,4,32], index: 3, kind: output, shape index: {0}]
  %s4 = inlined_call_operand.hbm [shape: f32[2,4,8,8], index: 4, kind: output, shape index: {1}]
  %5 = xla_tuple %s3, %s4
  %s6 = sld [smem:[#allocation0]]
  $region65: #{tpu_custom_call.1} parent=0
    _
  %s8 = ssub.s32 1, %s6
  %s9 = scalar_select 0, %s8, %s6
  $region1: #{tpu_custom_call.1} parent=0
    #allocation2 [shape = 'u8[32768]{0}', space=vmem, size = 0x8000, scoped, tag = 'input window, operand 0']
    #allocation3 [shape = 's32[2]{0}', space=sflag, size = 0x8, scoped, tag = 'scoped memory for tpu_custom_call.1']
    #allocation4 [shape = 's32[2]{0}', space=sflag, size = 0x8, scoped, tag = 'scoped memory for tpu_custom_call.1']
    #allocation5 [shape = 'u8[32768]{0}', space=vmem, size = 0x8000, scoped, tag = 'input window, operand 1']
    #allocation6 [shape = 's32[2]{0}', space=sflag, size = 0x8, scoped, tag = 'scoped memory for tpu_custom_call.1']
    #allocation7 [shape = 'u8[32768]{0}', space=vmem, size = 0x8000, scoped, tag = 'input window, operand 2']
    #allocation8 [shape = 'u8[32768]{0}', space=vmem, size = 0x8000, scoped, tag = 'output window, operand 0']
    #allocation9 [shape = 'u8[32768]{0}', space=vmem, size = 0x8000, scoped, tag = 'output window, operand 1']
    #allocation10 [shape = 's32[2]{0}', space=sflag, size = 0x8, scoped, tag = 'scoped memory for tpu_custom_call.1']
    %10 = vsyncpa [#allocation3], 0
    %s11 = scalar_lea.sflag [#allocation3], 1
    %12 = vsyncpa %s11, 0
    %13 = vsyncpa [#allocation6], 0
    %s14 = scalar_lea.sflag [#allocation6], 1
    %15 = vsyncpa %s14, 0
    %16 = vsyncpa [#allocation4], 0
    %s17 = scalar_lea.sflag [#allocation4], 1
    %18 = vsyncpa %s17, 0
    %19 = vsyncpa [#allocation10], 0
    %s20 = scalar_lea.sflag [#allocation10], 1
    %21 = vsyncpa %s20, 0
    loop: start=0, step=1, limit=4
    $region2: #{tpu_custom_call.1} parent=1 // loop_pre_header
      _
    $region3: #{tpu_custom_call.1} parent=1 // loop_header
      %s23 = sphi 0, %s27
      %p24 = scmp.ge.s32.totalorder %s23, 4
      %s30 = sphi 0, %s42
      %s31 = sphi 0, %s38
      %s32 = sphi 0, %s30
      %s33 = sphi 0, %s31
      %s34 = sphi 0, %s32
      %s35 = sphi 0, %s33
      %s47 = sphi 0, %s49
      %s50 = sphi 0, %s47
      %s51 = sphi 0, %s50
      %s67 = sphi 0, %s51
      %s73 = sphi 0, %s75
      %s76 = sphi 0, %s73
      %s77 = sphi 0, %s76
      %s93 = sphi 0, %s77
      %s99 = sphi 0, %s101
      %s102 = sphi 0, %s99
      %s103 = sphi 0, %s102
      %s119 = sphi 0, %s103
      %s127 = sphi 0, %s129
      %s130 = sphi 0, %s127
      %s131 = sphi 0, %s130
      %s147 = sphi 0, %s131
      %s155 = sphi 0, %s157
      %s158 = sphi 0, %s155
      %s159 = sphi 0, %s158
      %s175 = sphi 0, %s159
    $region4: #{tpu_custom_call.1} parent=1 // loop_header_branch
      %26 = sbr.rel (%p24) target = $region8
    $region5: #{tpu_custom_call.1} parent=1 // loop_body
      %s28 = ssub.s32 %s23, 1
      %s29 = ssub.s32 %s23, 2
      %s36 = sadd.s32 1, %s31
      %p37 = scmp.ge.s32.totalorder %s36, 1
      %s38 = scalar_select %p37, 0, %s36
      %s39 = sadd.s32 1, %s30
      %s40 = scalar_select %p37, %s39, %s30
      %p41 = scmp.ge.s32.totalorder %s40, 2
      %s42 = scalar_select %p41, 0, %s40
      %s43 = ssub.s32 %s30, %s42
      %s44 = ssub.s32 %s31, %s38
      %s45 = sor.u32 %s43, %s44
      %p46 = scmp.eq.s32.totalorder %s45, 0
      %s48 = sadd.s32 %s47, 1
      %s49 = scalar_select %p46, %s47, %s48
      %p52 = pneg %p46
      %p53 = scmp.eq.s32.totalorder %s23, 1
      %p54 = por %p52, %p53
      %p55 = scmp.ne.s32.totalorder %s47, %s50
      %p56 = scmp.eq.s32.totalorder %s23, 0
      %p57 = por %p55, %p56
      %p58 = scmp.ne.s32.totalorder %s47, %s50
      %p59 = scmp.eq.s32.totalorder %s28, 1
      %p60 = por %p58, %p59
      %p61 = scmp.ne.s32.totalorder %s50, %s51
      %p62 = scmp.eq.s32.totalorder %s28, 0
      %p63 = por %p61, %p62
      %p64 = scmp.ne.s32.totalorder %s50, %s51
      %p65 = scmp.eq.s32.totalorder %s29, 1
      %p66 = por %p64, %p65
      %p68 = scmp.ne.s32.totalorder %s51, %s67
      %p69 = scmp.eq.s32.totalorder %s29, 0
      %p70 = por %p68, %p69
      %s71 = ssub.s32 %s30, %s42
      %p72 = scmp.eq.s32.totalorder %s71, 0
      %s74 = sadd.s32 %s73, 1
      %s75 = scalar_select %p72, %s73, %s74
      %p78 = pneg %p72
      %p79 = scmp.eq.s32.totalorder %s23, 1
      %p80 = por %p78, %p79
      %p81 = scmp.ne.s32.totalorder %s73, %s76
      %p82 = scmp.eq.s32.totalorder %s23, 0
      %p83 = por %p81, %p82
      %p84 = scmp.ne.s32.totalorder %s73, %s76
      %p85 = scmp.eq.s32.totalorder %s28, 1
      %p86 = por %p84, %p85
      %p87 = scmp.ne.s32.totalorder %s76, %s77
      %p88 = scmp.eq.s32.totalorder %s28, 0
      %p89 = por %p87, %p88
      %p90 = scmp.ne.s32.totalorder %s76, %s77
      %p91 = scmp.eq.s32.totalorder %s29, 1
      %p92 = por %p90, %p91
      %p94 = scmp.ne.s32.totalorder %s77, %s93
      %p95 = scmp.eq.s32.totalorder %s29, 0
      %p96 = por %p94, %p95
      %s97 = ssub.s32 %s30, %s42
      %p98 = scmp.eq.s32.totalorder %s97, 0
      %s100 = sadd.s32 %s99, 1
      %s101 = scalar_select %p98, %s99, %s100
      %p104 = pneg %p98
      %p105 = scmp.eq.s32.totalorder %s23, 1
      %p106 = por %p104, %p105
      %p107 = scmp.ne.s32.totalorder %s99, %s102
      %p108 = scmp.eq.s32.totalorder %s23, 0
      %p109 = por %p107, %p108
      %p110 = scmp.ne.s32.totalorder %s99, %s102
      %p111 = scmp.eq.s32.totalorder %s28, 1
      %p112 = por %p110, %p111
      %p113 = scmp.ne.s32.totalorder %s102, %s103
      %p114 = scmp.eq.s32.totalorder %s28, 0
      %p115 = por %p113, %p114
      %p116 = scmp.ne.s32.totalorder %s102, %s103
      %p117 = scmp.eq.s32.totalorder %s29, 1
      %p118 = por %p116, %p117
      %p120 = scmp.ne.s32.totalorder %s103, %s119
      %p121 = scmp.eq.s32.totalorder %s29, 0
      %p122 = por %p120, %p121
      %s123 = ssub.s32 %s30, %s42
      %s124 = ssub.s32 %s31, %s38
      %s125 = sor.u32 %s123, %s124
      %p126 = scmp.eq.s32.totalorder %s125, 0
      %s128 = sadd.s32 %s127, 1
      %s129 = scalar_select %p126, %s127, %s128
      %p132 = pneg %p126
      %p133 = scmp.eq.s32.totalorder %s23, 1
      %p134 = por %p132, %p133
      %p135 = scmp.ne.s32.totalorder %s127, %s130
      %p136 = scmp.eq.s32.totalorder %s23, 0
      %p137 = por %p135, %p136
      %p138 = scmp.ne.s32.totalorder %s127, %s130
      %p139 = scmp.eq.s32.totalorder %s28, 1
      %p140 = por %p138, %p139
      %p141 = scmp.ne.s32.totalorder %s130, %s131
      %p142 = scmp.eq.s32.totalorder %s28, 0
      %p143 = por %p141, %p142
      %p144 = scmp.ne.s32.totalorder %s130, %s131
      %p145 = scmp.eq.s32.totalorder %s29, 1
      %p146 = por %p144, %p145
      %p148 = scmp.ne.s32.totalorder %s131, %s147
      %p149 = scmp.eq.s32.totalorder %s29, 0
      %p150 = por %p148, %p149
      %s151 = ssub.s32 %s30, %s42
      %s152 = ssub.s32 %s31, %s38
      %s153 = sor.u32 %s151, %s152
      %p154 = scmp.eq.s32.totalorder %s153, 0
      %s156 = sadd.s32 %s155, 1
      %s157 = scalar_select %p154, %s155, %s156
      %p160 = pneg %p154
      %p161 = scmp.eq.s32.totalorder %s23, 1
      %p162 = por %p160, %p161
      %p163 = scmp.ne.s32.totalorder %s155, %s158
      %p164 = scmp.eq.s32.totalorder %s23, 0
      %p165 = por %p163, %p164
      %p166 = scmp.ne.s32.totalorder %s155, %s158
      %p167 = scmp.eq.s32.totalorder %s28, 1
      %p168 = por %p166, %p167
      %p169 = scmp.ne.s32.totalorder %s158, %s159
      %p170 = scmp.eq.s32.totalorder %s28, 0
      %p171 = por %p169, %p170
      %p172 = scmp.ne.s32.totalorder %s158, %s159
      %p173 = scmp.eq.s32.totalorder %s29, 1
      %p174 = por %p172, %p173
      %p176 = scmp.ne.s32.totalorder %s159, %s175
      %p177 = scmp.eq.s32.totalorder %s29, 0
      %p178 = por %p176, %p177
      %p179 = scmp.le.s32.totalorder 1, %s23
      %p180 = scmp.lt.s32.totalorder %s23, 3
      %p181 = pnand %p179, %p180
      %p182 = pneg %p181
      // Predicated region
      $region9: #{tpu_custom_call.1} parent=5 // pred_check
        _
      $region10: #{tpu_custom_call.1} parent=5 // pred_check_branch
        %184 = sbr.rel (%p181) target = $region12
      $region11: #{tpu_custom_call.1} parent=5 // pred_region
        %s185 = ssub.s32 %s23, 1
      $region12: #{tpu_custom_call.1} parent=5 // pred_fallthru
        _
      %p186 = scmp.lt.s32.totalorder %s23, 2
      // Predicated region
      $region13: #{tpu_custom_call.1} parent=5 // pred_check
        %p187 = pneg %p186
      $region14: #{tpu_custom_call.1} parent=5 // pred_check_branch
        %189 = sbr.rel (%p187) target = $region16
      $region15: #{tpu_custom_call.1} parent=5 // pred_region
        // Predicated region
        $region17: #{tpu_custom_call.1} parent=15 // pred_check
          %p190 = pneg %p57
        $region18: #{tpu_custom_call.1} parent=15 // pred_check_branch
          %192 = sbr.rel (%p190) target = $region20
        $region19: #{tpu_custom_call.1} parent=15 // pred_region
          %s193 = sand.u32 %s47, 1
          %s194 = scalar_lea.sflag [#allocation3], %s193
          %s195 = sand.u32 %s47, 1
          %s196 = smul.addr %s195, 32
          %s197 = scalar_lea.vmem [#allocation2], %s196
          %s198 = smul.u32 8, %s31
          %s200 = ssub.s32 512, 512
          %201 = vsyncadd %s194, %s200
          %s202 = smul.addr %s30, 8
          %s203 = sadd.s32 %s198, %s202
          %s204 = smul.addr %s203, 64
          %s205 = scalar_lea.hbm %s0, %s204
          %s206 = sshll.u32 %s197, 4
          %s207 = int_to_ptr.vmem [resolvable:$true] %s206
          %212 = dma.hbm_to_vmem [thread:$0]  %s205, 512, %s207, %s194, 64, 64, 4
        $region20: #{tpu_custom_call.1} parent=15 // pred_fallthru
          _
        // Predicated region
        $region21: #{tpu_custom_call.1} parent=15 // pred_check
          %p213 = pneg %p83
        $region22: #{tpu_custom_call.1} parent=15 // pred_check_branch
          %215 = sbr.rel (%p213) target = $region24
        $region23: #{tpu_custom_call.1} parent=15 // pred_region
          %s216 = sand.u32 %s23, 1
          %s217 = scalar_lea.sflag [#allocation6], %s216
          %s218 = sand.u32 %s73, 1
          %s219 = smul.addr %s218, 32
          %s220 = scalar_lea.vmem [#allocation5], %s219
          %s222 = ssub.s32 512, 512
          %223 = vsyncadd %s217, %s222
          %s224 = smul.addr %s30, 8
          %s225 = smul.addr %s224, 64
          %s226 = scalar_lea.hbm %s1, %s225
          %s227 = sshll.u32 %s220, 4
          %s228 = int_to_ptr.vmem [resolvable:$true] %s227
          %233 = dma.hbm_to_vmem [thread:$0]  %s226, 512, %s228, %s217, 64, 64, 4
        $region24: #{tpu_custom_call.1} parent=15 // pred_fallthru
          _
        // Predicated region
        $region25: #{tpu_custom_call.1} parent=15 // pred_check
          %p234 = pneg %p109
        $region26: #{tpu_custom_call.1} parent=15 // pred_check_branch
          %236 = sbr.rel (%p234) target = $region28
        $region27: #{tpu_custom_call.1} parent=15 // pred_region
          %s237 = sand.u32 %s23, 1
          %s238 = scalar_lea.sflag [#allocation6], %s237
          %s239 = sand.u32 %s99, 1
          %s240 = smul.addr %s239, 32
          %s241 = scalar_lea.vmem [#allocation7], %s240
          %s243 = ssub.s32 512, 512
          %244 = vsyncadd %s238, %s243
          %s245 = smul.addr %s30, 8
          %s246 = smul.addr %s245, 64
          %s247 = scalar_lea.hbm %s2, %s246
          %s248 = sshll.u32 %s241, 4
          %s249 = int_to_ptr.vmem [resolvable:$true] %s248
          %254 = dma.hbm_to_vmem [thread:$0]  %s247, 512, %s249, %s238, 64, 64, 4
        $region28: #{tpu_custom_call.1} parent=15 // pred_fallthru
          _
      $region16: #{tpu_custom_call.1} parent=5 // pred_fallthru
        _
      %p255 = scmp.le.s32.totalorder 1, %s23
      %p256 = scmp.lt.s32.totalorder %s23, 3
      %p257 = pnand %p255, %p256
      %p258 = pneg %p257
      // Predicated region
      $region29: #{tpu_custom_call.1} parent=5 // pred_check
        _
      $region30: #{tpu_custom_call.1} parent=5 // pred_check_branch
        %260 = sbr.rel (%p257) target = $region32
      $region31: #{tpu_custom_call.1} parent=5 // pred_region
        %s261 = ssub.s32 %s23, 1
        %s262 = sand.u32 %s50, 1
        %s263 = scalar_lea.sflag [#allocation3], %s262
        %s264 = sand.u32 %s50, 1
        %s265 = smul.addr %s264, 32
        %s266 = scalar_lea.vmem [#allocation2], %s265
        // Predicated region
        $region33: #{tpu_custom_call.1} parent=31 // pred_check
          %p267 = pneg %p63
        $region34: #{tpu_custom_call.1} parent=31 // pred_check_branch
          %269 = sbr.rel (%p267) target = $region36
        $region35: #{tpu_custom_call.1} parent=31 // pred_region
          %270 = dma.done %s263, 512
        $region36: #{tpu_custom_call.1} parent=31 // pred_fallthru
          _
        %s271 = sand.u32 %s28, 1
        %s272 = scalar_lea.sflag [#allocation6], %s271
        %s273 = sand.u32 %s76, 1
        %s274 = smul.addr %s273, 32
        %s275 = scalar_lea.vmem [#allocation5], %s274
        // Predicated region
        $region37: #{tpu_custom_call.1} parent=31 // pred_check
          %p276 = pneg %p89
        $region38: #{tpu_custom_call.1} parent=31 // pred_check_branch
          %278 = sbr.rel (%p276) target = $region40
        $region39: #{tpu_custom_call.1} parent=31 // pred_region
          %279 = dma.done %s272, 512
        $region40: #{tpu_custom_call.1} parent=31 // pred_fallthru
          _
        %s280 = sand.u32 %s28, 1
        %s281 = scalar_lea.sflag [#allocation6], %s280
        %s282 = sand.u32 %s102, 1
        %s283 = smul.addr %s282, 32
        %s284 = scalar_lea.vmem [#allocation7], %s283
        // Predicated region
        $region41: #{tpu_custom_call.1} parent=31 // pred_check
          %p285 = pneg %p115
        $region42: #{tpu_custom_call.1} parent=31 // pred_check_branch
          %287 = sbr.rel (%p285) target = $region44
        $region43: #{tpu_custom_call.1} parent=31 // pred_region
          %288 = dma.done %s281, 512
        $region44: #{tpu_custom_call.1} parent=31 // pred_fallthru
          _
        %s289 = sand.u32 %s50, 1
        %s290 = scalar_lea.sflag [#allocation3], %s289
        %s291 = sand.u32 %s50, 1
        %s292 = smul.addr %s291, 32
        %s293 = scalar_lea.vmem [#allocation2], %s292
        %p294 = pneg %p63
        %p295 = pneg %p60
        %s296 = sand.u32 %s28, 1
        %s297 = scalar_lea.sflag [#allocation6], %s296
        %s298 = sand.u32 %s76, 1
        %s299 = smul.addr %s298, 32
        %s300 = scalar_lea.vmem [#allocation5], %s299
        %p301 = pneg %p89
        %p302 = pneg %p86
        %s303 = sand.u32 %s28, 1
        %s304 = scalar_lea.sflag [#allocation6], %s303
        %s305 = sand.u32 %s102, 1
        %s306 = smul.addr %s305, 32
        %s307 = scalar_lea.vmem [#allocation7], %s306
        %p308 = pneg %p115
        %p309 = pneg %p112
        %p310 = pneg %p143
        %p311 = pneg %p140
        %s312 = sand.u32 %s130, 1
        %s313 = scalar_lea.sflag [#allocation4], %s312
        %s314 = sand.u32 %s130, 1
        %s315 = smul.addr %s314, 32
        %s316 = scalar_lea.vmem [#allocation8], %s315
        %p317 = pneg %p171
        %p318 = pneg %p168
        %s319 = sand.u32 %s158, 1
        %s320 = scalar_lea.sflag [#allocation10], %s319
        %s321 = sand.u32 %s158, 1
        %s322 = smul.addr %s321, 32
        %s323 = scalar_lea.vmem [#allocation9], %s322
        %s324 = smul.u32 8, %s33
        %s325 = smul.u32 8, %s33
        %v326 = vld [vmem:[%s266] sm:$0xf]
        %v327 = vld [vmem:[%s266 + $0x4] sm:$0xf]
        %v328 = vld [vmem:[%s266 + $0x8] sm:$0xf]
        %v329 = vld [vmem:[%s266 + $0xc] sm:$0xf]
        %v330 = vld [vmem:[%s266 + $0x10] sm:$0xf]
        %v331 = vld [vmem:[%s266 + $0x14] sm:$0xf]
        %v332 = vld [vmem:[%s266 + $0x18] sm:$0xf]
        %v333 = vld [vmem:[%s266 + $0x1c] sm:$0xf]
        %v334 = vld [vmem:[%s275] sm:$0xf]
        %v335 = vld [vmem:[%s275 + $0x4] sm:$0xf]
        %v336 = vld [vmem:[%s275 + $0x8] sm:$0xf]
        %v337 = vld [vmem:[%s275 + $0xc] sm:$0xf]
        %v338 = vld [vmem:[%s275 + $0x10] sm:$0xf]
        %v339 = vld [vmem:[%s275 + $0x14] sm:$0xf]
        %v340 = vld [vmem:[%s275 + $0x18] sm:$0xf]
        %v341 = vld [vmem:[%s275 + $0x1c] sm:$0xf]
        %v342 = vld [vmem:[%s284] sm:$0xf]
        %v343 = vld [vmem:[%s284 + $0x4] sm:$0xf]
        %v344 = vld [vmem:[%s284 + $0x8] sm:$0xf]
        %v345 = vld [vmem:[%s284 + $0xc] sm:$0xf]
        %v346 = vld [vmem:[%s284 + $0x10] sm:$0xf]
        %v347 = vld [vmem:[%s284 + $0x14] sm:$0xf]
        %v348 = vld [vmem:[%s284 + $0x18] sm:$0xf]
        %v349 = vld [vmem:[%s284 + $0x1c] sm:$0xf]
        %v350 = vcombine.low %v326, %v328
        %v352 = vunpack.c.l.s4 1983009808
        %v353 = vunpack.c.0.s8 %v352
        %v354 = vlaneseq
        %v355 = vshrl.u32 %v354, 7
        %v356 = vsub.s32 %v353, %v355
        %v357 = vrot.slane %v350, %v356
        %v358 = vcombine.low %v327, %v329
        %v360 = vunpack.c.l.s4 1983009808
        %v361 = vunpack.c.0.s8 %v360
        %v362 = vlaneseq
        %v363 = vshrl.u32 %v362, 7
        %v364 = vsub.s32 %v361, %v363
        %v365 = vrot.slane %v358, %v364
        %v366 = vcombine.low %v330, %v332
        %v368 = vunpack.c.l.s4 1983009808
        %v369 = vunpack.c.0.s8 %v368
        %v370 = vlaneseq
        %v371 = vshrl.u32 %v370, 7
        %v372 = vsub.s32 %v369, %v371
        %v373 = vrot.slane %v366, %v372
        %v374 = vcombine.low %v331, %v333
        %v376 = vunpack.c.l.s4 1983009808
        %v377 = vunpack.c.0.s8 %v376
        %v378 = vlaneseq
        %v379 = vshrl.u32 %v378, 7
        %v380 = vsub.s32 %v377, %v379
        %v381 = vrot.slane %v374, %v380
        %v382 = vcombine.low %v357, %v365
        %v383 = vcombine.high %v357, %v365
        %v385 = vunpack.c.l.s4 1934713408
        %v386 = vunpack.c.0.s8 %v385
        %v387 = vlaneseq
        %v388 = vshrl.u32 %v387, 7
        %v389 = vsub.s32 %v386, %v388
        %v390 = vrot.slane %v382, %v389
        %v392 = vunpack.c.l.s4 1934713408
        %v393 = vunpack.c.0.s8 %v392
        %v394 = vlaneseq
        %v395 = vshrl.u32 %v394, 7
        %v396 = vsub.s32 %v393, %v395
        %v397 = vrot.slane %v383, %v396
        %v398 = vcombine.low %v373, %v381
        %v399 = vcombine.high %v373, %v381
        %v401 = vunpack.c.l.s4 1934713408
        %v402 = vunpack.c.0.s8 %v401
        %v403 = vlaneseq
        %v404 = vshrl.u32 %v403, 7
        %v405 = vsub.s32 %v402, %v404
        %v406 = vrot.slane %v398, %v405
        %v408 = vunpack.c.l.s4 1934713408
        %v409 = vunpack.c.0.s8 %v408
        %v410 = vlaneseq
        %v411 = vshrl.u32 %v410, 7
        %v412 = vsub.s32 %v409, %v411
        %v413 = vrot.slane %v399, %v412
        %v414 = vcombine.low %v390, %v406
        %v415 = vcombine.high %v390, %v406
        %v416 = vcombine.low %v397, %v413
        %v417 = vcombine.high %v397, %v413
        %418 = vxpose.xlu0.b32.start [1/16] %v334, 128
        %419 = vxpose.xlu0.b32.cont [2/16] 0.0, 128
        %420 = vxpose.xlu0.b32.cont [3/16] 0.0, 128
        %421 = vxpose.xlu0.b32.cont [4/16] 0.0, 128
        %422 = vxpose.xlu0.b32.cont [5/16] 0.0, 128
        %423 = vxpose.xlu0.b32.cont [6/16] 0.0, 128
        %424 = vxpose.xlu0.b32.cont [7/16] 0.0, 128
        %425 = vxpose.xlu0.b32.cont [8/16] 0.0, 128
        %426 = vxpose.xlu0.b32.cont [9/16] 0.0, 128
        %427 = vxpose.xlu0.b32.cont [10/16] 0.0, 128
        %428 = vxpose.xlu0.b32.cont [11/16] 0.0, 128
        %429 = vxpose.xlu0.b32.cont [12/16] 0.0, 128
        %430 = vxpose.xlu0.b32.cont [13/16] 0.0, 128
        %431 = vxpose.xlu0.b32.cont [14/16] 0.0, 128
        %432 = vxpose.xlu0.b32.cont [15/16] 0.0, 128
        %433 = vxpose.xlu0.b32.end [16/16] 0.0, 128
        %v434 = vpop.trf.xlu0
        %v435 = vpop.trf.xlu0
        %v436 = vpop.trf.xlu0
        %v437 = vpop.trf.xlu0
        %v438 = vpop.trf.xlu0
        %v439 = vpop.trf.xlu0
        %v440 = vpop.trf.xlu0
        %v441 = vpop.trf.xlu0
        %v442 = vpop.trf.xlu0
        %v443 = vpop.trf.xlu0
        %v444 = vpop.trf.xlu0
        %v445 = vpop.trf.xlu0
        %v446 = vpop.trf.xlu0
        %v447 = vpop.trf.xlu0
        %v448 = vpop.trf.xlu0
        %v449 = vpop.trf.xlu0
        %450 = vxpose.xlu0.b32.start [1/16] %v335, 128
        %451 = vxpose.xlu0.b32.cont [2/16] 0.0, 128
        %452 = vxpose.xlu0.b32.cont [3/16] 0.0, 128
        %453 = vxpose.xlu0.b32.cont [4/16] 0.0, 128
        %454 = vxpose.xlu0.b32.cont [5/16] 0.0, 128
        %455 = vxpose.xlu0.b32.cont [6/16] 0.0, 128
        %456 = vxpose.xlu0.b32.cont [7/16] 0.0, 128
        %457 = vxpose.xlu0.b32.cont [8/16] 0.0, 128
        %458 = vxpose.xlu0.b32.cont [9/16] 0.0, 128
        %459 = vxpose.xlu0.b32.cont [10/16] 0.0, 128
        %460 = vxpose.xlu0.b32.cont [11/16] 0.0, 128
        %461 = vxpose.xlu0.b32.cont [12/16] 0.0, 128
        %462 = vxpose.xlu0.b32.cont [13/16] 0.0, 128
        %463 = vxpose.xlu0.b32.cont [14/16] 0.0, 128
        %464 = vxpose.xlu0.b32.cont [15/16] 0.0, 128
        %465 = vxpose.xlu0.b32.end [16/16] 0.0, 128
        %v466 = vpop.trf.xlu0
        %v467 = vpop.trf.xlu0
        %v468 = vpop.trf.xlu0
        %v469 = vpop.trf.xlu0
        %v470 = vpop.trf.xlu0
        %v471 = vpop.trf.xlu0
        %v472 = vpop.trf.xlu0
        %v473 = vpop.trf.xlu0
        %v474 = vpop.trf.xlu0
        %v475 = vpop.trf.xlu0
        %v476 = vpop.trf.xlu0
        %v477 = vpop.trf.xlu0
        %v478 = vpop.trf.xlu0
        %v479 = vpop.trf.xlu0
        %v480 = vpop.trf.xlu0
        %v481 = vpop.trf.xlu0
        %482 = vxpose.xlu0.b32.start [1/16] %v336, 128
        %483 = vxpose.xlu0.b32.cont [2/16] 0.0, 128
        %484 = vxpose.xlu0.b32.cont [3/16] 0.0, 128
        %485 = vxpose.xlu0.b32.cont [4/16] 0.0, 128
        %486 = vxpose.xlu0.b32.cont [5/16] 0.0, 128
        %487 = vxpose.xlu0.b32.cont [6/16] 0.0, 128
        %488 = vxpose.xlu0.b32.cont [7/16] 0.0, 128
        %489 = vxpose.xlu0.b32.cont [8/16] 0.0, 128
        %490 = vxpose.xlu0.b32.cont [9/16] 0.0, 128
        %491 = vxpose.xlu0.b32.cont [10/16] 0.0, 128
        %492 = vxpose.xlu0.b32.cont [11/16] 0.0, 128
        %493 = vxpose.xlu0.b32.cont [12/16] 0.0, 128
        %494 = vxpose.xlu0.b32.cont [13/16] 0.0, 128
        %495 = vxpose.xlu0.b32.cont [14/16] 0.0, 128
        %496 = vxpose.xlu0.b32.cont [15/16] 0.0, 128
        %497 = vxpose.xlu0.b32.end [16/16] 0.0, 128
        %v498 = vpop.trf.xlu0
        %v499 = vpop.trf.xlu0
        %v500 = vpop.trf.xlu0
        %v501 = vpop.trf.xlu0
        %v502 = vpop.trf.xlu0
        %v503 = vpop.trf.xlu0
        %v504 = vpop.trf.xlu0
        %v505 = vpop.trf.xlu0
        %v506 = vpop.trf.xlu0
        %v507 = vpop.trf.xlu0
        %v508 = vpop.trf.xlu0
        %v509 = vpop.trf.xlu0
        %v510 = vpop.trf.xlu0
        %v511 = vpop.trf.xlu0
        %v512 = vpop.trf.xlu0
        %v513 = vpop.trf.xlu0
        %514 = vxpose.xlu0.b32.start [1/16] %v337, 128
        %515 = vxpose.xlu0.b32.cont [2/16] 0.0, 128
        %516 = vxpose.xlu0.b32.cont [3/16] 0.0, 128
        %517 = vxpose.xlu0.b32.cont [4/16] 0.0, 128
        %518 = vxpose.xlu0.b32.cont [5/16] 0.0, 128
        %519 = vxpose.xlu0.b32.cont [6/16] 0.0, 128
        %520 = vxpose.xlu0.b32.cont [7/16] 0.0, 128
        %521 = vxpose.xlu0.b32.cont [8/16] 0.0, 128
        %522 = vxpose.xlu0.b32.cont [9/16] 0.0, 128
        %523 = vxpose.xlu0.b32.cont [10/16] 0.0, 128
        %524 = vxpose.xlu0.b32.cont [11/16] 0.0, 128
        %525 = vxpose.xlu0.b32.cont [12/16] 0.0, 128
        %526 = vxpose.xlu0.b32.cont [13/16] 0.0, 128
        %527 = vxpose.xlu0.b32.cont [14/16] 0.0, 128
        %528 = vxpose.xlu0.b32.cont [15/16] 0.0, 128
        %529 = vxpose.xlu0.b32.end [16/16] 0.0, 128
        %v530 = vpop.trf.xlu0
        %v531 = vpop.trf.xlu0
        %v532 = vpop.trf.xlu0
        %v533 = vpop.trf.xlu0
        %v534 = vpop.trf.xlu0
        %v535 = vpop.trf.xlu0
        %v536 = vpop.trf.xlu0
        %v537 = vpop.trf.xlu0
        %v538 = vpop.trf.xlu0
        %v539 = vpop.trf.xlu0
        %v540 = vpop.trf.xlu0
        %v541 = vpop.trf.xlu0
        %v542 = vpop.trf.xlu0
        %v543 = vpop.trf.xlu0
        %v544 = vpop.trf.xlu0
        %v545 = vpop.trf.xlu0
        %546 = vxpose.xlu0.b32.start [1/16] %v338, 128
        %547 = vxpose.xlu0.b32.cont [2/16] 0.0, 128
        %548 = vxpose.xlu0.b32.cont [3/16] 0.0, 128
        %549 = vxpose.xlu0.b32.cont [4/16] 0.0, 128
        %550 = vxpose.xlu0.b32.cont [5/16] 0.0, 128
        %551 = vxpose.xlu0.b32.cont [6/16] 0.0, 128
        %552 = vxpose.xlu0.b32.cont [7/16] 0.0, 128
        %553 = vxpose.xlu0.b32.cont [8/16] 0.0, 128
        %554 = vxpose.xlu0.b32.cont [9/16] 0.0, 128
        %555 = vxpose.xlu0.b32.cont [10/16] 0.0, 128
        %556 = vxpose.xlu0.b32.cont [11/16] 0.0, 128
        %557 = vxpose.xlu0.b32.cont [12/16] 0.0, 128
        %558 = vxpose.xlu0.b32.cont [13/16] 0.0, 128
        %559 = vxpose.xlu0.b32.cont [14/16] 0.0, 128
        %560 = vxpose.xlu0.b32.cont [15/16] 0.0, 128
        %561 = vxpose.xlu0.b32.end [16/16] 0.0, 128
        %v562 = vpop.trf.xlu0
        %v563 = vpop.trf.xlu0
        %v564 = vpop.trf.xlu0
        %v565 = vpop.trf.xlu0
        %v566 = vpop.trf.xlu0
        %v567 = vpop.trf.xlu0
        %v568 = vpop.trf.xlu0
        %v569 = vpop.trf.xlu0
        %v570 = vpop.trf.xlu0
        %v571 = vpop.trf.xlu0
        %v572 = vpop.trf.xlu0
        %v573 = vpop.trf.xlu0
        %v574 = vpop.trf.xlu0
        %v575 = vpop.trf.xlu0
        %v576 = vpop.trf.xlu0
        %v577 = vpop.trf.xlu0
        %578 = vxpose.xlu0.b32.start [1/16] %v339, 128
        %579 = vxpose.xlu0.b32.cont [2/16] 0.0, 128
        %580 = vxpose.xlu0.b32.cont [3/16] 0.0, 128
        %581 = vxpose.xlu0.b32.cont [4/16] 0.0, 128
        %582 = vxpose.xlu0.b32.cont [5/16] 0.0, 128
        %583 = vxpose.xlu0.b32.cont [6/16] 0.0, 128
        %584 = vxpose.xlu0.b32.cont [7/16] 0.0, 128
        %585 = vxpose.xlu0.b32.cont [8/16] 0.0, 128
        %586 = vxpose.xlu0.b32.cont [9/16] 0.0, 128
        %587 = vxpose.xlu0.b32.cont [10/16] 0.0, 128
        %588 = vxpose.xlu0.b32.cont [11/16] 0.0, 128
        %589 = vxpose.xlu0.b32.cont [12/16] 0.0, 128
        %590 = vxpose.xlu0.b32.cont [13/16] 0.0, 128
        %591 = vxpose.xlu0.b32.cont [14/16] 0.0, 128
        %592 = vxpose.xlu0.b32.cont [15/16] 0.0, 128
        %593 = vxpose.xlu0.b32.end [16/16] 0.0, 128
        %v594 = vpop.trf.xlu0
        %v595 = vpop.trf.xlu0
        %v596 = vpop.trf.xlu0
        %v597 = vpop.trf.xlu0
        %v598 = vpop.trf.xlu0
        %v599 = vpop.trf.xlu0
        %v600 = vpop.trf.xlu0
        %v601 = vpop.trf.xlu0
        %v602 = vpop.trf.xlu0
        %v603 = vpop.trf.xlu0
        %v604 = vpop.trf.xlu0
        %v605 = vpop.trf.xlu0
        %v606 = vpop.trf.xlu0
        %v607 = vpop.trf.xlu0
        %v608 = vpop.trf.xlu0
        %v609 = vpop.trf.xlu0
        %610 = vxpose.xlu0.b32.start [1/16] %v340, 128
        %611 = vxpose.xlu0.b32.cont [2/16] 0.0, 128
        %612 = vxpose.xlu0.b32.cont [3/16] 0.0, 128
        %613 = vxpose.xlu0.b32.cont [4/16] 0.0, 128
        %614 = vxpose.xlu0.b32.cont [5/16] 0.0, 128
        %615 = vxpose.xlu0.b32.cont [6/16] 0.0, 128
        %616 = vxpose.xlu0.b32.cont [7/16] 0.0, 128
        %617 = vxpose.xlu0.b32.cont [8/16] 0.0, 128
        %618 = vxpose.xlu0.b32.cont [9/16] 0.0, 128
        %619 = vxpose.xlu0.b32.cont [10/16] 0.0, 128
        %620 = vxpose.xlu0.b32.cont [11/16] 0.0, 128
        %621 = vxpose.xlu0.b32.cont [12/16] 0.0, 128
        %622 = vxpose.xlu0.b32.cont [13/16] 0.0, 128
        %623 = vxpose.xlu0.b32.cont [14/16] 0.0, 128
        %624 = vxpose.xlu0.b32.cont [15/16] 0.0, 128
        %625 = vxpose.xlu0.b32.end [16/16] 0.0, 128
        %v626 = vpop.trf.xlu0
        %v627 = vpop.trf.xlu0
        %v628 = vpop.trf.xlu0
        %v629 = vpop.trf.xlu0
        %v630 = vpop.trf.xlu0
        %v631 = vpop.trf.xlu0
        %v632 = vpop.trf.xlu0
        %v633 = vpop.trf.xlu0
        %v634 = vpop.trf.xlu0
        %v635 = vpop.trf.xlu0
        %v636 = vpop.trf.xlu0
        %v637 = vpop.trf.xlu0
        %v638 = vpop.trf.xlu0
        %v639 = vpop.trf.xlu0
        %v640 = vpop.trf.xlu0
        %v641 = vpop.trf.xlu0
        %642 = vxpose.xlu0.b32.start [1/16] %v341, 128
        %643 = vxpose.xlu0.b32.cont [2/16] 0.0, 128
        %644 = vxpose.xlu0.b32.cont [3/16] 0.0, 128
        %645 = vxpose.xlu0.b32.cont [4/16] 0.0, 128
        %646 = vxpose.xlu0.b32.cont [5/16] 0.0, 128
        %647 = vxpose.xlu0.b32.cont [6/16] 0.0, 128
        %648 = vxpose.xlu0.b32.cont [7/16] 0.0, 128
        %649 = vxpose.xlu0.b32.cont [8/16] 0.0, 128
        %650 = vxpose.xlu0.b32.cont [9/16] 0.0, 128
        %651 = vxpose.xlu0.b32.cont [10/16] 0.0, 128
        %652 = vxpose.xlu0.b32.cont [11/16] 0.0, 128
        %653 = vxpose.xlu0.b32.cont [12/16] 0.0, 128
        %654 = vxpose.xlu0.b32.cont [13/16] 0.0, 128
        %655 = vxpose.xlu0.b32.cont [14/16] 0.0, 128
        %656 = vxpose.xlu0.b32.cont [15/16] 0.0, 128
        %657 = vxpose.xlu0.b32.end [16/16] 0.0, 128
        %v658 = vpop.trf.xlu0
        %v659 = vpop.trf.xlu0
        %v660 = vpop.trf.xlu0
        %v661 = vpop.trf.xlu0
        %v662 = vpop.trf.xlu0
        %v663 = vpop.trf.xlu0
        %v664 = vpop.trf.xlu0
        %v665 = vpop.trf.xlu0
        %v666 = vpop.trf.xlu0
        %v667 = vpop.trf.xlu0
        %v668 = vpop.trf.xlu0
        %v669 = vpop.trf.xlu0
        %v670 = vpop.trf.xlu0
        %v671 = vpop.trf.xlu0
        %v672 = vpop.trf.xlu0
        %v673 = vpop.trf.xlu0
        %v674 = vcombine.low %v434, %v498
        %v675 = vcombine.high %v434, %v498
        %v677 = vunpack.c.l.s4 1983009808
        %v678 = vunpack.c.0.s8 %v677
        %v679 = vlaneseq
        %v680 = vshrl.u32 %v679, 7
        %v681 = vsub.s32 %v678, %v680
        %v682 = vrot.slane %v674, %v681
        %v684 = vunpack.c.l.s4 1983009808
        %v685 = vunpack.c.0.s8 %v684
        %v686 = vlaneseq
        %v687 = vshrl.u32 %v686, 7
        %v688 = vsub.s32 %v685, %v687
        %v689 = vrot.slane %v675, %v688
        %v690 = vcombine.low %v466, %v530
        %v691 = vcombine.high %v466, %v530
        %v693 = vunpack.c.l.s4 1983009808
        %v694 = vunpack.c.0.s8 %v693
        %v695 = vlaneseq
        %v696 = vshrl.u32 %v695, 7
        %v697 = vsub.s32 %v694, %v696
        %v698 = vrot.slane %v690, %v697
        %v700 = vunpack.c.l.s4 1983009808
        %v701 = vunpack.c.0.s8 %v700
        %v702 = vlaneseq
        %v703 = vshrl.u32 %v702, 7
        %v704 = vsub.s32 %v701, %v703
        %v705 = vrot.slane %v691, %v704
        %v706 = vcombine.low %v562, %v626
        %v707 = vcombine.high %v562, %v626
        %v709 = vunpack.c.l.s4 1983009808
        %v710 = vunpack.c.0.s8 %v709
        %v711 = vlaneseq
        %v712 = vshrl.u32 %v711, 7
        %v713 = vsub.s32 %v710, %v712
        %v714 = vrot.slane %v706, %v713
        %v716 = vunpack.c.l.s4 1983009808
        %v717 = vunpack.c.0.s8 %v716
        %v718 = vlaneseq
        %v719 = vshrl.u32 %v718, 7
        %v720 = vsub.s32 %v717, %v719
        %v721 = vrot.slane %v707, %v720
        %v722 = vcombine.low %v594, %v658
        %v723 = vcombine.high %v594, %v658
        %v725 = vunpack.c.l.s4 1983009808
        %v726 = vunpack.c.0.s8 %v725
        %v727 = vlaneseq
        %v728 = vshrl.u32 %v727, 7
        %v729 = vsub.s32 %v726, %v728
        %v730 = vrot.slane %v722, %v729
        %v732 = vunpack.c.l.s4 1983009808
        %v733 = vunpack.c.0.s8 %v732
        %v734 = vlaneseq
        %v735 = vshrl.u32 %v734, 7
        %v736 = vsub.s32 %v733, %v735
        %v737 = vrot.slane %v723, %v736
        %v738 = vcombine.low %v682, %v698
        %v739 = vcombine.high %v682, %v698
        %v741 = vunpack.c.l.s4 1934713408
        %v742 = vunpack.c.0.s8 %v741
        %v743 = vlaneseq
        %v744 = vshrl.u32 %v743, 7
        %v745 = vsub.s32 %v742, %v744
        %v746 = vrot.slane %v738, %v745
        %v748 = vunpack.c.l.s4 1934713408
        %v749 = vunpack.c.0.s8 %v748
        %v750 = vlaneseq
        %v751 = vshrl.u32 %v750, 7
        %v752 = vsub.s32 %v749, %v751
        %v753 = vrot.slane %v739, %v752
        %v754 = vcombine.low %v689, %v705
        %v755 = vcombine.high %v689, %v705
        %v757 = vunpack.c.l.s4 1934713408
        %v758 = vunpack.c.0.s8 %v757
        %v759 = vlaneseq
        %v760 = vshrl.u32 %v759, 7
        %v761 = vsub.s32 %v758, %v760
        %v762 = vrot.slane %v754, %v761
        %v764 = vunpack.c.l.s4 1934713408
        %v765 = vunpack.c.0.s8 %v764
        %v766 = vlaneseq
        %v767 = vshrl.u32 %v766, 7
        %v768 = vsub.s32 %v765, %v767
        %v769 = vrot.slane %v755, %v768
        %v770 = vcombine.low %v714, %v730
        %v771 = vcombine.high %v714, %v730
        %v773 = vunpack.c.l.s4 1934713408
        %v774 = vunpack.c.0.s8 %v773
        %v775 = vlaneseq
        %v776 = vshrl.u32 %v775, 7
        %v777 = vsub.s32 %v774, %v776
        %v778 = vrot.slane %v770, %v777
        %v780 = vunpack.c.l.s4 1934713408
        %v781 = vunpack.c.0.s8 %v780
        %v782 = vlaneseq
        %v783 = vshrl.u32 %v782, 7
        %v784 = vsub.s32 %v781, %v783
        %v785 = vrot.slane %v771, %v784
        %v786 = vcombine.low %v721, %v737
        %v787 = vcombine.high %v721, %v737
        %v789 = vunpack.c.l.s4 1934713408
        %v790 = vunpack.c.0.s8 %v789
        %v791 = vlaneseq
        %v792 = vshrl.u32 %v791, 7
        %v793 = vsub.s32 %v790, %v792
        %v794 = vrot.slane %v786, %v793
        %v796 = vunpack.c.l.s4 1934713408
        %v797 = vunpack.c.0.s8 %v796
        %v798 = vlaneseq
        %v799 = vshrl.u32 %v798, 7
        %v800 = vsub.s32 %v797, %v799
        %v801 = vrot.slane %v787, %v800
        %v802 = vcombine.low %v746, %v778
        %v803 = vcombine.high %v746, %v778
        %v804 = vcombine.low %v753, %v785
        %v805 = vcombine.high %v753, %v785
        %v806 = vcombine.low %v762, %v794
        %v807 = vcombine.high %v762, %v794
        %v808 = vcombine.low %v769, %v801
        %v809 = vcombine.high %v769, %v801
        %v810 = vcombine.low %v435, %v499
        %v811 = vcombine.high %v435, %v499
        %v813 = vunpack.c.l.s4 1983009808
        %v814 = vunpack.c.0.s8 %v813
        %v815 = vlaneseq
        %v816 = vshrl.u32 %v815, 7
        %v817 = vsub.s32 %v814, %v816
        %v818 = vrot.slane %v810, %v817
        %v820 = vunpack.c.l.s4 1983009808
        %v821 = vunpack.c.0.s8 %v820
        %v822 = vlaneseq
        %v823 = vshrl.u32 %v822, 7
        %v824 = vsub.s32 %v821, %v823
        %v825 = vrot.slane %v811, %v824
        %v826 = vcombine.low %v467, %v531
        %v827 = vcombine.high %v467, %v531
        %v829 = vunpack.c.l.s4 1983009808
        %v830 = vunpack.c.0.s8 %v829
        %v831 = vlaneseq
        %v832 = vshrl.u32 %v831, 7
        %v833 = vsub.s32 %v830, %v832
        %v834 = vrot.slane %v826, %v833
        %v836 = vunpack.c.l.s4 1983009808
        %v837 = vunpack.c.0.s8 %v836
        %v838 = vlaneseq
        %v839 = vshrl.u32 %v838, 7
        %v840 = vsub.s32 %v837, %v839
        %v841 = vrot.slane %v827, %v840
        %v842 = vcombine.low %v563, %v627
        %v843 = vcombine.high %v563, %v627
        %v845 = vunpack.c.l.s4 1983009808
        %v846 = vunpack.c.0.s8 %v845
        %v847 = vlaneseq
        %v848 = vshrl.u32 %v847, 7
        %v849 = vsub.s32 %v846, %v848
        %v850 = vrot.slane %v842, %v849
        %v852 = vunpack.c.l.s4 1983009808
        %v853 = vunpack.c.0.s8 %v852
        %v854 = vlaneseq
        %v855 = vshrl.u32 %v854, 7
        %v856 = vsub.s32 %v853, %v855
        %v857 = vrot.slane %v843, %v856
        %v858 = vcombine.low %v595, %v659
        %v859 = vcombine.high %v595, %v659
        %v861 = vunpack.c.l.s4 1983009808
        %v862 = vunpack.c.0.s8 %v861
        %v863 = vlaneseq
        %v864 = vshrl.u32 %v863, 7
        %v865 = vsub.s32 %v862, %v864
        %v866 = vrot.slane %v858, %v865
        %v868 = vunpack.c.l.s4 1983009808
        %v869 = vunpack.c.0.s8 %v868
        %v870 = vlaneseq
        %v871 = vshrl.u32 %v870, 7
        %v872 = vsub.s32 %v869, %v871
        %v873 = vrot.slane %v859, %v872
        %v874 = vcombine.low %v818, %v834
        %v875 = vcombine.high %v818, %v834
        %v877 = vunpack.c.l.s4 1934713408
        %v878 = vunpack.c.0.s8 %v877
        %v879 = vlaneseq
        %v880 = vshrl.u32 %v879, 7
        %v881 = vsub.s32 %v878, %v880
        %v882 = vrot.slane %v874, %v881
        %v884 = vunpack.c.l.s4 1934713408
        %v885 = vunpack.c.0.s8 %v884
        %v886 = vlaneseq
        %v887 = vshrl.u32 %v886, 7
        %v888 = vsub.s32 %v885, %v887
        %v889 = vrot.slane %v875, %v888
        %v890 = vcombine.low %v825, %v841
        %v891 = vcombine.high %v825, %v841
        %v893 = vunpack.c.l.s4 1934713408
        %v894 = vunpack.c.0.s8 %v893
        %v895 = vlaneseq
        %v896 = vshrl.u32 %v895, 7
        %v897 = vsub.s32 %v894, %v896
        %v898 = vrot.slane %v890, %v897
        %v900 = vunpack.c.l.s4 1934713408
        %v901 = vunpack.c.0.s8 %v900
        %v902 = vlaneseq
        %v903 = vshrl.u32 %v902, 7
        %v904 = vsub.s32 %v901, %v903
        %v905 = vrot.slane %v891, %v904
        %v906 = vcombine.low %v850, %v866
        %v907 = vcombine.high %v850, %v866
        %v909 = vunpack.c.l.s4 1934713408
        %v910 = vunpack.c.0.s8 %v909
        %v911 = vlaneseq
        %v912 = vshrl.u32 %v911, 7
        %v913 = vsub.s32 %v910, %v912
        %v914 = vrot.slane %v906, %v913
        %v916 = vunpack.c.l.s4 1934713408
        %v917 = vunpack.c.0.s8 %v916
        %v918 = vlaneseq
        %v919 = vshrl.u32 %v918, 7
        %v920 = vsub.s32 %v917, %v919
        %v921 = vrot.slane %v907, %v920
        %v922 = vcombine.low %v857, %v873
        %v923 = vcombine.high %v857, %v873
        %v925 = vunpack.c.l.s4 1934713408
        %v926 = vunpack.c.0.s8 %v925
        %v927 = vlaneseq
        %v928 = vshrl.u32 %v927, 7
        %v929 = vsub.s32 %v926, %v928
        %v930 = vrot.slane %v922, %v929
        %v932 = vunpack.c.l.s4 1934713408
        %v933 = vunpack.c.0.s8 %v932
        %v934 = vlaneseq
        %v935 = vshrl.u32 %v934, 7
        %v936 = vsub.s32 %v933, %v935
        %v937 = vrot.slane %v923, %v936
        %v938 = vcombine.low %v882, %v914
        %v939 = vcombine.high %v882, %v914
        %v940 = vcombine.low %v889, %v921
        %v941 = vcombine.high %v889, %v921
        %v942 = vcombine.low %v898, %v930
        %v943 = vcombine.high %v898, %v930
        %v944 = vcombine.low %v905, %v937
        %v945 = vcombine.high %v905, %v937
        %v946 = vcombine.low %v436, %v500
        %v947 = vcombine.high %v436, %v500
        %v949 = vunpack.c.l.s4 1983009808
        %v950 = vunpack.c.0.s8 %v949
        %v951 = vlaneseq
        %v952 = vshrl.u32 %v951, 7
        %v953 = vsub.s32 %v950, %v952
        %v954 = vrot.slane %v946, %v953
        %v956 = vunpack.c.l.s4 1983009808
        %v957 = vunpack.c.0.s8 %v956
        %v958 = vlaneseq
        %v959 = vshrl.u32 %v958, 7
        %v960 = vsub.s32 %v957, %v959
        %v961 = vrot.slane %v947, %v960
        %v962 = vcombine.low %v468, %v532
        %v963 = vcombine.high %v468, %v532
        %v965 = vunpack.c.l.s4 1983009808
        %v966 = vunpack.c.0.s8 %v965
        %v967 = vlaneseq
        %v968 = vshrl.u32 %v967, 7
        %v969 = vsub.s32 %v966, %v968
        %v970 = vrot.slane %v962, %v969
        %v972 = vunpack.c.l.s4 1983009808
        %v973 = vunpack.c.0.s8 %v972
        %v974 = vlaneseq
        %v975 = vshrl.u32 %v974, 7
        %v976 = vsub.s32 %v973, %v975
        %v977 = vrot.slane %v963, %v976
        %v978 = vcombine.low %v564, %v628
        %v979 = vcombine.high %v564, %v628
        %v981 = vunpack.c.l.s4 1983009808
        %v982 = vunpack.c.0.s8 %v981
        %v983 = vlaneseq
        %v984 = vshrl.u32 %v983, 7
        %v985 = vsub.s32 %v982, %v984
        %v986 = vrot.slane %v978, %v985
        %v988 = vunpack.c.l.s4 1983009808
        %v989 = vunpack.c.0.s8 %v988
        %v990 = vlaneseq
        %v991 = vshrl.u32 %v990, 7
        %v992 = vsub.s32 %v989, %v991
        %v993 = vrot.slane %v979, %v992
        %v994 = vcombine.low %v596, %v660
        %v995 = vcombine.high %v596, %v660
        %v997 = vunpack.c.l.s4 1983009808
        %v998 = vunpack.c.0.s8 %v997
        %v999 = vlaneseq
        %v1000 = vshrl.u32 %v999, 7
        %v1001 = vsub.s32 %v998, %v1000
        %v1002 = vrot.slane %v994, %v1001
        %v1004 = vunpack.c.l.s4 1983009808
        %v1005 = vunpack.c.0.s8 %v1004
        %v1006 = vlaneseq
        %v1007 = vshrl.u32 %v1006, 7
        %v1008 = vsub.s32 %v1005, %v1007
        %v1009 = vrot.slane %v995, %v1008
        %v1010 = vcombine.low %v954, %v970
        %v1011 = vcombine.high %v954, %v970
        %v1013 = vunpack.c.l.s4 1934713408
        %v1014 = vunpack.c.0.s8 %v1013
        %v1015 = vlaneseq
        %v1016 = vshrl.u32 %v1015, 7
        %v1017 = vsub.s32 %v1014, %v1016
        %v1018 = vrot.slane %v1010, %v1017
        %v1020 = vunpack.c.l.s4 1934713408
        %v1021 = vunpack.c.0.s8 %v1020
        %v1022 = vlaneseq
        %v1023 = vshrl.u32 %v1022, 7
        %v1024 = vsub.s32 %v1021, %v1023
        %v1025 = vrot.slane %v1011, %v1024
        %v1026 = vcombine.low %v961, %v977
        %v1027 = vcombine.high %v961, %v977
        %v1029 = vunpack.c.l.s4 1934713408
        %v1030 = vunpack.c.0.s8 %v1029
        %v1031 = vlaneseq
        %v1032 = vshrl.u32 %v1031, 7
        %v1033 = vsub.s32 %v1030, %v1032
        %v1034 = vrot.slane %v1026, %v1033
        %v1036 = vunpack.c.l.s4 1934713408
        %v1037 = vunpack.c.0.s8 %v1036
        %v1038 = vlaneseq
        %v1039 = vshrl.u32 %v1038, 7
        %v1040 = vsub.s32 %v1037, %v1039
        %v1041 = vrot.slane %v1027, %v1040
        %v1042 = vcombine.low %v986, %v1002
        %v1043 = vcombine.high %v986, %v1002
        %v1045 = vunpack.c.l.s4 1934713408
        %v1046 = vunpack.c.0.s8 %v1045
        %v1047 = vlaneseq
        %v1048 = vshrl.u32 %v1047, 7
        %v1049 = vsub.s32 %v1046, %v1048
        %v1050 = vrot.slane %v1042, %v1049
        %v1052 = vunpack.c.l.s4 1934713408
        %v1053 = vunpack.c.0.s8 %v1052
        %v1054 = vlaneseq
        %v1055 = vshrl.u32 %v1054, 7
        %v1056 = vsub.s32 %v1053, %v1055
        %v1057 = vrot.slane %v1043, %v1056
        %v1058 = vcombine.low %v993, %v1009
        %v1059 = vcombine.high %v993, %v1009
        %v1061 = vunpack.c.l.s4 1934713408
        %v1062 = vunpack.c.0.s8 %v1061
        %v1063 = vlaneseq
        %v1064 = vshrl.u32 %v1063, 7
        %v1065 = vsub.s32 %v1062, %v1064
        %v1066 = vrot.slane %v1058, %v1065
        %v1068 = vunpack.c.l.s4 1934713408
        %v1069 = vunpack.c.0.s8 %v1068
        %v1070 = vlaneseq
        %v1071 = vshrl.u32 %v1070, 7
        %v1072 = vsub.s32 %v1069, %v1071
        %v1073 = vrot.slane %v1059, %v1072
        %v1074 = vcombine.low %v1018, %v1050
        %v1075 = vcombine.high %v1018, %v1050
        %v1076 = vcombine.low %v1025, %v1057
        %v1077 = vcombine.high %v1025, %v1057
        %v1078 = vcombine.low %v1034, %v1066
        %v1079 = vcombine.high %v1034, %v1066
        %v1080 = vcombine.low %v1041, %v1073
        %v1081 = vcombine.high %v1041, %v1073
        %v1082 = vcombine.low %v437, %v501
        %v1083 = vcombine.high %v437, %v501
        %v1085 = vunpack.c.l.s4 1983009808
        %v1086 = vunpack.c.0.s8 %v1085
        %v1087 = vlaneseq
        %v1088 = vshrl.u32 %v1087, 7
        %v1089 = vsub.s32 %v1086, %v1088
        %v1090 = vrot.slane %v1082, %v1089
        %v1092 = vunpack.c.l.s4 1983009808
        %v1093 = vunpack.c.0.s8 %v1092
        %v1094 = vlaneseq
        %v1095 = vshrl.u32 %v1094, 7
        %v1096 = vsub.s32 %v1093, %v1095
        %v1097 = vrot.slane %v1083, %v1096
        %v1098 = vcombine.low %v469, %v533
        %v1099 = vcombine.high %v469, %v533
        %v1101 = vunpack.c.l.s4 1983009808
        %v1102 = vunpack.c.0.s8 %v1101
        %v1103 = vlaneseq
        %v1104 = vshrl.u32 %v1103, 7
        %v1105 = vsub.s32 %v1102, %v1104
        %v1106 = vrot.slane %v1098, %v1105
        %v1108 = vunpack.c.l.s4 1983009808
        %v1109 = vunpack.c.0.s8 %v1108
        %v1110 = vlaneseq
        %v1111 = vshrl.u32 %v1110, 7
        %v1112 = vsub.s32 %v1109, %v1111
        %v1113 = vrot.slane %v1099, %v1112
        %v1114 = vcombine.low %v565, %v629
        %v1115 = vcombine.high %v565, %v629
        %v1117 = vunpack.c.l.s4 1983009808
        %v1118 = vunpack.c.0.s8 %v1117
        %v1119 = vlaneseq
        %v1120 = vshrl.u32 %v1119, 7
        %v1121 = vsub.s32 %v1118, %v1120
        %v1122 = vrot.slane %v1114, %v1121
        %v1124 = vunpack.c.l.s4 1983009808
        %v1125 = vunpack.c.0.s8 %v1124
        %v1126 = vlaneseq
        %v1127 = vshrl.u32 %v1126, 7
        %v1128 = vsub.s32 %v1125, %v1127
        %v1129 = vrot.slane %v1115, %v1128
        %v1130 = vcombine.low %v597, %v661
        %v1131 = vcombine.high %v597, %v661
        %v1133 = vunpack.c.l.s4 1983009808
        %v1134 = vunpack.c.0.s8 %v1133
        %v1135 = vlaneseq
        %v1136 = vshrl.u32 %v1135, 7
        %v1137 = vsub.s32 %v1134, %v1136
        %v1138 = vrot.slane %v1130, %v1137
        %v1140 = vunpack.c.l.s4 1983009808
        %v1141 = vunpack.c.0.s8 %v1140
        %v1142 = vlaneseq
        %v1143 = vshrl.u32 %v1142, 7
        %v1144 = vsub.s32 %v1141, %v1143
        %v1145 = vrot.slane %v1131, %v1144
        %v1146 = vcombine.low %v1090, %v1106
        %v1147 = vcombine.high %v1090, %v1106
        %v1149 = vunpack.c.l.s4 1934713408
        %v1150 = vunpack.c.0.s8 %v1149
        %v1151 = vlaneseq
        %v1152 = vshrl.u32 %v1151, 7
        %v1153 = vsub.s32 %v1150, %v1152
        %v1154 = vrot.slane %v1146, %v1153
        %v1156 = vunpack.c.l.s4 1934713408
        %v1157 = vunpack.c.0.s8 %v1156
        %v1158 = vlaneseq
        %v1159 = vshrl.u32 %v1158, 7
        %v1160 = vsub.s32 %v1157, %v1159
        %v1161 = vrot.slane %v1147, %v1160
        %v1162 = vcombine.low %v1097, %v1113
        %v1163 = vcombine.high %v1097, %v1113
        %v1165 = vunpack.c.l.s4 1934713408
        %v1166 = vunpack.c.0.s8 %v1165
        %v1167 = vlaneseq
        %v1168 = vshrl.u32 %v1167, 7
        %v1169 = vsub.s32 %v1166, %v1168
        %v1170 = vrot.slane %v1162, %v1169
        %v1172 = vunpack.c.l.s4 1934713408
        %v1173 = vunpack.c.0.s8 %v1172
        %v1174 = vlaneseq
        %v1175 = vshrl.u32 %v1174, 7
        %v1176 = vsub.s32 %v1173, %v1175
        %v1177 = vrot.slane %v1163, %v1176
        %v1178 = vcombine.low %v1122, %v1138
        %v1179 = vcombine.high %v1122, %v1138
        %v1181 = vunpack.c.l.s4 1934713408
        %v1182 = vunpack.c.0.s8 %v1181
        %v1183 = vlaneseq
        %v1184 = vshrl.u32 %v1183, 7
        %v1185 = vsub.s32 %v1182, %v1184
        %v1186 = vrot.slane %v1178, %v1185
        %v1188 = vunpack.c.l.s4 1934713408
        %v1189 = vunpack.c.0.s8 %v1188
        %v1190 = vlaneseq
        %v1191 = vshrl.u32 %v1190, 7
        %v1192 = vsub.s32 %v1189, %v1191
        %v1193 = vrot.slane %v1179, %v1192
        %v1194 = vcombine.low %v1129, %v1145
        %v1195 = vcombine.high %v1129, %v1145
        %v1197 = vunpack.c.l.s4 1934713408
        %v1198 = vunpack.c.0.s8 %v1197
        %v1199 = vlaneseq
        %v1200 = vshrl.u32 %v1199, 7
        %v1201 = vsub.s32 %v1198, %v1200
        %v1202 = vrot.slane %v1194, %v1201
        %v1204 = vunpack.c.l.s4 1934713408
        %v1205 = vunpack.c.0.s8 %v1204
        %v1206 = vlaneseq
        %v1207 = vshrl.u32 %v1206, 7
        %v1208 = vsub.s32 %v1205, %v1207
        %v1209 = vrot.slane %v1195, %v1208
        %v1210 = vcombine.low %v1154, %v1186
        %v1211 = vcombine.high %v1154, %v1186
        %v1212 = vcombine.low %v1161, %v1193
        %v1213 = vcombine.high %v1161, %v1193
        %v1214 = vcombine.low %v1170, %v1202
        %v1215 = vcombine.high %v1170, %v1202
        %v1216 = vcombine.low %v1177, %v1209
        %v1217 = vcombine.high %v1177, %v1209
        %1218 = vxpose.xlu0.b32.start [1/16] %v802, 128
        %1219 = vxpose.xlu0.b32.cont [2/16] 0.0, 128
        %1220 = vxpose.xlu0.b32.cont [3/16] 0.0, 128
        %1221 = vxpose.xlu0.b32.cont [4/16] 0.0, 128
        %1222 = vxpose.xlu0.b32.cont [5/16] 0.0, 128
        %1223 = vxpose.xlu0.b32.cont [6/16] 0.0, 128
        %1224 = vxpose.xlu0.b32.cont [7/16] 0.0, 128
        %1225 = vxpose.xlu0.b32.cont [8/16] 0.0, 128
        %1226 = vxpose.xlu0.b32.cont [9/16] 0.0, 128
        %1227 = vxpose.xlu0.b32.cont [10/16] 0.0, 128
        %1228 = vxpose.xlu0.b32.cont [11/16] 0.0, 128
        %1229 = vxpose.xlu0.b32.cont [12/16] 0.0, 128
        %1230 = vxpose.xlu0.b32.cont [13/16] 0.0, 128
        %1231 = vxpose.xlu0.b32.cont [14/16] 0.0, 128
        %1232 = vxpose.xlu0.b32.cont [15/16] 0.0, 128
        %1233 = vxpose.xlu0.b32.end [16/16] 0.0, 128
        %v1234 = vpop.trf.xlu0
        %v1235 = vpop.trf.xlu0
        %v1236 = vpop.trf.xlu0
        %v1237 = vpop.trf.xlu0
        %v1238 = vpop.trf.xlu0
        %v1239 = vpop.trf.xlu0
        %v1240 = vpop.trf.xlu0
        %v1241 = vpop.trf.xlu0
        %v1242 = vpop.trf.xlu0
        %v1243 = vpop.trf.xlu0
        %v1244 = vpop.trf.xlu0
        %v1245 = vpop.trf.xlu0
        %v1246 = vpop.trf.xlu0
        %v1247 = vpop.trf.xlu0
        %v1248 = vpop.trf.xlu0
        %v1249 = vpop.trf.xlu0
        %1250 = vxpose.xlu0.b32.start [1/16] %v803, 128
        %1251 = vxpose.xlu0.b32.cont [2/16] 0.0, 128
        %1252 = vxpose.xlu0.b32.cont [3/16] 0.0, 128
        %1253 = vxpose.xlu0.b32.cont [4/16] 0.0, 128
        %1254 = vxpose.xlu0.b32.cont [5/16] 0.0, 128
        %1255 = vxpose.xlu0.b32.cont [6/16] 0.0, 128
        %1256 = vxpose.xlu0.b32.cont [7/16] 0.0, 128
        %1257 = vxpose.xlu0.b32.cont [8/16] 0.0, 128
        %1258 = vxpose.xlu0.b32.cont [9/16] 0.0, 128
        %1259 = vxpose.xlu0.b32.cont [10/16] 0.0, 128
        %1260 = vxpose.xlu0.b32.cont [11/16] 0.0, 128
        %1261 = vxpose.xlu0.b32.cont [12/16] 0.0, 128
        %1262 = vxpose.xlu0.b32.cont [13/16] 0.0, 128
        %1263 = vxpose.xlu0.b32.cont [14/16] 0.0, 128
        %1264 = vxpose.xlu0.b32.cont [15/16] 0.0, 128
        %1265 = vxpose.xlu0.b32.end [16/16] 0.0, 128
        %v1266 = vpop.trf.xlu0
        %v1267 = vpop.trf.xlu0
        %v1268 = vpop.trf.xlu0
        %v1269 = vpop.trf.xlu0
        %v1270 = vpop.trf.xlu0
        %v1271 = vpop.trf.xlu0
        %v1272 = vpop.trf.xlu0
        %v1273 = vpop.trf.xlu0
        %v1274 = vpop.trf.xlu0
        %v1275 = vpop.trf.xlu0
        %v1276 = vpop.trf.xlu0
        %v1277 = vpop.trf.xlu0
        %v1278 = vpop.trf.xlu0
        %v1279 = vpop.trf.xlu0
        %v1280 = vpop.trf.xlu0
        %v1281 = vpop.trf.xlu0
        %1282 = vxpose.xlu0.b32.start [1/16] %v804, 128
        %1283 = vxpose.xlu0.b32.cont [2/16] 0.0, 128
        %1284 = vxpose.xlu0.b32.cont [3/16] 0.0, 128
        %1285 = vxpose.xlu0.b32.cont [4/16] 0.0, 128
        %1286 = vxpose.xlu0.b32.cont [5/16] 0.0, 128
        %1287 = vxpose.xlu0.b32.cont [6/16] 0.0, 128
        %1288 = vxpose.xlu0.b32.cont [7/16] 0.0, 128
        %1289 = vxpose.xlu0.b32.cont [8/16] 0.0, 128
        %1290 = vxpose.xlu0.b32.cont [9/16] 0.0, 128
        %1291 = vxpose.xlu0.b32.cont [10/16] 0.0, 128
        %1292 = vxpose.xlu0.b32.cont [11/16] 0.0, 128
        %1293 = vxpose.xlu0.b32.cont [12/16] 0.0, 128
        %1294 = vxpose.xlu0.b32.cont [13/16] 0.0, 128
        %1295 = vxpose.xlu0.b32.cont [14/16] 0.0, 128
        %1296 = vxpose.xlu0.b32.cont [15/16] 0.0, 128
        %1297 = vxpose.xlu0.b32.end [16/16] 0.0, 128
        %v1298 = vpop.trf.xlu0
        %v1299 = vpop.trf.xlu0
        %v1300 = vpop.trf.xlu0
        %v1301 = vpop.trf.xlu0
        %v1302 = vpop.trf.xlu0
        %v1303 = vpop.trf.xlu0
        %v1304 = vpop.trf.xlu0
        %v1305 = vpop.trf.xlu0
        %v1306 = vpop.trf.xlu0
        %v1307 = vpop.trf.xlu0
        %v1308 = vpop.trf.xlu0
        %v1309 = vpop.trf.xlu0
        %v1310 = vpop.trf.xlu0
        %v1311 = vpop.trf.xlu0
        %v1312 = vpop.trf.xlu0
        %v1313 = vpop.trf.xlu0
        %1314 = vxpose.xlu0.b32.start [1/16] %v805, 128
        %1315 = vxpose.xlu0.b32.cont [2/16] 0.0, 128
        %1316 = vxpose.xlu0.b32.cont [3/16] 0.0, 128
        %1317 = vxpose.xlu0.b32.cont [4/16] 0.0, 128
        %1318 = vxpose.xlu0.b32.cont [5/16] 0.0, 128
        %1319 = vxpose.xlu0.b32.cont [6/16] 0.0, 128
        %1320 = vxpose.xlu0.b32.cont [7/16] 0.0, 128
        %1321 = vxpose.xlu0.b32.cont [8/16] 0.0, 128
        %1322 = vxpose.xlu0.b32.cont [9/16] 0.0, 128
        %1323 = vxpose.xlu0.b32.cont [10/16] 0.0, 128
        %1324 = vxpose.xlu0.b32.cont [11/16] 0.0, 128
        %1325 = vxpose.xlu0.b32.cont [12/16] 0.0, 128
        %1326 = vxpose.xlu0.b32.cont [13/16] 0.0, 128
        %1327 = vxpose.xlu0.b32.cont [14/16] 0.0, 128
        %1328 = vxpose.xlu0.b32.cont [15/16] 0.0, 128
        %1329 = vxpose.xlu0.b32.end [16/16] 0.0, 128
        %v1330 = vpop.trf.xlu0
        %v1331 = vpop.trf.xlu0
        %v1332 = vpop.trf.xlu0
        %v1333 = vpop.trf.xlu0
        %v1334 = vpop.trf.xlu0
        %v1335 = vpop.trf.xlu0
        %v1336 = vpop.trf.xlu0
        %v1337 = vpop.trf.xlu0
        %v1338 = vpop.trf.xlu0
        %v1339 = vpop.trf.xlu0
        %v1340 = vpop.trf.xlu0
        %v1341 = vpop.trf.xlu0
        %v1342 = vpop.trf.xlu0
        %v1343 = vpop.trf.xlu0
        %v1344 = vpop.trf.xlu0
        %v1345 = vpop.trf.xlu0
        %1346 = vxpose.xlu0.b32.start [1/16] %v806, 128
        %1347 = vxpose.xlu0.b32.cont [2/16] 0.0, 128
        %1348 = vxpose.xlu0.b32.cont [3/16] 0.0, 128
        %1349 = vxpose.xlu0.b32.cont [4/16] 0.0, 128
        %1350 = vxpose.xlu0.b32.cont [5/16] 0.0, 128
        %1351 = vxpose.xlu0.b32.cont [6/16] 0.0, 128
        %1352 = vxpose.xlu0.b32.cont [7/16] 0.0, 128
        %1353 = vxpose.xlu0.b32.cont [8/16] 0.0, 128
        %1354 = vxpose.xlu0.b32.cont [9/16] 0.0, 128
        %1355 = vxpose.xlu0.b32.cont [10/16] 0.0, 128
        %1356 = vxpose.xlu0.b32.cont [11/16] 0.0, 128
        %1357 = vxpose.xlu0.b32.cont [12/16] 0.0, 128
        %1358 = vxpose.xlu0.b32.cont [13/16] 0.0, 128
        %1359 = vxpose.xlu0.b32.cont [14/16] 0.0, 128
        %1360 = vxpose.xlu0.b32.cont [15/16] 0.0, 128
        %1361 = vxpose.xlu0.b32.end [16/16] 0.0, 128
        %v1362 = vpop.trf.xlu0
        %v1363 = vpop.trf.xlu0
        %v1364 = vpop.trf.xlu0
        %v1365 = vpop.trf.xlu0
        %v1366 = vpop.trf.xlu0
        %v1367 = vpop.trf.xlu0
        %v1368 = vpop.trf.xlu0
        %v1369 = vpop.trf.xlu0
        %v1370 = vpop.trf.xlu0
        %v1371 = vpop.trf.xlu0
        %v1372 = vpop.trf.xlu0
        %v1373 = vpop.trf.xlu0
        %v1374 = vpop.trf.xlu0
        %v1375 = vpop.trf.xlu0
        %v1376 = vpop.trf.xlu0
        %v1377 = vpop.trf.xlu0
        %1378 = vxpose.xlu0.b32.start [1/16] %v807, 128
        %1379 = vxpose.xlu0.b32.cont [2/16] 0.0, 128
        %1380 = vxpose.xlu0.b32.cont [3/16] 0.0, 128
        %1381 = vxpose.xlu0.b32.cont [4/16] 0.0, 128
        %1382 = vxpose.xlu0.b32.cont [5/16] 0.0, 128
        %1383 = vxpose.xlu0.b32.cont [6/16] 0.0, 128
        %1384 = vxpose.xlu0.b32.cont [7/16] 0.0, 128
        %1385 = vxpose.xlu0.b32.cont [8/16] 0.0, 128
        %1386 = vxpose.xlu0.b32.cont [9/16] 0.0, 128
        %1387 = vxpose.xlu0.b32.cont [10/16] 0.0, 128
        %1388 = vxpose.xlu0.b32.cont [11/16] 0.0, 128
        %1389 = vxpose.xlu0.b32.cont [12/16] 0.0, 128
        %1390 = vxpose.xlu0.b32.cont [13/16] 0.0, 128
        %1391 = vxpose.xlu0.b32.cont [14/16] 0.0, 128
        %1392 = vxpose.xlu0.b32.cont [15/16] 0.0, 128
        %1393 = vxpose.xlu0.b32.end [16/16] 0.0, 128
        %v1394 = vpop.trf.xlu0
        %v1395 = vpop.trf.xlu0
        %v1396 = vpop.trf.xlu0
        %v1397 = vpop.trf.xlu0
        %v1398 = vpop.trf.xlu0
        %v1399 = vpop.trf.xlu0
        %v1400 = vpop.trf.xlu0
        %v1401 = vpop.trf.xlu0
        %v1402 = vpop.trf.xlu0
        %v1403 = vpop.trf.xlu0
        %v1404 = vpop.trf.xlu0
        %v1405 = vpop.trf.xlu0
        %v1406 = vpop.trf.xlu0
        %v1407 = vpop.trf.xlu0
        %v1408 = vpop.trf.xlu0
        %v1409 = vpop.trf.xlu0
        %1410 = vxpose.xlu0.b32.start [1/16] %v808, 128
        %1411 = vxpose.xlu0.b32.cont [2/16] 0.0, 128
        %1412 = vxpose.xlu0.b32.cont [3/16] 0.0, 128
        %1413 = vxpose.xlu0.b32.cont [4/16] 0.0, 128
        %1414 = vxpose.xlu0.b32.cont [5/16] 0.0, 128
        %1415 = vxpose.xlu0.b32.cont [6/16] 0.0, 128
        %1416 = vxpose.xlu0.b32.cont [7/16] 0.0, 128
        %1417 = vxpose.xlu0.b32.cont [8/16] 0.0, 128
        %1418 = vxpose.xlu0.b32.cont [9/16] 0.0, 128
        %1419 = vxpose.xlu0.b32.cont [10/16] 0.0, 128
        %1420 = vxpose.xlu0.b32.cont [11/16] 0.0, 128
        %1421 = vxpose.xlu0.b32.cont [12/16] 0.0, 128
        %1422 = vxpose.xlu0.b32.cont [13/16] 0.0, 128
        %1423 = vxpose.xlu0.b32.cont [14/16] 0.0, 128
        %1424 = vxpose.xlu0.b32.cont [15/16] 0.0, 128
        %1425 = vxpose.xlu0.b32.end [16/16] 0.0, 128
        %v1426 = vpop.trf.xlu0
        %v1427 = vpop.trf.xlu0
        %v1428 = vpop.trf.xlu0
        %v1429 = vpop.trf.xlu0
        %v1430 = vpop.trf.xlu0
        %v1431 = vpop.trf.xlu0
        %v1432 = vpop.trf.xlu0
        %v1433 = vpop.trf.xlu0
        %v1434 = vpop.trf.xlu0
        %v1435 = vpop.trf.xlu0
        %v1436 = vpop.trf.xlu0
        %v1437 = vpop.trf.xlu0
        %v1438 = vpop.trf.xlu0
        %v1439 = vpop.trf.xlu0
        %v1440 = vpop.trf.xlu0
        %v1441 = vpop.trf.xlu0
        %1442 = vxpose.xlu0.b32.start [1/16] %v809, 128
        %1443 = vxpose.xlu0.b32.cont [2/16] 0.0, 128
        %1444 = vxpose.xlu0.b32.cont [3/16] 0.0, 128
        %1445 = vxpose.xlu0.b32.cont [4/16] 0.0, 128
        %1446 = vxpose.xlu0.b32.cont [5/16] 0.0, 128
        %1447 = vxpose.xlu0.b32.cont [6/16] 0.0, 128
        %1448 = vxpose.xlu0.b32.cont [7/16] 0.0, 128
        %1449 = vxpose.xlu0.b32.cont [8/16] 0.0, 128
        %1450 = vxpose.xlu0.b32.cont [9/16] 0.0, 128
        %1451 = vxpose.xlu0.b32.cont [10/16] 0.0, 128
        %1452 = vxpose.xlu0.b32.cont [11/16] 0.0, 128
        %1453 = vxpose.xlu0.b32.cont [12/16] 0.0, 128
        %1454 = vxpose.xlu0.b32.cont [13/16] 0.0, 128
        %1455 = vxpose.xlu0.b32.cont [14/16] 0.0, 128
        %1456 = vxpose.xlu0.b32.cont [15/16] 0.0, 128
        %1457 = vxpose.xlu0.b32.end [16/16] 0.0, 128
        %v1458 = vpop.trf.xlu0
        %v1459 = vpop.trf.xlu0
        %v1460 = vpop.trf.xlu0
        %v1461 = vpop.trf.xlu0
        %v1462 = vpop.trf.xlu0
        %v1463 = vpop.trf.xlu0
        %v1464 = vpop.trf.xlu0
        %v1465 = vpop.trf.xlu0
        %v1466 = vpop.trf.xlu0
        %v1467 = vpop.trf.xlu0
        %v1468 = vpop.trf.xlu0
        %v1469 = vpop.trf.xlu0
        %v1470 = vpop.trf.xlu0
        %v1471 = vpop.trf.xlu0
        %v1472 = vpop.trf.xlu0
        %v1473 = vpop.trf.xlu0
        %1474 = vxpose.xlu0.b32.start [1/16] %v938, 128
        %1475 = vxpose.xlu0.b32.cont [2/16] 0.0, 128
        %1476 = vxpose.xlu0.b32.cont [3/16] 0.0, 128
        %1477 = vxpose.xlu0.b32.cont [4/16] 0.0, 128
        %1478 = vxpose.xlu0.b32.cont [5/16] 0.0, 128
        %1479 = vxpose.xlu0.b32.cont [6/16] 0.0, 128
        %1480 = vxpose.xlu0.b32.cont [7/16] 0.0, 128
        %1481 = vxpose.xlu0.b32.cont [8/16] 0.0, 128
        %1482 = vxpose.xlu0.b32.cont [9/16] 0.0, 128
        %1483 = vxpose.xlu0.b32.cont [10/16] 0.0, 128
        %1484 = vxpose.xlu0.b32.cont [11/16] 0.0, 128
        %1485 = vxpose.xlu0.b32.cont [12/16] 0.0, 128
        %1486 = vxpose.xlu0.b32.cont [13/16] 0.0, 128
        %1487 = vxpose.xlu0.b32.cont [14/16] 0.0, 128
        %1488 = vxpose.xlu0.b32.cont [15/16] 0.0, 128
        %1489 = vxpose.xlu0.b32.end [16/16] 0.0, 128
        %v1490 = vpop.trf.xlu0
        %v1491 = vpop.trf.xlu0
        %v1492 = vpop.trf.xlu0
        %v1493 = vpop.trf.xlu0
        %v1494 = vpop.trf.xlu0
        %v1495 = vpop.trf.xlu0
        %v1496 = vpop.trf.xlu0
        %v1497 = vpop.trf.xlu0
        %v1498 = vpop.trf.xlu0
        %v1499 = vpop.trf.xlu0
        %v1500 = vpop.trf.xlu0
        %v1501 = vpop.trf.xlu0
        %v1502 = vpop.trf.xlu0
        %v1503 = vpop.trf.xlu0
        %v1504 = vpop.trf.xlu0
        %v1505 = vpop.trf.xlu0
        %1506 = vxpose.xlu0.b32.start [1/16] %v939, 128
        %1507 = vxpose.xlu0.b32.cont [2/16] 0.0, 128
        %1508 = vxpose.xlu0.b32.cont [3/16] 0.0, 128
        %1509 = vxpose.xlu0.b32.cont [4/16] 0.0, 128
        %1510 = vxpose.xlu0.b32.cont [5/16] 0.0, 128
        %1511 = vxpose.xlu0.b32.cont [6/16] 0.0, 128
        %1512 = vxpose.xlu0.b32.cont [7/16] 0.0, 128
        %1513 = vxpose.xlu0.b32.cont [8/16] 0.0, 128
        %1514 = vxpose.xlu0.b32.cont [9/16] 0.0, 128
        %1515 = vxpose.xlu0.b32.cont [10/16] 0.0, 128
        %1516 = vxpose.xlu0.b32.cont [11/16] 0.0, 128
        %1517 = vxpose.xlu0.b32.cont [12/16] 0.0, 128
        %1518 = vxpose.xlu0.b32.cont [13/16] 0.0, 128
        %1519 = vxpose.xlu0.b32.cont [14/16] 0.0, 128
        %1520 = vxpose.xlu0.b32.cont [15/16] 0.0, 128
        %1521 = vxpose.xlu0.b32.end [16/16] 0.0, 128
        %v1522 = vpop.trf.xlu0
        %v1523 = vpop.trf.xlu0
        %v1524 = vpop.trf.xlu0
        %v1525 = vpop.trf.xlu0
        %v1526 = vpop.trf.xlu0
        %v1527 = vpop.trf.xlu0
        %v1528 = vpop.trf.xlu0
        %v1529 = vpop.trf.xlu0
        %v1530 = vpop.trf.xlu0
        %v1531 = vpop.trf.xlu0
        %v1532 = vpop.trf.xlu0
        %v1533 = vpop.trf.xlu0
        %v1534 = vpop.trf.xlu0
        %v1535 = vpop.trf.xlu0
        %v1536 = vpop.trf.xlu0
        %v1537 = vpop.trf.xlu0
        %1538 = vxpose.xlu0.b32.start [1/16] %v940, 128
        %1539 = vxpose.xlu0.b32.cont [2/16] 0.0, 128
        %1540 = vxpose.xlu0.b32.cont [3/16] 0.0, 128
        %1541 = vxpose.xlu0.b32.cont [4/16] 0.0, 128
        %1542 = vxpose.xlu0.b32.cont [5/16] 0.0, 128
        %1543 = vxpose.xlu0.b32.cont [6/16] 0.0, 128
        %1544 = vxpose.xlu0.b32.cont [7/16] 0.0, 128
        %1545 = vxpose.xlu0.b32.cont [8/16] 0.0, 128
        %1546 = vxpose.xlu0.b32.cont [9/16] 0.0, 128
        %1547 = vxpose.xlu0.b32.cont [10/16] 0.0, 128
        %1548 = vxpose.xlu0.b32.cont [11/16] 0.0, 128
        %1549 = vxpose.xlu0.b32.cont [12/16] 0.0, 128
        %1550 = vxpose.xlu0.b32.cont [13/16] 0.0, 128
        %1551 = vxpose.xlu0.b32.cont [14/16] 0.0, 128
        %1552 = vxpose.xlu0.b32.cont [15/16] 0.0, 128
        %1553 = vxpose.xlu0.b32.end [16/16] 0.0, 128
        %v1554 = vpop.trf.xlu0
        %v1555 = vpop.trf.xlu0
        %v1556 = vpop.trf.xlu0
        %v1557 = vpop.trf.xlu0
        %v1558 = vpop.trf.xlu0
        %v1559 = vpop.trf.xlu0
        %v1560 = vpop.trf.xlu0
        %v1561 = vpop.trf.xlu0
        %v1562 = vpop.trf.xlu0
        %v1563 = vpop.trf.xlu0
        %v1564 = vpop.trf.xlu0
        %v1565 = vpop.trf.xlu0
        %v1566 = vpop.trf.xlu0
        %v1567 = vpop.trf.xlu0
        %v1568 = vpop.trf.xlu0
        %v1569 = vpop.trf.xlu0
        %1570 = vxpose.xlu0.b32.start [1/16] %v941, 128
        %1571 = vxpose.xlu0.b32.cont [2/16] 0.0, 128
        %1572 = vxpose.xlu0.b32.cont [3/16] 0.0, 128
        %1573 = vxpose.xlu0.b32.cont [4/16] 0.0, 128
        %1574 = vxpose.xlu0.b32.cont [5/16] 0.0, 128
        %1575 = vxpose.xlu0.b32.cont [6/16] 0.0, 128
        %1576 = vxpose.xlu0.b32.cont [7/16] 0.0, 128
        %1577 = vxpose.xlu0.b32.cont [8/16] 0.0, 128
        %1578 = vxpose.xlu0.b32.cont [9/16] 0.0, 128
        %1579 = vxpose.xlu0.b32.cont [10/16] 0.0, 128
        %1580 = vxpose.xlu0.b32.cont [11/16] 0.0, 128
        %1581 = vxpose.xlu0.b32.cont [12/16] 0.0, 128
        %1582 = vxpose.xlu0.b32.cont [13/16] 0.0, 128
        %1583 = vxpose.xlu0.b32.cont [14/16] 0.0, 128
        %1584 = vxpose.xlu0.b32.cont [15/16] 0.0, 128
        %1585 = vxpose.xlu0.b32.end [16/16] 0.0, 128
        %v1586 = vpop.trf.xlu0
        %v1587 = vpop.trf.xlu0
        %v1588 = vpop.trf.xlu0
        %v1589 = vpop.trf.xlu0
        %v1590 = vpop.trf.xlu0
        %v1591 = vpop.trf.xlu0
        %v1592 = vpop.trf.xlu0
        %v1593 = vpop.trf.xlu0
        %v1594 = vpop.trf.xlu0
        %v1595 = vpop.trf.xlu0
        %v1596 = vpop.trf.xlu0
        %v1597 = vpop.trf.xlu0
        %v1598 = vpop.trf.xlu0
        %v1599 = vpop.trf.xlu0
        %v1600 = vpop.trf.xlu0
        %v1601 = vpop.trf.xlu0
        %1602 = vxpose.xlu0.b32.start [1/16] %v942, 128
        %1603 = vxpose.xlu0.b32.cont [2/16] 0.0, 128
        %1604 = vxpose.xlu0.b32.cont [3/16] 0.0, 128
        %1605 = vxpose.xlu0.b32.cont [4/16] 0.0, 128
        %1606 = vxpose.xlu0.b32.cont [5/16] 0.0, 128
        %1607 = vxpose.xlu0.b32.cont [6/16] 0.0, 128
        %1608 = vxpose.xlu0.b32.cont [7/16] 0.0, 128
        %1609 = vxpose.xlu0.b32.cont [8/16] 0.0, 128
        %1610 = vxpose.xlu0.b32.cont [9/16] 0.0, 128
        %1611 = vxpose.xlu0.b32.cont [10/16] 0.0, 128
        %1612 = vxpose.xlu0.b32.cont [11/16] 0.0, 128
        %1613 = vxpose.xlu0.b32.cont [12/16] 0.0, 128
        %1614 = vxpose.xlu0.b32.cont [13/16] 0.0, 128
        %1615 = vxpose.xlu0.b32.cont [14/16] 0.0, 128
        %1616 = vxpose.xlu0.b32.cont [15/16] 0.0, 128
        %1617 = vxpose.xlu0.b32.end [16/16] 0.0, 128
        %v1618 = vpop.trf.xlu0
        %v1619 = vpop.trf.xlu0
        %v1620 = vpop.trf.xlu0
        %v1621 = vpop.trf.xlu0
        %v1622 = vpop.trf.xlu0
        %v1623 = vpop.trf.xlu0
        %v1624 = vpop.trf.xlu0
        %v1625 = vpop.trf.xlu0
        %v1626 = vpop.trf.xlu0
        %v1627 = vpop.trf.xlu0
        %v1628 = vpop.trf.xlu0
        %v1629 = vpop.trf.xlu0
        %v1630 = vpop.trf.xlu0
        %v1631 = vpop.trf.xlu0
        %v1632 = vpop.trf.xlu0
        %v1633 = vpop.trf.xlu0
        %1634 = vxpose.xlu0.b32.start [1/16] %v943, 128
        %1635 = vxpose.xlu0.b32.cont [2/16] 0.0, 128
        %1636 = vxpose.xlu0.b32.cont [3/16] 0.0, 128
        %1637 = vxpose.xlu0.b32.cont [4/16] 0.0, 128
        %1638 = vxpose.xlu0.b32.cont [5/16] 0.0, 128
        %1639 = vxpose.xlu0.b32.cont [6/16] 0.0, 128
        %1640 = vxpose.xlu0.b32.cont [7/16] 0.0, 128
        %1641 = vxpose.xlu0.b32.cont [8/16] 0.0, 128
        %1642 = vxpose.xlu0.b32.cont [9/16] 0.0, 128
        %1643 = vxpose.xlu0.b32.cont [10/16] 0.0, 128
        %1644 = vxpose.xlu0.b32.cont [11/16] 0.0, 128
        %1645 = vxpose.xlu0.b32.cont [12/16] 0.0, 128
        %1646 = vxpose.xlu0.b32.cont [13/16] 0.0, 128
        %1647 = vxpose.xlu0.b32.cont [14/16] 0.0, 128
        %1648 = vxpose.xlu0.b32.cont [15/16] 0.0, 128
        %1649 = vxpose.xlu0.b32.end [16/16] 0.0, 128
        %v1650 = vpop.trf.xlu0
        %v1651 = vpop.trf.xlu0
        %v1652 = vpop.trf.xlu0
        %v1653 = vpop.trf.xlu0
        %v1654 = vpop.trf.xlu0
        %v1655 = vpop.trf.xlu0
        %v1656 = vpop.trf.xlu0
        %v1657 = vpop.trf.xlu0
        %v1658 = vpop.trf.xlu0
        %v1659 = vpop.trf.xlu0
        %v1660 = vpop.trf.xlu0
        %v1661 = vpop.trf.xlu0
        %v1662 = vpop.trf.xlu0
        %v1663 = vpop.trf.xlu0
        %v1664 = vpop.trf.xlu0
        %v1665 = vpop.trf.xlu0
        %1666 = vxpose.xlu0.b32.start [1/16] %v944, 128
        %1667 = vxpose.xlu0.b32.cont [2/16] 0.0, 128
        %1668 = vxpose.xlu0.b32.cont [3/16] 0.0, 128
        %1669 = vxpose.xlu0.b32.cont [4/16] 0.0, 128
        %1670 = vxpose.xlu0.b32.cont [5/16] 0.0, 128
        %1671 = vxpose.xlu0.b32.cont [6/16] 0.0, 128
        %1672 = vxpose.xlu0.b32.cont [7/16] 0.0, 128
        %1673 = vxpose.xlu0.b32.cont [8/16] 0.0, 128
        %1674 = vxpose.xlu0.b32.cont [9/16] 0.0, 128
        %1675 = vxpose.xlu0.b32.cont [10/16] 0.0, 128
        %1676 = vxpose.xlu0.b32.cont [11/16] 0.0, 128
        %1677 = vxpose.xlu0.b32.cont [12/16] 0.0, 128
        %1678 = vxpose.xlu0.b32.cont [13/16] 0.0, 128
        %1679 = vxpose.xlu0.b32.cont [14/16] 0.0, 128
        %1680 = vxpose.xlu0.b32.cont [15/16] 0.0, 128
        %1681 = vxpose.xlu0.b32.end [16/16] 0.0, 128
        %v1682 = vpop.trf.xlu0
        %v1683 = vpop.trf.xlu0
        %v1684 = vpop.trf.xlu0
        %v1685 = vpop.trf.xlu0
        %v1686 = vpop.trf.xlu0
        %v1687 = vpop.trf.xlu0
        %v1688 = vpop.trf.xlu0
        %v1689 = vpop.trf.xlu0
        %v1690 = vpop.trf.xlu0
        %v1691 = vpop.trf.xlu0
        %v1692 = vpop.trf.xlu0
        %v1693 = vpop.trf.xlu0
        %v1694 = vpop.trf.xlu0
        %v1695 = vpop.trf.xlu0
        %v1696 = vpop.trf.xlu0
        %v1697 = vpop.trf.xlu0
        %1698 = vxpose.xlu0.b32.start [1/16] %v945, 128
        %1699 = vxpose.xlu0.b32.cont [2/16] 0.0, 128
        %1700 = vxpose.xlu0.b32.cont [3/16] 0.0, 128
        %1701 = vxpose.xlu0.b32.cont [4/16] 0.0, 128
        %1702 = vxpose.xlu0.b32.cont [5/16] 0.0, 128
        %1703 = vxpose.xlu0.b32.cont [6/16] 0.0, 128
        %1704 = vxpose.xlu0.b32.cont [7/16] 0.0, 128
        %1705 = vxpose.xlu0.b32.cont [8/16] 0.0, 128
        %1706 = vxpose.xlu0.b32.cont [9/16] 0.0, 128
        %1707 = vxpose.xlu0.b32.cont [10/16] 0.0, 128
        %1708 = vxpose.xlu0.b32.cont [11/16] 0.0, 128
        %1709 = vxpose.xlu0.b32.cont [12/16] 0.0, 128
        %1710 = vxpose.xlu0.b32.cont [13/16] 0.0, 128
        %1711 = vxpose.xlu0.b32.cont [14/16] 0.0, 128
        %1712 = vxpose.xlu0.b32.cont [15/16] 0.0, 128
        %1713 = vxpose.xlu0.b32.end [16/16] 0.0, 128
        %v1714 = vpop.trf.xlu0
        %v1715 = vpop.trf.xlu0
        %v1716 = vpop.trf.xlu0
        %v1717 = vpop.trf.xlu0
        %v1718 = vpop.trf.xlu0
        %v1719 = vpop.trf.xlu0
        %v1720 = vpop.trf.xlu0
        %v1721 = vpop.trf.xlu0
        %v1722 = vpop.trf.xlu0
        %v1723 = vpop.trf.xlu0
        %v1724 = vpop.trf.xlu0
        %v1725 = vpop.trf.xlu0
        %v1726 = vpop.trf.xlu0
        %v1727 = vpop.trf.xlu0
        %v1728 = vpop.trf.xlu0
        %v1729 = vpop.trf.xlu0
        %1730 = vxpose.xlu0.b32.start [1/16] %v1074, 128
        %1731 = vxpose.xlu0.b32.cont [2/16] 0.0, 128
        %1732 = vxpose.xlu0.b32.cont [3/16] 0.0, 128
        %1733 = vxpose.xlu0.b32.cont [4/16] 0.0, 128
        %1734 = vxpose.xlu0.b32.cont [5/16] 0.0, 128
        %1735 = vxpose.xlu0.b32.cont [6/16] 0.0, 128
        %1736 = vxpose.xlu0.b32.cont [7/16] 0.0, 128
        %1737 = vxpose.xlu0.b32.cont [8/16] 0.0, 128
        %1738 = vxpose.xlu0.b32.cont [9/16] 0.0, 128
        %1739 = vxpose.xlu0.b32.cont [10/16] 0.0, 128
        %1740 = vxpose.xlu0.b32.cont [11/16] 0.0, 128
        %1741 = vxpose.xlu0.b32.cont [12/16] 0.0, 128
        %1742 = vxpose.xlu0.b32.cont [13/16] 0.0, 128
        %1743 = vxpose.xlu0.b32.cont [14/16] 0.0, 128
        %1744 = vxpose.xlu0.b32.cont [15/16] 0.0, 128
        %1745 = vxpose.xlu0.b32.end [16/16] 0.0, 128
        %v1746 = vpop.trf.xlu0
        %v1747 = vpop.trf.xlu0
        %v1748 = vpop.trf.xlu0
        %v1749 = vpop.trf.xlu0
        %v1750 = vpop.trf.xlu0
        %v1751 = vpop.trf.xlu0
        %v1752 = vpop.trf.xlu0
        %v1753 = vpop.trf.xlu0
        %v1754 = vpop.trf.xlu0
        %v1755 = vpop.trf.xlu0
        %v1756 = vpop.trf.xlu0
        %v1757 = vpop.trf.xlu0
        %v1758 = vpop.trf.xlu0
        %v1759 = vpop.trf.xlu0
        %v1760 = vpop.trf.xlu0
        %v1761 = vpop.trf.xlu0
        %1762 = vxpose.xlu0.b32.start [1/16] %v1075, 128
        %1763 = vxpose.xlu0.b32.cont [2/16] 0.0, 128
        %1764 = vxpose.xlu0.b32.cont [3/16] 0.0, 128
        %1765 = vxpose.xlu0.b32.cont [4/16] 0.0, 128
        %1766 = vxpose.xlu0.b32.cont [5/16] 0.0, 128
        %1767 = vxpose.xlu0.b32.cont [6/16] 0.0, 128
        %1768 = vxpose.xlu0.b32.cont [7/16] 0.0, 128
        %1769 = vxpose.xlu0.b32.cont [8/16] 0.0, 128
        %1770 = vxpose.xlu0.b32.cont [9/16] 0.0, 128
        %1771 = vxpose.xlu0.b32.cont [10/16] 0.0, 128
        %1772 = vxpose.xlu0.b32.cont [11/16] 0.0, 128
        %1773 = vxpose.xlu0.b32.cont [12/16] 0.0, 128
        %1774 = vxpose.xlu0.b32.cont [13/16] 0.0, 128
        %1775 = vxpose.xlu0.b32.cont [14/16] 0.0, 128
        %1776 = vxpose.xlu0.b32.cont [15/16] 0.0, 128
        %1777 = vxpose.xlu0.b32.end [16/16] 0.0, 128
        %v1778 = vpop.trf.xlu0
        %v1779 = vpop.trf.xlu0
        %v1780 = vpop.trf.xlu0
        %v1781 = vpop.trf.xlu0
        %v1782 = vpop.trf.xlu0
        %v1783 = vpop.trf.xlu0
        %v1784 = vpop.trf.xlu0
        %v1785 = vpop.trf.xlu0
        %v1786 = vpop.trf.xlu0
        %v1787 = vpop.trf.xlu0
        %v1788 = vpop.trf.xlu0
        %v1789 = vpop.trf.xlu0
        %v1790 = vpop.trf.xlu0
        %v1791 = vpop.trf.xlu0
        %v1792 = vpop.trf.xlu0
        %v1793 = vpop.trf.xlu0
        %1794 = vxpose.xlu0.b32.start [1/16] %v1076, 128
        %1795 = vxpose.xlu0.b32.cont [2/16] 0.0, 128
        %1796 = vxpose.xlu0.b32.cont [3/16] 0.0, 128
        %1797 = vxpose.xlu0.b32.cont [4/16] 0.0, 128
        %1798 = vxpose.xlu0.b32.cont [5/16] 0.0, 128
        %1799 = vxpose.xlu0.b32.cont [6/16] 0.0, 128
        %1800 = vxpose.xlu0.b32.cont [7/16] 0.0, 128
        %1801 = vxpose.xlu0.b32.cont [8/16] 0.0, 128
        %1802 = vxpose.xlu0.b32.cont [9/16] 0.0, 128
        %1803 = vxpose.xlu0.b32.cont [10/16] 0.0, 128
        %1804 = vxpose.xlu0.b32.cont [11/16] 0.0, 128
        %1805 = vxpose.xlu0.b32.cont [12/16] 0.0, 128
        %1806 = vxpose.xlu0.b32.cont [13/16] 0.0, 128
        %1807 = vxpose.xlu0.b32.cont [14/16] 0.0, 128
        %1808 = vxpose.xlu0.b32.cont [15/16] 0.0, 128
        %1809 = vxpose.xlu0.b32.end [16/16] 0.0, 128
        %v1810 = vpop.trf.xlu0
        %v1811 = vpop.trf.xlu0
        %v1812 = vpop.trf.xlu0
        %v1813 = vpop.trf.xlu0
        %v1814 = vpop.trf.xlu0
        %v1815 = vpop.trf.xlu0
        %v1816 = vpop.trf.xlu0
        %v1817 = vpop.trf.xlu0
        %v1818 = vpop.trf.xlu0
        %v1819 = vpop.trf.xlu0
        %v1820 = vpop.trf.xlu0
        %v1821 = vpop.trf.xlu0
        %v1822 = vpop.trf.xlu0
        %v1823 = vpop.trf.xlu0
        %v1824 = vpop.trf.xlu0
        %v1825 = vpop.trf.xlu0
        %1826 = vxpose.xlu0.b32.start [1/16] %v1077, 128
        %1827 = vxpose.xlu0.b32.cont [2/16] 0.0, 128
        %1828 = vxpose.xlu0.b32.cont [3/16] 0.0, 128
        %1829 = vxpose.xlu0.b32.cont [4/16] 0.0, 128
        %1830 = vxpose.xlu0.b32.cont [5/16] 0.0, 128
        %1831 = vxpose.xlu0.b32.cont [6/16] 0.0, 128
        %1832 = vxpose.xlu0.b32.cont [7/16] 0.0, 128
        %1833 = vxpose.xlu0.b32.cont [8/16] 0.0, 128
        %1834 = vxpose.xlu0.b32.cont [9/16] 0.0, 128
        %1835 = vxpose.xlu0.b32.cont [10/16] 0.0, 128
        %1836 = vxpose.xlu0.b32.cont [11/16] 0.0, 128
        %1837 = vxpose.xlu0.b32.cont [12/16] 0.0, 128
        %1838 = vxpose.xlu0.b32.cont [13/16] 0.0, 128
        %1839 = vxpose.xlu0.b32.cont [14/16] 0.0, 128
        %1840 = vxpose.xlu0.b32.cont [15/16] 0.0, 128
        %1841 = vxpose.xlu0.b32.end [16/16] 0.0, 128
        %v1842 = vpop.trf.xlu0
        %v1843 = vpop.trf.xlu0
        %v1844 = vpop.trf.xlu0
        %v1845 = vpop.trf.xlu0
        %v1846 = vpop.trf.xlu0
        %v1847 = vpop.trf.xlu0
        %v1848 = vpop.trf.xlu0
        %v1849 = vpop.trf.xlu0
        %v1850 = vpop.trf.xlu0
        %v1851 = vpop.trf.xlu0
        %v1852 = vpop.trf.xlu0
        %v1853 = vpop.trf.xlu0
        %v1854 = vpop.trf.xlu0
        %v1855 = vpop.trf.xlu0
        %v1856 = vpop.trf.xlu0
        %v1857 = vpop.trf.xlu0
        %1858 = vxpose.xlu0.b32.start [1/16] %v1078, 128
        %1859 = vxpose.xlu0.b32.cont [2/16] 0.0, 128
        %1860 = vxpose.xlu0.b32.cont [3/16] 0.0, 128
        %1861 = vxpose.xlu0.b32.cont [4/16] 0.0, 128
        %1862 = vxpose.xlu0.b32.cont [5/16] 0.0, 128
        %1863 = vxpose.xlu0.b32.cont [6/16] 0.0, 128
        %1864 = vxpose.xlu0.b32.cont [7/16] 0.0, 128
        %1865 = vxpose.xlu0.b32.cont [8/16] 0.0, 128
        %1866 = vxpose.xlu0.b32.cont [9/16] 0.0, 128
        %1867 = vxpose.xlu0.b32.cont [10/16] 0.0, 128
        %1868 = vxpose.xlu0.b32.cont [11/16] 0.0, 128
        %1869 = vxpose.xlu0.b32.cont [12/16] 0.0, 128
        %1870 = vxpose.xlu0.b32.cont [13/16] 0.0, 128
        %1871 = vxpose.xlu0.b32.cont [14/16] 0.0, 128
        %1872 = vxpose.xlu0.b32.cont [15/16] 0.0, 128
        %1873 = vxpose.xlu0.b32.end [16/16] 0.0, 128
        %v1874 = vpop.trf.xlu0
        %v1875 = vpop.trf.xlu0
        %v1876 = vpop.trf.xlu0
        %v1877 = vpop.trf.xlu0
        %v1878 = vpop.trf.xlu0
        %v1879 = vpop.trf.xlu0
        %v1880 = vpop.trf.xlu0
        %v1881 = vpop.trf.xlu0
        %v1882 = vpop.trf.xlu0
        %v1883 = vpop.trf.xlu0
        %v1884 = vpop.trf.xlu0
        %v1885 = vpop.trf.xlu0
        %v1886 = vpop.trf.xlu0
        %v1887 = vpop.trf.xlu0
        %v1888 = vpop.trf.xlu0
        %v1889 = vpop.trf.xlu0
        %1890 = vxpose.xlu0.b32.start [1/16] %v1079, 128
        %1891 = vxpose.xlu0.b32.cont [2/16] 0.0, 128
        %1892 = vxpose.xlu0.b32.cont [3/16] 0.0, 128
        %1893 = vxpose.xlu0.b32.cont [4/16] 0.0, 128
        %1894 = vxpose.xlu0.b32.cont [5/16] 0.0, 128
        %1895 = vxpose.xlu0.b32.cont [6/16] 0.0, 128
        %1896 = vxpose.xlu0.b32.cont [7/16] 0.0, 128
        %1897 = vxpose.xlu0.b32.cont [8/16] 0.0, 128
        %1898 = vxpose.xlu0.b32.cont [9/16] 0.0, 128
        %1899 = vxpose.xlu0.b32.cont [10/16] 0.0, 128
        %1900 = vxpose.xlu0.b32.cont [11/16] 0.0, 128
        %1901 = vxpose.xlu0.b32.cont [12/16] 0.0, 128
        %1902 = vxpose.xlu0.b32.cont [13/16] 0.0, 128
        %1903 = vxpose.xlu0.b32.cont [14/16] 0.0, 128
        %1904 = vxpose.xlu0.b32.cont [15/16] 0.0, 128
        %1905 = vxpose.xlu0.b32.end [16/16] 0.0, 128
        %v1906 = vpop.trf.xlu0
        %v1907 = vpop.trf.xlu0
        %v1908 = vpop.trf.xlu0
        %v1909 = vpop.trf.xlu0
        %v1910 = vpop.trf.xlu0
        %v1911 = vpop.trf.xlu0
        %v1912 = vpop.trf.xlu0
        %v1913 = vpop.trf.xlu0
        %v1914 = vpop.trf.xlu0
        %v1915 = vpop.trf.xlu0
        %v1916 = vpop.trf.xlu0
        %v1917 = vpop.trf.xlu0
        %v1918 = vpop.trf.xlu0
        %v1919 = vpop.trf.xlu0
        %v1920 = vpop.trf.xlu0
        %v1921 = vpop.trf.xlu0
        %1922 = vxpose.xlu0.b32.start [1/16] %v1080, 128
        %1923 = vxpose.xlu0.b32.cont [2/16] 0.0, 128
        %1924 = vxpose.xlu0.b32.cont [3/16] 0.0, 128
        %1925 = vxpose.xlu0.b32.cont [4/16] 0.0, 128
        %1926 = vxpose.xlu0.b32.cont [5/16] 0.0, 128
        %1927 = vxpose.xlu0.b32.cont [6/16] 0.0, 128
        %1928 = vxpose.xlu0.b32.cont [7/16] 0.0, 128
        %1929 = vxpose.xlu0.b32.cont [8/16] 0.0, 128
        %1930 = vxpose.xlu0.b32.cont [9/16] 0.0, 128
        %1931 = vxpose.xlu0.b32.cont [10/16] 0.0, 128
        %1932 = vxpose.xlu0.b32.cont [11/16] 0.0, 128
        %1933 = vxpose.xlu0.b32.cont [12/16] 0.0, 128
        %1934 = vxpose.xlu0.b32.cont [13/16] 0.0, 128
        %1935 = vxpose.xlu0.b32.cont [14/16] 0.0, 128
        %1936 = vxpose.xlu0.b32.cont [15/16] 0.0, 128
        %1937 = vxpose.xlu0.b32.end [16/16] 0.0, 128
        %v1938 = vpop.trf.xlu0
        %v1939 = vpop.trf.xlu0
        %v1940 = vpop.trf.xlu0
        %v1941 = vpop.trf.xlu0
        %v1942 = vpop.trf.xlu0
        %v1943 = vpop.trf.xlu0
        %v1944 = vpop.trf.xlu0
        %v1945 = vpop.trf.xlu0
        %v1946 = vpop.trf.xlu0
        %v1947 = vpop.trf.xlu0
        %v1948 = vpop.trf.xlu0
        %v1949 = vpop.trf.xlu0
        %v1950 = vpop.trf.xlu0
        %v1951 = vpop.trf.xlu0
        %v1952 = vpop.trf.xlu0
        %v1953 = vpop.trf.xlu0
        %1954 = vxpose.xlu0.b32.start [1/16] %v1081, 128
        %1955 = vxpose.xlu0.b32.cont [2/16] 0.0, 128
        %1956 = vxpose.xlu0.b32.cont [3/16] 0.0, 128
        %1957 = vxpose.xlu0.b32.cont [4/16] 0.0, 128
        %1958 = vxpose.xlu0.b32.cont [5/16] 0.0, 128
        %1959 = vxpose.xlu0.b32.cont [6/16] 0.0, 128
        %1960 = vxpose.xlu0.b32.cont [7/16] 0.0, 128
        %1961 = vxpose.xlu0.b32.cont [8/16] 0.0, 128
        %1962 = vxpose.xlu0.b32.cont [9/16] 0.0, 128
        %1963 = vxpose.xlu0.b32.cont [10/16] 0.0, 128
        %1964 = vxpose.xlu0.b32.cont [11/16] 0.0, 128
        %1965 = vxpose.xlu0.b32.cont [12/16] 0.0, 128
        %1966 = vxpose.xlu0.b32.cont [13/16] 0.0, 128
        %1967 = vxpose.xlu0.b32.cont [14/16] 0.0, 128
        %1968 = vxpose.xlu0.b32.cont [15/16] 0.0, 128
        %1969 = vxpose.xlu0.b32.end [16/16] 0.0, 128
        %v1970 = vpop.trf.xlu0
        %v1971 = vpop.trf.xlu0
        %v1972 = vpop.trf.xlu0
        %v1973 = vpop.trf.xlu0
        %v1974 = vpop.trf.xlu0
        %v1975 = vpop.trf.xlu0
        %v1976 = vpop.trf.xlu0
        %v1977 = vpop.trf.xlu0
        %v1978 = vpop.trf.xlu0
        %v1979 = vpop.trf.xlu0
        %v1980 = vpop.trf.xlu0
        %v1981 = vpop.trf.xlu0
        %v1982 = vpop.trf.xlu0
        %v1983 = vpop.trf.xlu0
        %v1984 = vpop.trf.xlu0
        %v1985 = vpop.trf.xlu0
        %1986 = vxpose.xlu0.b32.start [1/16] %v1210, 128
        %1987 = vxpose.xlu0.b32.cont [2/16] 0.0, 128
        %1988 = vxpose.xlu0.b32.cont [3/16] 0.0, 128
        %1989 = vxpose.xlu0.b32.cont [4/16] 0.0, 128
        %1990 = vxpose.xlu0.b32.cont [5/16] 0.0, 128
        %1991 = vxpose.xlu0.b32.cont [6/16] 0.0, 128
        %1992 = vxpose.xlu0.b32.cont [7/16] 0.0, 128
        %1993 = vxpose.xlu0.b32.cont [8/16] 0.0, 128
        %1994 = vxpose.xlu0.b32.cont [9/16] 0.0, 128
        %1995 = vxpose.xlu0.b32.cont [10/16] 0.0, 128
        %1996 = vxpose.xlu0.b32.cont [11/16] 0.0, 128
        %1997 = vxpose.xlu0.b32.cont [12/16] 0.0, 128
        %1998 = vxpose.xlu0.b32.cont [13/16] 0.0, 128
        %1999 = vxpose.xlu0.b32.cont [14/16] 0.0, 128
        %2000 = vxpose.xlu0.b32.cont [15/16] 0.0, 128
        %2001 = vxpose.xlu0.b32.end [16/16] 0.0, 128
        %v2002 = vpop.trf.xlu0
        %v2003 = vpop.trf.xlu0
        %v2004 = vpop.trf.xlu0
        %v2005 = vpop.trf.xlu0
        %v2006 = vpop.trf.xlu0
        %v2007 = vpop.trf.xlu0
        %v2008 = vpop.trf.xlu0
        %v2009 = vpop.trf.xlu0
        %v2010 = vpop.trf.xlu0
        %v2011 = vpop.trf.xlu0
        %v2012 = vpop.trf.xlu0
        %v2013 = vpop.trf.xlu0
        %v2014 = vpop.trf.xlu0
        %v2015 = vpop.trf.xlu0
        %v2016 = vpop.trf.xlu0
        %v2017 = vpop.trf.xlu0
        %2018 = vxpose.xlu0.b32.start [1/16] %v1211, 128
        %2019 = vxpose.xlu0.b32.cont [2/16] 0.0, 128
        %2020 = vxpose.xlu0.b32.cont [3/16] 0.0, 128
        %2021 = vxpose.xlu0.b32.cont [4/16] 0.0, 128
        %2022 = vxpose.xlu0.b32.cont [5/16] 0.0, 128
        %2023 = vxpose.xlu0.b32.cont [6/16] 0.0, 128
        %2024 = vxpose.xlu0.b32.cont [7/16] 0.0, 128
        %2025 = vxpose.xlu0.b32.cont [8/16] 0.0, 128
        %2026 = vxpose.xlu0.b32.cont [9/16] 0.0, 128
        %2027 = vxpose.xlu0.b32.cont [10/16] 0.0, 128
        %2028 = vxpose.xlu0.b32.cont [11/16] 0.0, 128
        %2029 = vxpose.xlu0.b32.cont [12/16] 0.0, 128
        %2030 = vxpose.xlu0.b32.cont [13/16] 0.0, 128
        %2031 = vxpose.xlu0.b32.cont [14/16] 0.0, 128
        %2032 = vxpose.xlu0.b32.cont [15/16] 0.0, 128
        %2033 = vxpose.xlu0.b32.end [16/16] 0.0, 128
        %v2034 = vpop.trf.xlu0
        %v2035 = vpop.trf.xlu0
        %v2036 = vpop.trf.xlu0
        %v2037 = vpop.trf.xlu0
        %v2038 = vpop.trf.xlu0
        %v2039 = vpop.trf.xlu0
        %v2040 = vpop.trf.xlu0
        %v2041 = vpop.trf.xlu0
        %v2042 = vpop.trf.xlu0
        %v2043 = vpop.trf.xlu0
        %v2044 = vpop.trf.xlu0
        %v2045 = vpop.trf.xlu0
        %v2046 = vpop.trf.xlu0
        %v2047 = vpop.trf.xlu0
        %v2048 = vpop.trf.xlu0
        %v2049 = vpop.trf.xlu0
        %2050 = vxpose.xlu0.b32.start [1/16] %v1212, 128
        %2051 = vxpose.xlu0.b32.cont [2/16] 0.0, 128
        %2052 = vxpose.xlu0.b32.cont [3/16] 0.0, 128
        %2053 = vxpose.xlu0.b32.cont [4/16] 0.0, 128
        %2054 = vxpose.xlu0.b32.cont [5/16] 0.0, 128
        %2055 = vxpose.xlu0.b32.cont [6/16] 0.0, 128
        %2056 = vxpose.xlu0.b32.cont [7/16] 0.0, 128
        %2057 = vxpose.xlu0.b32.cont [8/16] 0.0, 128
        %2058 = vxpose.xlu0.b32.cont [9/16] 0.0, 128
        %2059 = vxpose.xlu0.b32.cont [10/16] 0.0, 128
        %2060 = vxpose.xlu0.b32.cont [11/16] 0.0, 128
        %2061 = vxpose.xlu0.b32.cont [12/16] 0.0, 128
        %2062 = vxpose.xlu0.b32.cont [13/16] 0.0, 128
        %2063 = vxpose.xlu0.b32.cont [14/16] 0.0, 128
        %2064 = vxpose.xlu0.b32.cont [15/16] 0.0, 128
        %2065 = vxpose.xlu0.b32.end [16/16] 0.0, 128
        %v2066 = vpop.trf.xlu0
        %v2067 = vpop.trf.xlu0
        %v2068 = vpop.trf.xlu0
        %v2069 = vpop.trf.xlu0
        %v2070 = vpop.trf.xlu0
        %v2071 = vpop.trf.xlu0
        %v2072 = vpop.trf.xlu0
        %v2073 = vpop.trf.xlu0
        %v2074 = vpop.trf.xlu0
        %v2075 = vpop.trf.xlu0
        %v2076 = vpop.trf.xlu0
        %v2077 = vpop.trf.xlu0
        %v2078 = vpop.trf.xlu0
        %v2079 = vpop.trf.xlu0
        %v2080 = vpop.trf.xlu0
        %v2081 = vpop.trf.xlu0
        %2082 = vxpose.xlu0.b32.start [1/16] %v1213, 128
        %2083 = vxpose.xlu0.b32.cont [2/16] 0.0, 128
        %2084 = vxpose.xlu0.b32.cont [3/16] 0.0, 128
        %2085 = vxpose.xlu0.b32.cont [4/16] 0.0, 128
        %2086 = vxpose.xlu0.b32.cont [5/16] 0.0, 128
        %2087 = vxpose.xlu0.b32.cont [6/16] 0.0, 128
        %2088 = vxpose.xlu0.b32.cont [7/16] 0.0, 128
        %2089 = vxpose.xlu0.b32.cont [8/16] 0.0, 128
        %2090 = vxpose.xlu0.b32.cont [9/16] 0.0, 128
        %2091 = vxpose.xlu0.b32.cont [10/16] 0.0, 128
        %2092 = vxpose.xlu0.b32.cont [11/16] 0.0, 128
        %2093 = vxpose.xlu0.b32.cont [12/16] 0.0, 128
        %2094 = vxpose.xlu0.b32.cont [13/16] 0.0, 128
        %2095 = vxpose.xlu0.b32.cont [14/16] 0.0, 128
        %2096 = vxpose.xlu0.b32.cont [15/16] 0.0, 128
        %2097 = vxpose.xlu0.b32.end [16/16] 0.0, 128
        %v2098 = vpop.trf.xlu0
        %v2099 = vpop.trf.xlu0
        %v2100 = vpop.trf.xlu0
        %v2101 = vpop.trf.xlu0
        %v2102 = vpop.trf.xlu0
        %v2103 = vpop.trf.xlu0
        %v2104 = vpop.trf.xlu0
        %v2105 = vpop.trf.xlu0
        %v2106 = vpop.trf.xlu0
        %v2107 = vpop.trf.xlu0
        %v2108 = vpop.trf.xlu0
        %v2109 = vpop.trf.xlu0
        %v2110 = vpop.trf.xlu0
        %v2111 = vpop.trf.xlu0
        %v2112 = vpop.trf.xlu0
        %v2113 = vpop.trf.xlu0
        %2114 = vxpose.xlu0.b32.start [1/16] %v1214, 128
        %2115 = vxpose.xlu0.b32.cont [2/16] 0.0, 128
        %2116 = vxpose.xlu0.b32.cont [3/16] 0.0, 128
        %2117 = vxpose.xlu0.b32.cont [4/16] 0.0, 128
        %2118 = vxpose.xlu0.b32.cont [5/16] 0.0, 128
        %2119 = vxpose.xlu0.b32.cont [6/16] 0.0, 128
        %2120 = vxpose.xlu0.b32.cont [7/16] 0.0, 128
        %2121 = vxpose.xlu0.b32.cont [8/16] 0.0, 128
        %2122 = vxpose.xlu0.b32.cont [9/16] 0.0, 128
        %2123 = vxpose.xlu0.b32.cont [10/16] 0.0, 128
        %2124 = vxpose.xlu0.b32.cont [11/16] 0.0, 128
        %2125 = vxpose.xlu0.b32.cont [12/16] 0.0, 128
        %2126 = vxpose.xlu0.b32.cont [13/16] 0.0, 128
        %2127 = vxpose.xlu0.b32.cont [14/16] 0.0, 128
        %2128 = vxpose.xlu0.b32.cont [15/16] 0.0, 128
        %2129 = vxpose.xlu0.b32.end [16/16] 0.0, 128
        %v2130 = vpop.trf.xlu0
        %v2131 = vpop.trf.xlu0
        %v2132 = vpop.trf.xlu0
        %v2133 = vpop.trf.xlu0
        %v2134 = vpop.trf.xlu0
        %v2135 = vpop.trf.xlu0
        %v2136 = vpop.trf.xlu0
        %v2137 = vpop.trf.xlu0
        %v2138 = vpop.trf.xlu0
        %v2139 = vpop.trf.xlu0
        %v2140 = vpop.trf.xlu0
        %v2141 = vpop.trf.xlu0
        %v2142 = vpop.trf.xlu0
        %v2143 = vpop.trf.xlu0
        %v2144 = vpop.trf.xlu0
        %v2145 = vpop.trf.xlu0
        %2146 = vxpose.xlu0.b32.start [1/16] %v1215, 128
        %2147 = vxpose.xlu0.b32.cont [2/16] 0.0, 128
        %2148 = vxpose.xlu0.b32.cont [3/16] 0.0, 128
        %2149 = vxpose.xlu0.b32.cont [4/16] 0.0, 128
        %2150 = vxpose.xlu0.b32.cont [5/16] 0.0, 128
        %2151 = vxpose.xlu0.b32.cont [6/16] 0.0, 128
        %2152 = vxpose.xlu0.b32.cont [7/16] 0.0, 128
        %2153 = vxpose.xlu0.b32.cont [8/16] 0.0, 128
        %2154 = vxpose.xlu0.b32.cont [9/16] 0.0, 128
        %2155 = vxpose.xlu0.b32.cont [10/16] 0.0, 128
        %2156 = vxpose.xlu0.b32.cont [11/16] 0.0, 128
        %2157 = vxpose.xlu0.b32.cont [12/16] 0.0, 128
        %2158 = vxpose.xlu0.b32.cont [13/16] 0.0, 128
        %2159 = vxpose.xlu0.b32.cont [14/16] 0.0, 128
        %2160 = vxpose.xlu0.b32.cont [15/16] 0.0, 128
        %2161 = vxpose.xlu0.b32.end [16/16] 0.0, 128
        %v2162 = vpop.trf.xlu0
        %v2163 = vpop.trf.xlu0
        %v2164 = vpop.trf.xlu0
        %v2165 = vpop.trf.xlu0
        %v2166 = vpop.trf.xlu0
        %v2167 = vpop.trf.xlu0
        %v2168 = vpop.trf.xlu0
        %v2169 = vpop.trf.xlu0
        %v2170 = vpop.trf.xlu0
        %v2171 = vpop.trf.xlu0
        %v2172 = vpop.trf.xlu0
        %v2173 = vpop.trf.xlu0
        %v2174 = vpop.trf.xlu0
        %v2175 = vpop.trf.xlu0
        %v2176 = vpop.trf.xlu0
        %v2177 = vpop.trf.xlu0
        %2178 = vxpose.xlu0.b32.start [1/16] %v1216, 128
        %2179 = vxpose.xlu0.b32.cont [2/16] 0.0, 128
        %2180 = vxpose.xlu0.b32.cont [3/16] 0.0, 128
        %2181 = vxpose.xlu0.b32.cont [4/16] 0.0, 128
        %2182 = vxpose.xlu0.b32.cont [5/16] 0.0, 128
        %2183 = vxpose.xlu0.b32.cont [6/16] 0.0, 128
        %2184 = vxpose.xlu0.b32.cont [7/16] 0.0, 128
        %2185 = vxpose.xlu0.b32.cont [8/16] 0.0, 128
        %2186 = vxpose.xlu0.b32.cont [9/16] 0.0, 128
        %2187 = vxpose.xlu0.b32.cont [10/16] 0.0, 128
        %2188 = vxpose.xlu0.b32.cont [11/16] 0.0, 128
        %2189 = vxpose.xlu0.b32.cont [12/16] 0.0, 128
        %2190 = vxpose.xlu0.b32.cont [13/16] 0.0, 128
        %2191 = vxpose.xlu0.b32.cont [14/16] 0.0, 128
        %2192 = vxpose.xlu0.b32.cont [15/16] 0.0, 128
        %2193 = vxpose.xlu0.b32.end [16/16] 0.0, 128
        %v2194 = vpop.trf.xlu0
        %v2195 = vpop.trf.xlu0
        %v2196 = vpop.trf.xlu0
        %v2197 = vpop.trf.xlu0
        %v2198 = vpop.trf.xlu0
        %v2199 = vpop.trf.xlu0
        %v2200 = vpop.trf.xlu0
        %v2201 = vpop.trf.xlu0
        %v2202 = vpop.trf.xlu0
        %v2203 = vpop.trf.xlu0
        %v2204 = vpop.trf.xlu0
        %v2205 = vpop.trf.xlu0
        %v2206 = vpop.trf.xlu0
        %v2207 = vpop.trf.xlu0
        %v2208 = vpop.trf.xlu0
        %v2209 = vpop.trf.xlu0
        %2210 = vxpose.xlu0.b32.start [1/16] %v1217, 128
        %2211 = vxpose.xlu0.b32.cont [2/16] 0.0, 128
        %2212 = vxpose.xlu0.b32.cont [3/16] 0.0, 128
        %2213 = vxpose.xlu0.b32.cont [4/16] 0.0, 128
        %2214 = vxpose.xlu0.b32.cont [5/16] 0.0, 128
        %2215 = vxpose.xlu0.b32.cont [6/16] 0.0, 128
        %2216 = vxpose.xlu0.b32.cont [7/16] 0.0, 128
        %2217 = vxpose.xlu0.b32.cont [8/16] 0.0, 128
        %2218 = vxpose.xlu0.b32.cont [9/16] 0.0, 128
        %2219 = vxpose.xlu0.b32.cont [10/16] 0.0, 128
        %2220 = vxpose.xlu0.b32.cont [11/16] 0.0, 128
        %2221 = vxpose.xlu0.b32.cont [12/16] 0.0, 128
        %2222 = vxpose.xlu0.b32.cont [13/16] 0.0, 128
        %2223 = vxpose.xlu0.b32.cont [14/16] 0.0, 128
        %2224 = vxpose.xlu0.b32.cont [15/16] 0.0, 128
        %2225 = vxpose.xlu0.b32.end [16/16] 0.0, 128
        %v2226 = vpop.trf.xlu0
        %v2227 = vpop.trf.xlu0
        %v2228 = vpop.trf.xlu0
        %v2229 = vpop.trf.xlu0
        %v2230 = vpop.trf.xlu0
        %v2231 = vpop.trf.xlu0
        %v2232 = vpop.trf.xlu0
        %v2233 = vpop.trf.xlu0
        %v2234 = vpop.trf.xlu0
        %v2235 = vpop.trf.xlu0
        %v2236 = vpop.trf.xlu0
        %v2237 = vpop.trf.xlu0
        %v2238 = vpop.trf.xlu0
        %v2239 = vpop.trf.xlu0
        %v2240 = vpop.trf.xlu0
        %v2241 = vpop.trf.xlu0
        %v2242 = vcombine.low %v1234, %v1298
        %v2244 = vunpack.c.l.s4 1983009808
        %v2245 = vunpack.c.0.s8 %v2244
        %v2246 = vlaneseq
        %v2247 = vshrl.u32 %v2246, 7
        %v2248 = vsub.s32 %v2245, %v2247
        %v2249 = vrot.slane %v2242, %v2248
        %v2250 = vcombine.low %v1266, %v1330
        %v2252 = vunpack.c.l.s4 1983009808
        %v2253 = vunpack.c.0.s8 %v2252
        %v2254 = vlaneseq
        %v2255 = vshrl.u32 %v2254, 7
        %v2256 = vsub.s32 %v2253, %v2255
        %v2257 = vrot.slane %v2250, %v2256
        %v2258 = vcombine.low %v1362, %v1426
        %v2260 = vunpack.c.l.s4 1983009808
        %v2261 = vunpack.c.0.s8 %v2260
        %v2262 = vlaneseq
        %v2263 = vshrl.u32 %v2262, 7
        %v2264 = vsub.s32 %v2261, %v2263
        %v2265 = vrot.slane %v2258, %v2264
        %v2266 = vcombine.low %v1394, %v1458
        %v2268 = vunpack.c.l.s4 1983009808
        %v2269 = vunpack.c.0.s8 %v2268
        %v2270 = vlaneseq
        %v2271 = vshrl.u32 %v2270, 7
        %v2272 = vsub.s32 %v2269, %v2271
        %v2273 = vrot.slane %v2266, %v2272
        %v2274 = vcombine.low %v2249, %v2257
        %v2275 = vcombine.high %v2249, %v2257
        %v2277 = vunpack.c.l.s4 1934713408
        %v2278 = vunpack.c.0.s8 %v2277
        %v2279 = vlaneseq
        %v2280 = vshrl.u32 %v2279, 7
        %v2281 = vsub.s32 %v2278, %v2280
        %v2282 = vrot.slane %v2274, %v2281
        %v2284 = vunpack.c.l.s4 1934713408
        %v2285 = vunpack.c.0.s8 %v2284
        %v2286 = vlaneseq
        %v2287 = vshrl.u32 %v2286, 7
        %v2288 = vsub.s32 %v2285, %v2287
        %v2289 = vrot.slane %v2275, %v2288
        %v2290 = vcombine.low %v2265, %v2273
        %v2291 = vcombine.high %v2265, %v2273
        %v2293 = vunpack.c.l.s4 1934713408
        %v2294 = vunpack.c.0.s8 %v2293
        %v2295 = vlaneseq
        %v2296 = vshrl.u32 %v2295, 7
        %v2297 = vsub.s32 %v2294, %v2296
        %v2298 = vrot.slane %v2290, %v2297
        %v2300 = vunpack.c.l.s4 1934713408
        %v2301 = vunpack.c.0.s8 %v2300
        %v2302 = vlaneseq
        %v2303 = vshrl.u32 %v2302, 7
        %v2304 = vsub.s32 %v2301, %v2303
        %v2305 = vrot.slane %v2291, %v2304
        %v2306 = vcombine.low %v2282, %v2298
        %v2307 = vcombine.high %v2282, %v2298
        %v2308 = vcombine.low %v2289, %v2305
        %v2309 = vcombine.high %v2289, %v2305
        %v2310 = vcombine.low %v1490, %v1554
        %v2312 = vunpack.c.l.s4 1983009808
        %v2313 = vunpack.c.0.s8 %v2312
        %v2314 = vlaneseq
        %v2315 = vshrl.u32 %v2314, 7
        %v2316 = vsub.s32 %v2313, %v2315
        %v2317 = vrot.slane %v2310, %v2316
        %v2318 = vcombine.low %v1522, %v1586
        %v2320 = vunpack.c.l.s4 1983009808
        %v2321 = vunpack.c.0.s8 %v2320
        %v2322 = vlaneseq
        %v2323 = vshrl.u32 %v2322, 7
        %v2324 = vsub.s32 %v2321, %v2323
        %v2325 = vrot.slane %v2318, %v2324
        %v2326 = vcombine.low %v1618, %v1682
        %v2328 = vunpack.c.l.s4 1983009808
        %v2329 = vunpack.c.0.s8 %v2328
        %v2330 = vlaneseq
        %v2331 = vshrl.u32 %v2330, 7
        %v2332 = vsub.s32 %v2329, %v2331
        %v2333 = vrot.slane %v2326, %v2332
        %v2334 = vcombine.low %v1650, %v1714
        %v2336 = vunpack.c.l.s4 1983009808
        %v2337 = vunpack.c.0.s8 %v2336
        %v2338 = vlaneseq
        %v2339 = vshrl.u32 %v2338, 7
        %v2340 = vsub.s32 %v2337, %v2339
        %v2341 = vrot.slane %v2334, %v2340
        %v2342 = vcombine.low %v2317, %v2325
        %v2343 = vcombine.high %v2317, %v2325
        %v2345 = vunpack.c.l.s4 1934713408
        %v2346 = vunpack.c.0.s8 %v2345
        %v2347 = vlaneseq
        %v2348 = vshrl.u32 %v2347, 7
        %v2349 = vsub.s32 %v2346, %v2348
        %v2350 = vrot.slane %v2342, %v2349
        %v2352 = vunpack.c.l.s4 1934713408
        %v2353 = vunpack.c.0.s8 %v2352
        %v2354 = vlaneseq
        %v2355 = vshrl.u32 %v2354, 7
        %v2356 = vsub.s32 %v2353, %v2355
        %v2357 = vrot.slane %v2343, %v2356
        %v2358 = vcombine.low %v2333, %v2341
        %v2359 = vcombine.high %v2333, %v2341
        %v2361 = vunpack.c.l.s4 1934713408
        %v2362 = vunpack.c.0.s8 %v2361
        %v2363 = vlaneseq
        %v2364 = vshrl.u32 %v2363, 7
        %v2365 = vsub.s32 %v2362, %v2364
        %v2366 = vrot.slane %v2358, %v2365
        %v2368 = vunpack.c.l.s4 1934713408
        %v2369 = vunpack.c.0.s8 %v2368
        %v2370 = vlaneseq
        %v2371 = vshrl.u32 %v2370, 7
        %v2372 = vsub.s32 %v2369, %v2371
        %v2373 = vrot.slane %v2359, %v2372
        %v2374 = vcombine.low %v2350, %v2366
        %v2375 = vcombine.high %v2350, %v2366
        %v2376 = vcombine.low %v2357, %v2373
        %v2377 = vcombine.high %v2357, %v2373
        %v2378 = vcombine.low %v1746, %v1810
        %v2380 = vunpack.c.l.s4 1983009808
        %v2381 = vunpack.c.0.s8 %v2380
        %v2382 = vlaneseq
        %v2383 = vshrl.u32 %v2382, 7
        %v2384 = vsub.s32 %v2381, %v2383
        %v2385 = vrot.slane %v2378, %v2384
        %v2386 = vcombine.low %v1778, %v1842
        %v2388 = vunpack.c.l.s4 1983009808
        %v2389 = vunpack.c.0.s8 %v2388
        %v2390 = vlaneseq
        %v2391 = vshrl.u32 %v2390, 7
        %v2392 = vsub.s32 %v2389, %v2391
        %v2393 = vrot.slane %v2386, %v2392
        %v2394 = vcombine.low %v1874, %v1938
        %v2396 = vunpack.c.l.s4 1983009808
        %v2397 = vunpack.c.0.s8 %v2396
        %v2398 = vlaneseq
        %v2399 = vshrl.u32 %v2398, 7
        %v2400 = vsub.s32 %v2397, %v2399
        %v2401 = vrot.slane %v2394, %v2400
        %v2402 = vcombine.low %v1906, %v1970
        %v2404 = vunpack.c.l.s4 1983009808
        %v2405 = vunpack.c.0.s8 %v2404
        %v2406 = vlaneseq
        %v2407 = vshrl.u32 %v2406, 7
        %v2408 = vsub.s32 %v2405, %v2407
        %v2409 = vrot.slane %v2402, %v2408
        %v2410 = vcombine.low %v2385, %v2393
        %v2411 = vcombine.high %v2385, %v2393
        %v2413 = vunpack.c.l.s4 1934713408
        %v2414 = vunpack.c.0.s8 %v2413
        %v2415 = vlaneseq
        %v2416 = vshrl.u32 %v2415, 7
        %v2417 = vsub.s32 %v2414, %v2416
        %v2418 = vrot.slane %v2410, %v2417
        %v2420 = vunpack.c.l.s4 1934713408
        %v2421 = vunpack.c.0.s8 %v2420
        %v2422 = vlaneseq
        %v2423 = vshrl.u32 %v2422, 7
        %v2424 = vsub.s32 %v2421, %v2423
        %v2425 = vrot.slane %v2411, %v2424
        %v2426 = vcombine.low %v2401, %v2409
        %v2427 = vcombine.high %v2401, %v2409
        %v2429 = vunpack.c.l.s4 1934713408
        %v2430 = vunpack.c.0.s8 %v2429
        %v2431 = vlaneseq
        %v2432 = vshrl.u32 %v2431, 7
        %v2433 = vsub.s32 %v2430, %v2432
        %v2434 = vrot.slane %v2426, %v2433
        %v2436 = vunpack.c.l.s4 1934713408
        %v2437 = vunpack.c.0.s8 %v2436
        %v2438 = vlaneseq
        %v2439 = vshrl.u32 %v2438, 7
        %v2440 = vsub.s32 %v2437, %v2439
        %v2441 = vrot.slane %v2427, %v2440
        %v2442 = vcombine.low %v2418, %v2434
        %v2443 = vcombine.high %v2418, %v2434
        %v2444 = vcombine.low %v2425, %v2441
        %v2445 = vcombine.high %v2425, %v2441
        %v2446 = vcombine.low %v2002, %v2066
        %v2448 = vunpack.c.l.s4 1983009808
        %v2449 = vunpack.c.0.s8 %v2448
        %v2450 = vlaneseq
        %v2451 = vshrl.u32 %v2450, 7
        %v2452 = vsub.s32 %v2449, %v2451
        %v2453 = vrot.slane %v2446, %v2452
        %v2454 = vcombine.low %v2034, %v2098
        %v2456 = vunpack.c.l.s4 1983009808
        %v2457 = vunpack.c.0.s8 %v2456
        %v2458 = vlaneseq
        %v2459 = vshrl.u32 %v2458, 7
        %v2460 = vsub.s32 %v2457, %v2459
        %v2461 = vrot.slane %v2454, %v2460
        %v2462 = vcombine.low %v2130, %v2194
        %v2464 = vunpack.c.l.s4 1983009808
        %v2465 = vunpack.c.0.s8 %v2464
        %v2466 = vlaneseq
        %v2467 = vshrl.u32 %v2466, 7
        %v2468 = vsub.s32 %v2465, %v2467
        %v2469 = vrot.slane %v2462, %v2468
        %v2470 = vcombine.low %v2162, %v2226
        %v2472 = vunpack.c.l.s4 1983009808
        %v2473 = vunpack.c.0.s8 %v2472
        %v2474 = vlaneseq
        %v2475 = vshrl.u32 %v2474, 7
        %v2476 = vsub.s32 %v2473, %v2475
        %v2477 = vrot.slane %v2470, %v2476
        %v2478 = vcombine.low %v2453, %v2461
        %v2479 = vcombine.high %v2453, %v2461
        %v2481 = vunpack.c.l.s4 1934713408
        %v2482 = vunpack.c.0.s8 %v2481
        %v2483 = vlaneseq
        %v2484 = vshrl.u32 %v2483, 7
        %v2485 = vsub.s32 %v2482, %v2484
        %v2486 = vrot.slane %v2478, %v2485
        %v2488 = vunpack.c.l.s4 1934713408
        %v2489 = vunpack.c.0.s8 %v2488
        %v2490 = vlaneseq
        %v2491 = vshrl.u32 %v2490, 7
        %v2492 = vsub.s32 %v2489, %v2491
        %v2493 = vrot.slane %v2479, %v2492
        %v2494 = vcombine.low %v2469, %v2477
        %v2495 = vcombine.high %v2469, %v2477
        %v2497 = vunpack.c.l.s4 1934713408
        %v2498 = vunpack.c.0.s8 %v2497
        %v2499 = vlaneseq
        %v2500 = vshrl.u32 %v2499, 7
        %v2501 = vsub.s32 %v2498, %v2500
        %v2502 = vrot.slane %v2494, %v2501
        %v2504 = vunpack.c.l.s4 1934713408
        %v2505 = vunpack.c.0.s8 %v2504
        %v2506 = vlaneseq
        %v2507 = vshrl.u32 %v2506, 7
        %v2508 = vsub.s32 %v2505, %v2507
        %v2509 = vrot.slane %v2495, %v2508
        %v2510 = vcombine.low %v2486, %v2502
        %v2511 = vcombine.high %v2486, %v2502
        %v2512 = vcombine.low %v2493, %v2509
        %v2513 = vcombine.high %v2493, %v2509
        %vm2514 = vcmask 261120
        %v2516 = vsel %vm2514, %v414, 0
        %2518 = vmatprep.subr.mxu0 0.0
        %2519 = vmatpush1.msra.mxu0 0.0
        %2520 = vmatprep.subr.mxu0 0.0
        %2521 = vmatpush1.msra.mxu0 0.0
        %2522 = vmatprep.subr.mxu0 0.0
        %2523 = vmatpush1.msra.mxu0 0.0
        %2524 = vmatprep.subr.mxu0 0.0
        %2525 = vmatpush1.msra.mxu0 0.0
        %2526 = vmatprep.subr.mxu0 0.0
        %2527 = vmatpush1.msra.mxu0 0.0
        %2528 = vmatprep.subr.mxu0 0.0
        %2529 = vmatpush1.msra.mxu0 0.0
        %2530 = vmatprep.subr.mxu0 0.0
        %2531 = vmatpush1.msra.mxu0 0.0
        %2532 = vmatprep.subr.mxu0 0.0
        %2533 = vmatpush1.msra.mxu0 0.0
        %2534 = vmatprep.subr.mxu0 0.0
        %2535 = vmatpush1.msra.mxu0 0.0
        %2536 = vmatprep.subr.mxu0 0.0
        %2537 = vmatpush1.msra.mxu0 0.0
        %2538 = vmatprep.subr.mxu0 0.0
        %2539 = vmatpush1.msra.mxu0 0.0
        %2540 = vmatprep.subr.mxu0 0.0
        %2541 = vmatpush1.msra.mxu0 0.0
        %2542 = vmatprep.subr.mxu0 0.0
        %2543 = vmatpush1.msra.mxu0 %v2510
        %2544 = vmatprep.subr.mxu0 0.0
        %2545 = vmatpush1.msra.mxu0 %v2442
        %2546 = vmatprep.subr.mxu0 0.0
        %2547 = vmatpush1.msra.mxu0 %v2374
        %2548 = vmatprep.subr.mxu0 0.0
        %2549 = vmatpush1.msra.mxu0 %v2306
        %2550 = vmatprep.subr.mxu0 0.0
        %2551 = vmatpush2.msra.mxu0 0.0
        %2552 = vmatprep.subr.mxu0 0.0
        %2553 = vmatpush2.msra.mxu0 0.0
        %2554 = vmatprep.subr.mxu0 0.0
        %2555 = vmatpush2.msra.mxu0 0.0
        %2556 = vmatprep.subr.mxu0 0.0
        %2557 = vmatpush2.msra.mxu0 0.0
        %2558 = vmatprep.subr.mxu0 0.0
        %2559 = vmatpush2.msra.mxu0 0.0
        %2560 = vmatprep.subr.mxu0 0.0
        %2561 = vmatpush2.msra.mxu0 0.0
        %2562 = vmatprep.subr.mxu0 0.0
        %2563 = vmatpush2.msra.mxu0 0.0
        %2564 = vmatprep.subr.mxu0 0.0
        %2565 = vmatpush2.msra.mxu0 0.0
        %2566 = vmatprep.subr.mxu0 0.0
        %2567 = vmatpush2.msra.mxu0 0.0
        %2568 = vmatprep.subr.mxu0 0.0
        %2569 = vmatpush2.msra.mxu0 0.0
        %2570 = vmatprep.subr.mxu0 0.0
        %2571 = vmatpush2.msra.mxu0 0.0
        %2572 = vmatprep.subr.mxu0 0.0
        %2573 = vmatpush2.msra.mxu0 0.0
        %2574 = vmatprep.subr.mxu0 0.0
        %2575 = vmatpush2.msra.mxu0 0.0
        %2576 = vmatprep.subr.mxu0 0.0
        %2577 = vmatpush2.msra.mxu0 0.0
        %2578 = vmatprep.subr.mxu0 0.0
        %2579 = vmatpush2.msra.mxu0 0.0
        %2580 = vmatprep.subr.mxu0 0.0
        %2581 = vmatpush2.msra.mxu0 0.0
        %2582 = vmatprep.mubr.f32.mxu0 0.0
        %2583 = vmatmul.mubr.f32.gmra.mxu0 %v2516
        %v2584 = vpop.f32.mrf.mxu0
        %v2585 = vadd.f32 0.0, %v2584
        %v2586 = vpop.f32.mrf.mxu0
        %2587 = vdwg.mxu0
        %v2589 = vsel %vm2514, %v415, 0
        %2591 = vmatprep.subr.mxu0 0.0
        %2592 = vmatpush1.msra.mxu0 0.0
        %2593 = vmatprep.subr.mxu0 0.0
        %2594 = vmatpush1.msra.mxu0 0.0
        %2595 = vmatprep.subr.mxu0 0.0
        %2596 = vmatpush1.msra.mxu0 0.0
        %2597 = vmatprep.subr.mxu0 0.0
        %2598 = vmatpush1.msra.mxu0 0.0
        %2599 = vmatprep.subr.mxu0 0.0
        %2600 = vmatpush1.msra.mxu0 0.0
        %2601 = vmatprep.subr.mxu0 0.0
        %2602 = vmatpush1.msra.mxu0 0.0
        %2603 = vmatprep.subr.mxu0 0.0
        %2604 = vmatpush1.msra.mxu0 0.0
        %2605 = vmatprep.subr.mxu0 0.0
        %2606 = vmatpush1.msra.mxu0 0.0
        %2607 = vmatprep.subr.mxu0 0.0
        %2608 = vmatpush1.msra.mxu0 0.0
        %2609 = vmatprep.subr.mxu0 0.0
        %2610 = vmatpush1.msra.mxu0 0.0
        %2611 = vmatprep.subr.mxu0 0.0
        %2612 = vmatpush1.msra.mxu0 0.0
        %2613 = vmatprep.subr.mxu0 0.0
        %2614 = vmatpush1.msra.mxu0 0.0
        %2615 = vmatprep.subr.mxu0 0.0
        %2616 = vmatpush1.msra.mxu0 %v2511
        %2617 = vmatprep.subr.mxu0 0.0
        %2618 = vmatpush1.msra.mxu0 %v2443
        %2619 = vmatprep.subr.mxu0 0.0
        %2620 = vmatpush1.msra.mxu0 %v2375
        %2621 = vmatprep.subr.mxu0 0.0
        %2622 = vmatpush1.msra.mxu0 %v2307
        %2623 = vmatprep.subr.mxu0 0.0
        %2624 = vmatpush2.msra.mxu0 0.0
        %2625 = vmatprep.subr.mxu0 0.0
        %2626 = vmatpush2.msra.mxu0 0.0
        %2627 = vmatprep.subr.mxu0 0.0
        %2628 = vmatpush2.msra.mxu0 0.0
        %2629 = vmatprep.subr.mxu0 0.0
        %2630 = vmatpush2.msra.mxu0 0.0
        %2631 = vmatprep.subr.mxu0 0.0
        %2632 = vmatpush2.msra.mxu0 0.0
        %2633 = vmatprep.subr.mxu0 0.0
        %2634 = vmatpush2.msra.mxu0 0.0
        %2635 = vmatprep.subr.mxu0 0.0
        %2636 = vmatpush2.msra.mxu0 0.0
        %2637 = vmatprep.subr.mxu0 0.0
        %2638 = vmatpush2.msra.mxu0 0.0
        %2639 = vmatprep.subr.mxu0 0.0
        %2640 = vmatpush2.msra.mxu0 0.0
        %2641 = vmatprep.subr.mxu0 0.0
        %2642 = vmatpush2.msra.mxu0 0.0
        %2643 = vmatprep.subr.mxu0 0.0
        %2644 = vmatpush2.msra.mxu0 0.0
        %2645 = vmatprep.subr.mxu0 0.0
        %2646 = vmatpush2.msra.mxu0 0.0
        %2647 = vmatprep.subr.mxu0 0.0
        %2648 = vmatpush2.msra.mxu0 0.0
        %2649 = vmatprep.subr.mxu0 0.0
        %2650 = vmatpush2.msra.mxu0 0.0
        %2651 = vmatprep.subr.mxu0 0.0
        %2652 = vmatpush2.msra.mxu0 0.0
        %2653 = vmatprep.subr.mxu0 0.0
        %2654 = vmatpush2.msra.mxu0 0.0
        %2655 = vmatprep.mubr.f32.mxu0 0.0
        %2656 = vmatmul.mubr.f32.gmra.mxu0 %v2589
        %v2657 = vpop.f32.mrf.mxu0
        %v2658 = vadd.f32 0.0, %v2657
        %v2659 = vpop.f32.mrf.mxu0
        %2660 = vdwg.mxu0
        %v2662 = vsel %vm2514, %v416, 0
        %2664 = vmatprep.subr.mxu0 0.0
        %2665 = vmatpush1.msra.mxu0 0.0
        %2666 = vmatprep.subr.mxu0 0.0
        %2667 = vmatpush1.msra.mxu0 0.0
        %2668 = vmatprep.subr.mxu0 0.0
        %2669 = vmatpush1.msra.mxu0 0.0
        %2670 = vmatprep.subr.mxu0 0.0
        %2671 = vmatpush1.msra.mxu0 0.0
        %2672 = vmatprep.subr.mxu0 0.0
        %2673 = vmatpush1.msra.mxu0 0.0
        %2674 = vmatprep.subr.mxu0 0.0
        %2675 = vmatpush1.msra.mxu0 0.0
        %2676 = vmatprep.subr.mxu0 0.0
        %2677 = vmatpush1.msra.mxu0 0.0
        %2678 = vmatprep.subr.mxu0 0.0
        %2679 = vmatpush1.msra.mxu0 0.0
        %2680 = vmatprep.subr.mxu0 0.0
        %2681 = vmatpush1.msra.mxu0 0.0
        %2682 = vmatprep.subr.mxu0 0.0
        %2683 = vmatpush1.msra.mxu0 0.0
        %2684 = vmatprep.subr.mxu0 0.0
        %2685 = vmatpush1.msra.mxu0 0.0
        %2686 = vmatprep.subr.mxu0 0.0
        %2687 = vmatpush1.msra.mxu0 0.0
        %2688 = vmatprep.subr.mxu0 0.0
        %2689 = vmatpush1.msra.mxu0 %v2512
        %2690 = vmatprep.subr.mxu0 0.0
        %2691 = vmatpush1.msra.mxu0 %v2444
        %2692 = vmatprep.subr.mxu0 0.0
        %2693 = vmatpush1.msra.mxu0 %v2376
        %2694 = vmatprep.subr.mxu0 0.0
        %2695 = vmatpush1.msra.mxu0 %v2308
        %2696 = vmatprep.subr.mxu0 0.0
        %2697 = vmatpush2.msra.mxu0 0.0
        %2698 = vmatprep.subr.mxu0 0.0
        %2699 = vmatpush2.msra.mxu0 0.0
        %2700 = vmatprep.subr.mxu0 0.0
        %2701 = vmatpush2.msra.mxu0 0.0
        %2702 = vmatprep.subr.mxu0 0.0
        %2703 = vmatpush2.msra.mxu0 0.0
        %2704 = vmatprep.subr.mxu0 0.0
        %2705 = vmatpush2.msra.mxu0 0.0
        %2706 = vmatprep.subr.mxu0 0.0
        %2707 = vmatpush2.msra.mxu0 0.0
        %2708 = vmatprep.subr.mxu0 0.0
        %2709 = vmatpush2.msra.mxu0 0.0
        %2710 = vmatprep.subr.mxu0 0.0
        %2711 = vmatpush2.msra.mxu0 0.0
        %2712 = vmatprep.subr.mxu0 0.0
        %2713 = vmatpush2.msra.mxu0 0.0
        %2714 = vmatprep.subr.mxu0 0.0
        %2715 = vmatpush2.msra.mxu0 0.0
        %2716 = vmatprep.subr.mxu0 0.0
        %2717 = vmatpush2.msra.mxu0 0.0
        %2718 = vmatprep.subr.mxu0 0.0
        %2719 = vmatpush2.msra.mxu0 0.0
        %2720 = vmatprep.subr.mxu0 0.0
        %2721 = vmatpush2.msra.mxu0 0.0
        %2722 = vmatprep.subr.mxu0 0.0
        %2723 = vmatpush2.msra.mxu0 0.0
        %2724 = vmatprep.subr.mxu0 0.0
        %2725 = vmatpush2.msra.mxu0 0.0
        %2726 = vmatprep.subr.mxu0 0.0
        %2727 = vmatpush2.msra.mxu0 0.0
        %2728 = vmatprep.mubr.f32.mxu0 0.0
        %2729 = vmatmul.mubr.f32.gmra.mxu0 %v2662
        %v2730 = vpop.f32.mrf.mxu0
        %v2731 = vadd.f32 0.0, %v2730
        %v2732 = vpop.f32.mrf.mxu0
        %2733 = vdwg.mxu0
        %v2735 = vsel %vm2514, %v417, 0
        %2737 = vmatprep.subr.mxu0 0.0
        %2738 = vmatpush1.msra.mxu0 0.0
        %2739 = vmatprep.subr.mxu0 0.0
        %2740 = vmatpush1.msra.mxu0 0.0
        %2741 = vmatprep.subr.mxu0 0.0
        %2742 = vmatpush1.msra.mxu0 0.0
        %2743 = vmatprep.subr.mxu0 0.0
        %2744 = vmatpush1.msra.mxu0 0.0
        %2745 = vmatprep.subr.mxu0 0.0
        %2746 = vmatpush1.msra.mxu0 0.0
        %2747 = vmatprep.subr.mxu0 0.0
        %2748 = vmatpush1.msra.mxu0 0.0
        %2749 = vmatprep.subr.mxu0 0.0
        %2750 = vmatpush1.msra.mxu0 0.0
        %2751 = vmatprep.subr.mxu0 0.0
        %2752 = vmatpush1.msra.mxu0 0.0
        %2753 = vmatprep.subr.mxu0 0.0
        %2754 = vmatpush1.msra.mxu0 0.0
        %2755 = vmatprep.subr.mxu0 0.0
        %2756 = vmatpush1.msra.mxu0 0.0
        %2757 = vmatprep.subr.mxu0 0.0
        %2758 = vmatpush1.msra.mxu0 0.0
        %2759 = vmatprep.subr.mxu0 0.0
        %2760 = vmatpush1.msra.mxu0 0.0
        %2761 = vmatprep.subr.mxu0 0.0
        %2762 = vmatpush1.msra.mxu0 %v2513
        %2763 = vmatprep.subr.mxu0 0.0
        %2764 = vmatpush1.msra.mxu0 %v2445
        %2765 = vmatprep.subr.mxu0 0.0
        %2766 = vmatpush1.msra.mxu0 %v2377
        %2767 = vmatprep.subr.mxu0 0.0
        %2768 = vmatpush1.msra.mxu0 %v2309
        %2769 = vmatprep.subr.mxu0 0.0
        %2770 = vmatpush2.msra.mxu0 0.0
        %2771 = vmatprep.subr.mxu0 0.0
        %2772 = vmatpush2.msra.mxu0 0.0
        %2773 = vmatprep.subr.mxu0 0.0
        %2774 = vmatpush2.msra.mxu0 0.0
        %2775 = vmatprep.subr.mxu0 0.0
        %2776 = vmatpush2.msra.mxu0 0.0
        %2777 = vmatprep.subr.mxu0 0.0
        %2778 = vmatpush2.msra.mxu0 0.0
        %2779 = vmatprep.subr.mxu0 0.0
        %2780 = vmatpush2.msra.mxu0 0.0
        %2781 = vmatprep.subr.mxu0 0.0
        %2782 = vmatpush2.msra.mxu0 0.0
        %2783 = vmatprep.subr.mxu0 0.0
        %2784 = vmatpush2.msra.mxu0 0.0
        %2785 = vmatprep.subr.mxu0 0.0
        %2786 = vmatpush2.msra.mxu0 0.0
        %2787 = vmatprep.subr.mxu0 0.0
        %2788 = vmatpush2.msra.mxu0 0.0
        %2789 = vmatprep.subr.mxu0 0.0
        %2790 = vmatpush2.msra.mxu0 0.0
        %2791 = vmatprep.subr.mxu0 0.0
        %2792 = vmatpush2.msra.mxu0 0.0
        %2793 = vmatprep.subr.mxu0 0.0
        %2794 = vmatpush2.msra.mxu0 0.0
        %2795 = vmatprep.subr.mxu0 0.0
        %2796 = vmatpush2.msra.mxu0 0.0
        %2797 = vmatprep.subr.mxu0 0.0
        %2798 = vmatpush2.msra.mxu0 0.0
        %2799 = vmatprep.subr.mxu0 0.0
        %2800 = vmatpush2.msra.mxu0 0.0
        %2801 = vmatprep.mubr.f32.mxu0 0.0
        %2802 = vmatmul.mubr.f32.gmra.mxu0 %v2735
        %v2803 = vpop.f32.mrf.mxu0
        %v2804 = vadd.f32 0.0, %v2803
        %v2805 = vpop.f32.mrf.mxu0
        %2806 = vdwg.mxu0
        %v2807 = vmul.f32 %v2585, 0.17677669
        %v2808 = vmul.f32 %v2658, 0.17677669
        %v2809 = vmul.f32 %v2731, 0.17677669
        %v2810 = vmul.f32 %v2804, 0.17677669
        %s2811 = smul.u32 %s33, 8
        %v2812 = vlaneseq
        %v2813 = vshrl.u32 %v2812, 7
        %v2814 = vstv %s2811
        %v2815 = vadd.s32 %v2814, %v2813
        %v2816 = vlaneseq
        %v2817 = vand.u32 %v2816, 127
        %vm2818 = vcmp.gt.s32.totalorder %v2817, %v2815
        %v2819 = vsel %vm2818, 1, 0
        %vm2820 = vcmp.eq.s32.totalorder %v2819, 1
        %v2821 = vsel %vm2820, -inf, %v2807
        %v2822 = vsel %vm2820, -inf, %v2808
        %v2823 = vsel %vm2820, -inf, %v2809
        %v2824 = vsel %vm2820, -inf, %v2810
        %vm2825 = vcmask 64512
        %v2826 = vsel %vm2825, %v2821, -inf
        %2827 = vmax.xlane.f32.xlu0 %v2826
        %v2828 = vpop.xlane.xlu0 %2827
        %v2829 = vsel %vm2825, %v2822, -inf
        %2830 = vmax.xlane.f32.xlu0 %v2829
        %v2831 = vpop.xlane.xlu0 %2830
        %v2832 = vsel %vm2825, %v2823, -inf
        %2833 = vmax.xlane.f32.xlu0 %v2832
        %v2834 = vpop.xlane.xlu0 %2833
        %v2835 = vsel %vm2825, %v2824, -inf
        %2836 = vmax.xlane.f32.xlu0 %v2835
        %v2837 = vpop.xlane.xlu0 %2836
        %v2838 = vsub.f32 %v2821, %v2828
        %v2839 = vsub.f32 %v2822, %v2831
        %v2840 = vsub.f32 %v2823, %v2834
        %v2841 = vsub.f32 %v2824, %v2837
        %v2842 = vmul.f32 %v2838, 1.442695
        %v2843 = vpow.pop %v2842
        %v2844 = vmul.f32 %v2839, 1.442695
        %v2845 = vpow.pop %v2844
        %v2846 = vmul.f32 %v2840, 1.442695
        %v2847 = vpow.pop %v2846
        %v2848 = vmul.f32 %v2841, 1.442695
        %v2849 = vpow.pop %v2848
        %v2850 = vsel %vm2825, %v2843, 0.0
        %2851 = vadd.xlane.f32.xlu0 %v2850
        %v2852 = vpop.xlane.xlu0 %2851
        %v2853 = vsel %vm2825, %v2845, 0.0
        %2854 = vadd.xlane.f32.xlu0 %v2853
        %v2855 = vpop.xlane.xlu0 %2854
        %v2856 = vsel %vm2825, %v2847, 0.0
        %2857 = vadd.xlane.f32.xlu0 %v2856
        %v2858 = vpop.xlane.xlu0 %2857
        %v2859 = vsel %vm2825, %v2849, 0.0
        %2860 = vadd.xlane.f32.xlu0 %v2859
        %v2861 = vpop.xlane.xlu0 %2860
        %v2862 = vrcp.pop %v2852
        %v2863 = vrcp.pop %v2855
        %v2864 = vrcp.pop %v2858
        %v2865 = vrcp.pop %v2861
        %v2866 = vmul.f32 %v2852, %v2862
        %v2867 = vmul.f32 %v2855, %v2863
        %v2868 = vmul.f32 %v2858, %v2864
        %v2869 = vmul.f32 %v2861, %v2865
        %v2870 = vsub.f32 2.0, %v2866
        %v2871 = vsub.f32 2.0, %v2867
        %v2872 = vsub.f32 2.0, %v2868
        %v2873 = vsub.f32 2.0, %v2869
        %v2874 = vmul.f32 %v2862, %v2870
        %v2875 = vmul.f32 %v2863, %v2871
        %v2876 = vmul.f32 %v2864, %v2872
        %v2877 = vmul.f32 %v2865, %v2873
        %v2878 = vmul.f32 %v2843, %v2874
        %v2879 = vmul.f32 %v2845, %v2875
        %v2880 = vmul.f32 %v2847, %v2876
        %v2881 = vmul.f32 %v2849, %v2877
        %2882 = vst.msk [vmem:[%s323] sm:$0xff] %vm2825, %v2878
        %2883 = vst.msk [vmem:[%s323 + $0x8] sm:$0xff] %vm2825, %v2879
        %2884 = vst.msk [vmem:[%s323 + $0x10] sm:$0xff] %vm2825, %v2880
        %2885 = vst.msk [vmem:[%s323 + $0x18] sm:$0xff] %vm2825, %v2881
        %v2886 = vcombine.low %v342, %v344
        %v2888 = vunpack.c.l.s4 1983009808
        %v2889 = vunpack.c.0.s8 %v2888
        %v2890 = vlaneseq
        %v2891 = vshrl.u32 %v2890, 7
        %v2892 = vsub.s32 %v2889, %v2891
        %v2893 = vrot.slane %v2886, %v2892
        %v2894 = vcombine.low %v343, %v345
        %v2896 = vunpack.c.l.s4 1983009808
        %v2897 = vunpack.c.0.s8 %v2896
        %v2898 = vlaneseq
        %v2899 = vshrl.u32 %v2898, 7
        %v2900 = vsub.s32 %v2897, %v2899
        %v2901 = vrot.slane %v2894, %v2900
        %v2902 = vcombine.low %v346, %v348
        %v2904 = vunpack.c.l.s4 1983009808
        %v2905 = vunpack.c.0.s8 %v2904
        %v2906 = vlaneseq
        %v2907 = vshrl.u32 %v2906, 7
        %v2908 = vsub.s32 %v2905, %v2907
        %v2909 = vrot.slane %v2902, %v2908
        %v2910 = vcombine.low %v347, %v349
        %v2912 = vunpack.c.l.s4 1983009808
        %v2913 = vunpack.c.0.s8 %v2912
        %v2914 = vlaneseq
        %v2915 = vshrl.u32 %v2914, 7
        %v2916 = vsub.s32 %v2913, %v2915
        %v2917 = vrot.slane %v2910, %v2916
        %v2918 = vcombine.low %v2893, %v2901
        %v2919 = vcombine.high %v2893, %v2901
        %v2921 = vunpack.c.l.s4 1934713408
        %v2922 = vunpack.c.0.s8 %v2921
        %v2923 = vlaneseq
        %v2924 = vshrl.u32 %v2923, 7
        %v2925 = vsub.s32 %v2922, %v2924
        %v2926 = vrot.slane %v2918, %v2925
        %v2928 = vunpack.c.l.s4 1934713408
        %v2929 = vunpack.c.0.s8 %v2928
        %v2930 = vlaneseq
        %v2931 = vshrl.u32 %v2930, 7
        %v2932 = vsub.s32 %v2929, %v2931
        %v2933 = vrot.slane %v2919, %v2932
        %v2934 = vcombine.low %v2909, %v2917
        %v2935 = vcombine.high %v2909, %v2917
        %v2937 = vunpack.c.l.s4 1934713408
        %v2938 = vunpack.c.0.s8 %v2937
        %v2939 = vlaneseq
        %v2940 = vshrl.u32 %v2939, 7
        %v2941 = vsub.s32 %v2938, %v2940
        %v2942 = vrot.slane %v2934, %v2941
        %v2944 = vunpack.c.l.s4 1934713408
        %v2945 = vunpack.c.0.s8 %v2944
        %v2946 = vlaneseq
        %v2947 = vshrl.u32 %v2946, 7
        %v2948 = vsub.s32 %v2945, %v2947
        %v2949 = vrot.slane %v2935, %v2948
        %v2950 = vcombine.low %v2926, %v2942
        %v2951 = vcombine.high %v2926, %v2942
        %v2952 = vcombine.low %v2933, %v2949
        %v2953 = vcombine.high %v2933, %v2949
        %v2955 = vsel %vm2825, %v2878, 0
        %2957 = vmatprep.subr.mxu0 0.0
        %2958 = vmatpush1.msra.mxu0 0.0
        %2959 = vmatprep.subr.mxu0 0.0
        %2960 = vmatpush1.msra.mxu0 0.0
        %2961 = vmatprep.subr.mxu0 0.0
        %2962 = vmatpush1.msra.mxu0 0.0
        %2963 = vmatprep.subr.mxu0 0.0
        %2964 = vmatpush1.msra.mxu0 0.0
        %2965 = vmatprep.subr.mxu0 0.0
        %2966 = vmatpush1.msra.mxu0 0.0
        %2967 = vmatprep.subr.mxu0 0.0
        %2968 = vmatpush1.msra.mxu0 0.0
        %2969 = vmatprep.subr.mxu0 0.0
        %2970 = vmatpush1.msra.mxu0 0.0
        %2971 = vmatprep.subr.mxu0 0.0
        %2972 = vmatpush1.msra.mxu0 0.0
        %2973 = vmatprep.subr.mxu0 0.0
        %2974 = vmatpush1.msra.mxu0 0.0
        %2975 = vmatprep.subr.mxu0 0.0
        %2976 = vmatpush1.msra.mxu0 0.0
        %2977 = vmatprep.subr.mxu0 0.0
        %2978 = vmatpush1.msra.mxu0 0.0
        %2979 = vmatprep.subr.mxu0 0.0
        %2980 = vmatpush1.msra.mxu0 0.0
        %2981 = vmatprep.subr.mxu0 0.0
        %2982 = vmatpush1.msra.mxu0 0.0
        %2983 = vmatprep.subr.mxu0 0.0
        %2984 = vmatpush1.msra.mxu0 0.0
        %2985 = vmatprep.subr.mxu0 0.0
        %2986 = vmatpush1.msra.mxu0 0.0
        %2987 = vmatprep.subr.mxu0 0.0
        %2988 = vmatpush1.msra.mxu0 %v2950
        %2989 = vmatprep.subr.mxu0 0.0
        %2990 = vmatpush2.msra.mxu0 0.0
        %2991 = vmatprep.subr.mxu0 0.0
        %2992 = vmatpush2.msra.mxu0 0.0
        %2993 = vmatprep.subr.mxu0 0.0
        %2994 = vmatpush2.msra.mxu0 0.0
        %2995 = vmatprep.subr.mxu0 0.0
        %2996 = vmatpush2.msra.mxu0 0.0
        %2997 = vmatprep.subr.mxu0 0.0
        %2998 = vmatpush2.msra.mxu0 0.0
        %2999 = vmatprep.subr.mxu0 0.0
        %3000 = vmatpush2.msra.mxu0 0.0
        %3001 = vmatprep.subr.mxu0 0.0
        %3002 = vmatpush2.msra.mxu0 0.0
        %3003 = vmatprep.subr.mxu0 0.0
        %3004 = vmatpush2.msra.mxu0 0.0
        %3005 = vmatprep.subr.mxu0 0.0
        %3006 = vmatpush2.msra.mxu0 0.0
        %3007 = vmatprep.subr.mxu0 0.0
        %3008 = vmatpush2.msra.mxu0 0.0
        %3009 = vmatprep.subr.mxu0 0.0
        %3010 = vmatpush2.msra.mxu0 0.0
        %3011 = vmatprep.subr.mxu0 0.0
        %3012 = vmatpush2.msra.mxu0 0.0
        %3013 = vmatprep.subr.mxu0 0.0
        %3014 = vmatpush2.msra.mxu0 0.0
        %3015 = vmatprep.subr.mxu0 0.0
        %3016 = vmatpush2.msra.mxu0 0.0
        %3017 = vmatprep.subr.mxu0 0.0
        %3018 = vmatpush2.msra.mxu0 0.0
        %3019 = vmatprep.subr.mxu0 0.0
        %3020 = vmatpush2.msra.mxu0 0.0
        %3021 = vmatprep.mubr.f32.mxu0 0.0
        %3022 = vmatmul.mubr.f32.gmra.mxu0 %v2955
        %v3023 = vpop.f32.mrf.mxu0
        %v3024 = vadd.f32 0.0, %v3023
        %v3025 = vpop.f32.mrf.mxu0
        %3026 = vdwg.mxu0
        %v3028 = vsel %vm2825, %v2879, 0
        %3030 = vmatprep.subr.mxu0 0.0
        %3031 = vmatpush1.msra.mxu0 0.0
        %3032 = vmatprep.subr.mxu0 0.0
        %3033 = vmatpush1.msra.mxu0 0.0
        %3034 = vmatprep.subr.mxu0 0.0
        %3035 = vmatpush1.msra.mxu0 0.0
        %3036 = vmatprep.subr.mxu0 0.0
        %3037 = vmatpush1.msra.mxu0 0.0
        %3038 = vmatprep.subr.mxu0 0.0
        %3039 = vmatpush1.msra.mxu0 0.0
        %3040 = vmatprep.subr.mxu0 0.0
        %3041 = vmatpush1.msra.mxu0 0.0
        %3042 = vmatprep.subr.mxu0 0.0
        %3043 = vmatpush1.msra.mxu0 0.0
        %3044 = vmatprep.subr.mxu0 0.0
        %3045 = vmatpush1.msra.mxu0 0.0
        %3046 = vmatprep.subr.mxu0 0.0
        %3047 = vmatpush1.msra.mxu0 0.0
        %3048 = vmatprep.subr.mxu0 0.0
        %3049 = vmatpush1.msra.mxu0 0.0
        %3050 = vmatprep.subr.mxu0 0.0
        %3051 = vmatpush1.msra.mxu0 0.0
        %3052 = vmatprep.subr.mxu0 0.0
        %3053 = vmatpush1.msra.mxu0 0.0
        %3054 = vmatprep.subr.mxu0 0.0
        %3055 = vmatpush1.msra.mxu0 0.0
        %3056 = vmatprep.subr.mxu0 0.0
        %3057 = vmatpush1.msra.mxu0 0.0
        %3058 = vmatprep.subr.mxu0 0.0
        %3059 = vmatpush1.msra.mxu0 0.0
        %3060 = vmatprep.subr.mxu0 0.0
        %3061 = vmatpush1.msra.mxu0 %v2951
        %3062 = vmatprep.subr.mxu0 0.0
        %3063 = vmatpush2.msra.mxu0 0.0
        %3064 = vmatprep.subr.mxu0 0.0
        %3065 = vmatpush2.msra.mxu0 0.0
        %3066 = vmatprep.subr.mxu0 0.0
        %3067 = vmatpush2.msra.mxu0 0.0
        %3068 = vmatprep.subr.mxu0 0.0
        %3069 = vmatpush2.msra.mxu0 0.0
        %3070 = vmatprep.subr.mxu0 0.0
        %3071 = vmatpush2.msra.mxu0 0.0
        %3072 = vmatprep.subr.mxu0 0.0
        %3073 = vmatpush2.msra.mxu0 0.0
        %3074 = vmatprep.subr.mxu0 0.0
        %3075 = vmatpush2.msra.mxu0 0.0
        %3076 = vmatprep.subr.mxu0 0.0
        %3077 = vmatpush2.msra.mxu0 0.0
        %3078 = vmatprep.subr.mxu0 0.0
        %3079 = vmatpush2.msra.mxu0 0.0
        %3080 = vmatprep.subr.mxu0 0.0
        %3081 = vmatpush2.msra.mxu0 0.0
        %3082 = vmatprep.subr.mxu0 0.0
        %3083 = vmatpush2.msra.mxu0 0.0
        %3084 = vmatprep.subr.mxu0 0.0
        %3085 = vmatpush2.msra.mxu0 0.0
        %3086 = vmatprep.subr.mxu0 0.0
        %3087 = vmatpush2.msra.mxu0 0.0
        %3088 = vmatprep.subr.mxu0 0.0
        %3089 = vmatpush2.msra.mxu0 0.0
        %3090 = vmatprep.subr.mxu0 0.0
        %3091 = vmatpush2.msra.mxu0 0.0
        %3092 = vmatprep.subr.mxu0 0.0
        %3093 = vmatpush2.msra.mxu0 0.0
        %3094 = vmatprep.mubr.f32.mxu0 0.0
        %3095 = vmatmul.mubr.f32.gmra.mxu0 %v3028
        %v3096 = vpop.f32.mrf.mxu0
        %v3097 = vadd.f32 0.0, %v3096
        %v3098 = vpop.f32.mrf.mxu0
        %3099 = vdwg.mxu0
        %v3101 = vsel %vm2825, %v2880, 0
        %3103 = vmatprep.subr.mxu0 0.0
        %3104 = vmatpush1.msra.mxu0 0.0
        %3105 = vmatprep.subr.mxu0 0.0
        %3106 = vmatpush1.msra.mxu0 0.0
        %3107 = vmatprep.subr.mxu0 0.0
        %3108 = vmatpush1.msra.mxu0 0.0
        %3109 = vmatprep.subr.mxu0 0.0
        %3110 = vmatpush1.msra.mxu0 0.0
        %3111 = vmatprep.subr.mxu0 0.0
        %3112 = vmatpush1.msra.mxu0 0.0
        %3113 = vmatprep.subr.mxu0 0.0
        %3114 = vmatpush1.msra.mxu0 0.0
        %3115 = vmatprep.subr.mxu0 0.0
        %3116 = vmatpush1.msra.mxu0 0.0
        %3117 = vmatprep.subr.mxu0 0.0
        %3118 = vmatpush1.msra.mxu0 0.0
        %3119 = vmatprep.subr.mxu0 0.0
        %3120 = vmatpush1.msra.mxu0 0.0
        %3121 = vmatprep.subr.mxu0 0.0
        %3122 = vmatpush1.msra.mxu0 0.0
        %3123 = vmatprep.subr.mxu0 0.0
        %3124 = vmatpush1.msra.mxu0 0.0
        %3125 = vmatprep.subr.mxu0 0.0
        %3126 = vmatpush1.msra.mxu0 0.0
        %3127 = vmatprep.subr.mxu0 0.0
        %3128 = vmatpush1.msra.mxu0 0.0
        %3129 = vmatprep.subr.mxu0 0.0
        %3130 = vmatpush1.msra.mxu0 0.0
        %3131 = vmatprep.subr.mxu0 0.0
        %3132 = vmatpush1.msra.mxu0 0.0
        %3133 = vmatprep.subr.mxu0 0.0
        %3134 = vmatpush1.msra.mxu0 %v2952
        %3135 = vmatprep.subr.mxu0 0.0
        %3136 = vmatpush2.msra.mxu0 0.0
        %3137 = vmatprep.subr.mxu0 0.0
        %3138 = vmatpush2.msra.mxu0 0.0
        %3139 = vmatprep.subr.mxu0 0.0
        %3140 = vmatpush2.msra.mxu0 0.0
        %3141 = vmatprep.subr.mxu0 0.0
        %3142 = vmatpush2.msra.mxu0 0.0
        %3143 = vmatprep.subr.mxu0 0.0
        %3144 = vmatpush2.msra.mxu0 0.0
        %3145 = vmatprep.subr.mxu0 0.0
        %3146 = vmatpush2.msra.mxu0 0.0
        %3147 = vmatprep.subr.mxu0 0.0
        %3148 = vmatpush2.msra.mxu0 0.0
        %3149 = vmatprep.subr.mxu0 0.0
        %3150 = vmatpush2.msra.mxu0 0.0
        %3151 = vmatprep.subr.mxu0 0.0
        %3152 = vmatpush2.msra.mxu0 0.0
        %3153 = vmatprep.subr.mxu0 0.0
        %3154 = vmatpush2.msra.mxu0 0.0
        %3155 = vmatprep.subr.mxu0 0.0
        %3156 = vmatpush2.msra.mxu0 0.0
        %3157 = vmatprep.subr.mxu0 0.0
        %3158 = vmatpush2.msra.mxu0 0.0
        %3159 = vmatprep.subr.mxu0 0.0
        %3160 = vmatpush2.msra.mxu0 0.0
        %3161 = vmatprep.subr.mxu0 0.0
        %3162 = vmatpush2.msra.mxu0 0.0
        %3163 = vmatprep.subr.mxu0 0.0
        %3164 = vmatpush2.msra.mxu0 0.0
        %3165 = vmatprep.subr.mxu0 0.0
        %3166 = vmatpush2.msra.mxu0 0.0
        %3167 = vmatprep.mubr.f32.mxu0 0.0
        %3168 = vmatmul.mubr.f32.gmra.mxu0 %v3101
        %v3169 = vpop.f32.mrf.mxu0
        %v3170 = vadd.f32 0.0, %v3169
        %v3171 = vpop.f32.mrf.mxu0
        %3172 = vdwg.mxu0
        %v3174 = vsel %vm2825, %v2881, 0
        %3176 = vmatprep.subr.mxu0 0.0
        %3177 = vmatpush1.msra.mxu0 0.0
        %3178 = vmatprep.subr.mxu0 0.0
        %3179 = vmatpush1.msra.mxu0 0.0
        %3180 = vmatprep.subr.mxu0 0.0
        %3181 = vmatpush1.msra.mxu0 0.0
        %3182 = vmatprep.subr.mxu0 0.0
        %3183 = vmatpush1.msra.mxu0 0.0
        %3184 = vmatprep.subr.mxu0 0.0
        %3185 = vmatpush1.msra.mxu0 0.0
        %3186 = vmatprep.subr.mxu0 0.0
        %3187 = vmatpush1.msra.mxu0 0.0
        %3188 = vmatprep.subr.mxu0 0.0
        %3189 = vmatpush1.msra.mxu0 0.0
        %3190 = vmatprep.subr.mxu0 0.0
        %3191 = vmatpush1.msra.mxu0 0.0
        %3192 = vmatprep.subr.mxu0 0.0
        %3193 = vmatpush1.msra.mxu0 0.0
        %3194 = vmatprep.subr.mxu0 0.0
        %3195 = vmatpush1.msra.mxu0 0.0
        %3196 = vmatprep.subr.mxu0 0.0
        %3197 = vmatpush1.msra.mxu0 0.0
        %3198 = vmatprep.subr.mxu0 0.0
        %3199 = vmatpush1.msra.mxu0 0.0
        %3200 = vmatprep.subr.mxu0 0.0
        %3201 = vmatpush1.msra.mxu0 0.0
        %3202 = vmatprep.subr.mxu0 0.0
        %3203 = vmatpush1.msra.mxu0 0.0
        %3204 = vmatprep.subr.mxu0 0.0
        %3205 = vmatpush1.msra.mxu0 0.0
        %3206 = vmatprep.subr.mxu0 0.0
        %3207 = vmatpush1.msra.mxu0 %v2953
        %3208 = vmatprep.subr.mxu0 0.0
        %3209 = vmatpush2.msra.mxu0 0.0
        %3210 = vmatprep.subr.mxu0 0.0
        %3211 = vmatpush2.msra.mxu0 0.0
        %3212 = vmatprep.subr.mxu0 0.0
        %3213 = vmatpush2.msra.mxu0 0.0
        %3214 = vmatprep.subr.mxu0 0.0
        %3215 = vmatpush2.msra.mxu0 0.0
        %3216 = vmatprep.subr.mxu0 0.0
        %3217 = vmatpush2.msra.mxu0 0.0
        %3218 = vmatprep.subr.mxu0 0.0
        %3219 = vmatpush2.msra.mxu0 0.0
        %3220 = vmatprep.subr.mxu0 0.0
        %3221 = vmatpush2.msra.mxu0 0.0
        %3222 = vmatprep.subr.mxu0 0.0
        %3223 = vmatpush2.msra.mxu0 0.0
        %3224 = vmatprep.subr.mxu0 0.0
        %3225 = vmatpush2.msra.mxu0 0.0
        %3226 = vmatprep.subr.mxu0 0.0
        %3227 = vmatpush2.msra.mxu0 0.0
        %3228 = vmatprep.subr.mxu0 0.0
        %3229 = vmatpush2.msra.mxu0 0.0
        %3230 = vmatprep.subr.mxu0 0.0
        %3231 = vmatpush2.msra.mxu0 0.0
        %3232 = vmatprep.subr.mxu0 0.0
        %3233 = vmatpush2.msra.mxu0 0.0
        %3234 = vmatprep.subr.mxu0 0.0
        %3235 = vmatpush2.msra.mxu0 0.0
        %3236 = vmatprep.subr.mxu0 0.0
        %3237 = vmatpush2.msra.mxu0 0.0
        %3238 = vmatprep.subr.mxu0 0.0
        %3239 = vmatpush2.msra.mxu0 0.0
        %3240 = vmatprep.mubr.f32.mxu0 0.0
        %3241 = vmatmul.mubr.f32.gmra.mxu0 %v3174
        %v3242 = vpop.f32.mrf.mxu0
        %v3243 = vadd.f32 0.0, %v3242
        %v3244 = vpop.f32.mrf.mxu0
        %3245 = vdwg.mxu0
        %v3246 = vcombine.low %v3024, %v3170
        %v3247 = vcombine.high %v3024, %v3170
        %v3249 = vunpack.c.l.s4 1983009808
        %v3250 = vunpack.c.0.s8 %v3249
        %v3251 = vlaneseq
        %v3252 = vshrl.u32 %v3251, 7
        %v3253 = vsub.s32 %v3250, %v3252
        %v3254 = vrot.slane %v3246, %v3253
        %v3256 = vunpack.c.l.s4 1983009808
        %v3257 = vunpack.c.0.s8 %v3256
        %v3258 = vlaneseq
        %v3259 = vshrl.u32 %v3258, 7
        %v3260 = vsub.s32 %v3257, %v3259
        %v3261 = vrot.slane %v3247, %v3260
        %v3262 = vcombine.low %v3097, %v3243
        %v3263 = vcombine.high %v3097, %v3243
        %v3265 = vunpack.c.l.s4 1983009808
        %v3266 = vunpack.c.0.s8 %v3265
        %v3267 = vlaneseq
        %v3268 = vshrl.u32 %v3267, 7
        %v3269 = vsub.s32 %v3266, %v3268
        %v3270 = vrot.slane %v3262, %v3269
        %v3272 = vunpack.c.l.s4 1983009808
        %v3273 = vunpack.c.0.s8 %v3272
        %v3274 = vlaneseq
        %v3275 = vshrl.u32 %v3274, 7
        %v3276 = vsub.s32 %v3273, %v3275
        %v3277 = vrot.slane %v3263, %v3276
        %v3278 = vcombine.low %v3254, %v3270
        %v3279 = vcombine.high %v3254, %v3270
        %v3281 = vunpack.c.l.s4 1934713408
        %v3282 = vunpack.c.0.s8 %v3281
        %v3283 = vlaneseq
        %v3284 = vshrl.u32 %v3283, 7
        %v3285 = vsub.s32 %v3282, %v3284
        %v3286 = vrot.slane %v3278, %v3285
        %v3288 = vunpack.c.l.s4 1934713408
        %v3289 = vunpack.c.0.s8 %v3288
        %v3290 = vlaneseq
        %v3291 = vshrl.u32 %v3290, 7
        %v3292 = vsub.s32 %v3289, %v3291
        %v3293 = vrot.slane %v3279, %v3292
        %v3294 = vcombine.low %v3261, %v3277
        %v3295 = vcombine.high %v3261, %v3277
        %v3297 = vunpack.c.l.s4 1934713408
        %v3298 = vunpack.c.0.s8 %v3297
        %v3299 = vlaneseq
        %v3300 = vshrl.u32 %v3299, 7
        %v3301 = vsub.s32 %v3298, %v3300
        %v3302 = vrot.slane %v3294, %v3301
        %v3304 = vunpack.c.l.s4 1934713408
        %v3305 = vunpack.c.0.s8 %v3304
        %v3306 = vlaneseq
        %v3307 = vshrl.u32 %v3306, 7
        %v3308 = vsub.s32 %v3305, %v3307
        %v3309 = vrot.slane %v3295, %v3308
        %v3310 = vcombine.high %v3286, 0.0
        %v3311 = vcombine.high %v3293, 0.0
        %v3312 = vcombine.high %v3302, 0.0
        %v3313 = vcombine.high %v3309, 0.0
        %vm3314 = vcmask 257024
        %3315 = vst.msk [vmem:[%s316] sm:$0xf] %vm3314, %v3286
        %3316 = vst.msk [vmem:[%s316 + $0x4] sm:$0xf] %vm3314, %v3310
        %3317 = vst.msk [vmem:[%s316 + $0x8] sm:$0xf] %vm3314, %v3293
        %3318 = vst.msk [vmem:[%s316 + $0xc] sm:$0xf] %vm3314, %v3311
        %3319 = vst.msk [vmem:[%s316 + $0x10] sm:$0xf] %vm3314, %v3302
        %3320 = vst.msk [vmem:[%s316 + $0x14] sm:$0xf] %vm3314, %v3312
        %3321 = vst.msk [vmem:[%s316 + $0x18] sm:$0xf] %vm3314, %v3309
        %3322 = vst.msk [vmem:[%s316 + $0x1c] sm:$0xf] %vm3314, %v3313
        %s3323 = sand.u32 %s130, 1
        %s3324 = scalar_lea.sflag [#allocation4], %s3323
        %s3325 = sand.u32 %s130, 1
        %s3326 = smul.addr %s3325, 32
        %s3327 = scalar_lea.vmem [#allocation8], %s3326
        %s3328 = sand.u32 %s158, 1
        %s3329 = scalar_lea.sflag [#allocation10], %s3328
        %s3330 = sand.u32 %s158, 1
        %s3331 = smul.addr %s3330, 32
        %s3332 = scalar_lea.vmem [#allocation9], %s3331
        // Predicated region
        $region45: #{tpu_custom_call.1} parent=31 // pred_check
          %p3333 = pneg %p140
        $region46: #{tpu_custom_call.1} parent=31 // pred_check_branch
          %3335 = sbr.rel (%p3333) target = $region48
        $region47: #{tpu_custom_call.1} parent=31 // pred_region
          %s3336 = smul.u32 8, %s33
          %s3338 = ssub.s32 512, 512
          %3339 = vsyncadd %s3324, %s3338
          %s3340 = smul.addr %s32, 8
          %s3341 = sadd.s32 %s3336, %s3340
          %s3342 = smul.addr %s3341, 64
          %s3343 = scalar_lea.hbm %s3, %s3342
          %s3344 = sshll.u32 %s3327, 4
          %s3345 = int_to_ptr.vmem [resolvable:$true] %s3344
          %3350 = dma.vmem_to_hbm [thread:$0]  %s3345, 512, %s3343, %s3324, 64, 64, 4
        $region48: #{tpu_custom_call.1} parent=31 // pred_fallthru
          _
        // Predicated region
        $region49: #{tpu_custom_call.1} parent=31 // pred_check
          %p3351 = pneg %p168
        $region50: #{tpu_custom_call.1} parent=31 // pred_check_branch
          %3353 = sbr.rel (%p3351) target = $region52
        $region51: #{tpu_custom_call.1} parent=31 // pred_region
          %s3355 = ssub.s32 512, 512
          %3356 = vsyncadd %s3329, %s3355
          %s3357 = smul.addr %s32, 4
          %s3358 = sadd.s32 %s33, %s3357
          %s3359 = smul.addr %s3358, 128
          %s3360 = scalar_lea.hbm %s4, %s3359
          %s3361 = sshll.u32 %s3332, 4
          %s3362 = int_to_ptr.vmem [resolvable:$true] %s3361
          %3367 = dma.vmem_to_hbm [thread:$0]  %s3362, 512, %s3360, %s3329, 128, 128, 8
        $region52: #{tpu_custom_call.1} parent=31 // pred_fallthru
          _
      $region32: #{tpu_custom_call.1} parent=5 // pred_fallthru
        _
      %p3368 = scmp.le.s32.totalorder 2, %s23
      // Predicated region
      $region53: #{tpu_custom_call.1} parent=5 // pred_check
        %p3369 = pneg %p3368
      $region54: #{tpu_custom_call.1} parent=5 // pred_check_branch
        %3371 = sbr.rel (%p3369) target = $region56
      $region55: #{tpu_custom_call.1} parent=5 // pred_region
        %s3372 = ssub.s32 %s23, 2
        // Predicated region
        $region57: #{tpu_custom_call.1} parent=55 // pred_check
          %p3373 = pneg %p146
        $region58: #{tpu_custom_call.1} parent=55 // pred_check_branch
          %3375 = sbr.rel (%p3373) target = $region60
        $region59: #{tpu_custom_call.1} parent=55 // pred_region
          %s3376 = sand.u32 %s131, 1
          %s3377 = scalar_lea.sflag [#allocation4], %s3376
          %s3378 = sand.u32 %s131, 1
          %s3379 = smul.addr %s3378, 32
          %s3380 = scalar_lea.vmem [#allocation8], %s3379
          %3381 = dma.done %s3377, 512
        $region60: #{tpu_custom_call.1} parent=55 // pred_fallthru
          _
        // Predicated region
        $region61: #{tpu_custom_call.1} parent=55 // pred_check
          %p3382 = pneg %p174
        $region62: #{tpu_custom_call.1} parent=55 // pred_check_branch
          %3384 = sbr.rel (%p3382) target = $region64
        $region63: #{tpu_custom_call.1} parent=55 // pred_region
          %s3385 = sand.u32 %s159, 1
          %s3386 = scalar_lea.sflag [#allocation10], %s3385
          %s3387 = sand.u32 %s159, 1
          %s3388 = smul.addr %s3387, 32
          %s3389 = scalar_lea.vmem [#allocation9], %s3388
          %3390 = dma.done %s3386, 512
        $region64: #{tpu_custom_call.1} parent=55 // pred_fallthru
          _
      $region56: #{tpu_custom_call.1} parent=5 // pred_fallthru
        _
    $region6: #{tpu_custom_call.1} parent=1 // loop_footer
      %s27 = sadd.s32 1, %s23
    $region7: #{tpu_custom_call.1} parent=1 // loop_footer_branch
      %22 = sbr.rel target = $region3
    $region8: #{tpu_custom_call.1} parent=1 // loop_exit
      _
    %3391 = vsyncpa [#allocation3], 1
    %s3392 = scalar_lea.sflag [#allocation3], 1
    %3393 = vsyncpa %s3392, 1
    %3394 = vsyncpa [#allocation6], 1
    %s3395 = scalar_lea.sflag [#allocation6], 1
    %3396 = vsyncpa %s3395, 1
    %3397 = vsyncpa [#allocation4], 1
    %s3398 = scalar_lea.sflag [#allocation4], 1
    %3399 = vsyncpa %s3398, 1
    %3400 = vsyncpa [#allocation10], 1
    %s3401 = scalar_lea.sflag [#allocation10], 1
    %3402 = vsyncpa %s3401, 1

</llo_original>
